<compile_context>
chip_gen: v5e
topology: v5e:2x2
jax: 0.10.0
libtpu: 0.0.40
codegen_flags: <defaults>
</compile_context>

<pallas_src>
import jax
import jax.numpy as jnp
from jax.experimental import pallas as pl
from jax.experimental.pallas import tpu as pltpu


# ----------------------------------------------------------------------------
# Pallas kernel (one batch tile per grid step)
# ----------------------------------------------------------------------------
def trading_agent_kernel(
    x_ref,                 # (T, Bt, Din)  time-major batch tile
    wsh_ref, bsh_ref,      # (Din, S), (1, S)
    wih_ref,               # (S, 12H)   fused input->gate weights (gate-major i|f|o|g)
    whh_ref,               # (3H, 12H)  block-diagonal hidden->gate weights
    b_ref,                 # (1, 12H)   summed biases, same column layout
    whd_ref, bhd_ref,      # (3H, 4), (1, 4)  fused heads [dir(2) | size(1) | stop(1)]
    out_ref,               # (Bt, 4)
):
    T, Bt, Din = x_ref.shape
    H3, H12 = whh_ref.shape          # 3H, 12H
    n_sig = 3 * H3                   # 9H: i|f|o columns (all sigmoid gates)

    # shared = ReLU(x @ Wsh + bsh) on the flattened (T*Bt, Din) slab.
    x2 = x_ref[...].reshape(T * Bt, Din)
    shared = jnp.maximum(
        jnp.dot(x2, wsh_ref[...], preferred_element_type=jnp.float32) + bsh_ref[...],
        0.0,
    )                                                    # (T*Bt, S)

    # Input contribution for all three LSTMs and all timesteps in one MXU pass.
    xg = (
        jnp.dot(shared, wih_ref[...], preferred_element_type=jnp.float32) + b_ref[...]
    ).reshape(T, Bt, H12)                                # (T, Bt, 12H)

    whh = whh_ref[...]                                   # (3H, 12H)
    h_cat = jnp.zeros((Bt, H3), jnp.float32)             # [h_macro | h_vol | h_price]
    c_cat = jnp.zeros((Bt, H3), jnp.float32)

    # Static time loop (T known at trace time; T=8 here).
    for t in range(T):
        gates = xg[t] + jnp.dot(h_cat, whh, preferred_element_type=jnp.float32)  # (Bt, 12H)
        ifo = jax.nn.sigmoid(gates[:, :n_sig])           # one wide sigmoid over 9H lanes
        g_all = jnp.tanh(gates[:, n_sig:])               # one tanh over 3H lanes
        i_all = ifo[:, 0:H3]
        f_all = ifo[:, H3:2 * H3]
        o_all = ifo[:, 2 * H3:3 * H3]
        c_cat = f_all * c_cat + i_all * g_all
        h_cat = o_all * jnp.tanh(c_cat)

    # Fused heads: one (Bt, 3H) @ (3H, 4) matmul, then per-column activation.
    fused = (
        jnp.dot(h_cat, whd_ref[...], preferred_element_type=jnp.float32) + bhd_ref[...]
    )                                                    # (Bt, 4)
    col = jax.lax.broadcasted_iota(jnp.int32, fused.shape, 1)
    out = jnp.where(
        col == 2, jax.nn.sigmoid(fused),                 # size head -> sigmoid
        jnp.where(col == 3, jnp.maximum(fused, 0.0),     # stop head -> ReLU
                  fused),                                # direction logits -> identity
    )
    out_ref[...] = out


# ----------------------------------------------------------------------------
# Wrapper
# ----------------------------------------------------------------------------
def trading_agent_forward(x, packed, *, b_tile=None):
    """x: (B, T, Din) float32 (batch-first, like the PyTorch module).
    packed: dict from pack_params()."""
    B, T, Din = x.shape
    x_tm = jnp.transpose(x, (1, 0, 2))                   # time-major (T, B, Din)

    if b_tile is None:
        b_tile = B if B <= 128 else 128                  # 128 rows fills MXU rows on v5e;
    assert B % b_tile == 0                               # keep xg slab small for v7x VMEM
    grid = (B // b_tile,)

    def full_spec(arr):
        nd = arr.ndim
        return pl.BlockSpec(arr.shape, lambda i: (0,) * nd)

    in_specs = [
        pl.BlockSpec((T, b_tile, Din), lambda i: (0, i, 0)),
        full_spec(packed["w_shared"]), full_spec(packed["b_shared"]),
        full_spec(packed["w_ih_cat"]), full_spec(packed["w_hh_blk"]),
        full_spec(packed["b_cat"]),
        full_spec(packed["w_head"]), full_spec(packed["b_head"]),
    ]
    out_specs = pl.BlockSpec((b_tile, 4), lambda i: (i, 0))

    fused = pl.pallas_call(
        trading_agent_kernel,
        out_shape=jax.ShapeDtypeStruct((B, 4), jnp.float32),
        grid=grid,
        in_specs=in_specs,
        out_specs=out_specs,
        compiler_params=pltpu.CompilerParams(dimension_semantics=("parallel",)),
    )(
        x_tm,
        packed["w_shared"], packed["b_shared"],
        packed["w_ih_cat"], packed["w_hh_blk"], packed["b_cat"],
        packed["w_head"], packed["b_head"],
    )

    dir_logits = fused[:, 0:2]
    size_out = fused[:, 2:3]
    stop_out = fused[:, 3:4]
    return dir_logits, size_out, stop_out


# ----------------------------------------------------------------------------
# Parameter packing: per-LSTM (PyTorch-convention, pre-transposed) -> fused layout
# ----------------------------------------------------------------------------
def pack_params(params, lstm_dim):
    H = lstm_dim
    names = ["macro", "vol", "price"]
    # Source gate order in stored weights is PyTorch's (i, f, g, o).
    # Target column layout is gate-major (i | f | o | g), each 3H wide with
    # sub-order (macro, vol, price), so sigmoid gates are one contiguous 9H block.
    gate_order = [0, 1, 3, 2]  # i, f, o, g

    ih_cols, b_cols, hh_cols = [], [], []
    for g in gate_order:
        for li, n in enumerate(names):
            ih_cols.append(params[f"w_ih_{n}"][:, g * H:(g + 1) * H])
            b_cols.append(params[f"b_{n}"][:, g * H:(g + 1) * H])
            blk = jnp.zeros((3 * H, H), jnp.float32)
            blk = blk.at[li * H:(li + 1) * H, :].set(
                params[f"w_hh_{n}"][:, g * H:(g + 1) * H]
            )
            hh_cols.append(blk)
    w_ih_cat = jnp.concatenate(ih_cols, axis=1)          # (S, 12H)
    b_cat = jnp.concatenate(b_cols, axis=1)              # (1, 12H)
    w_hh_blk = jnp.concatenate(hh_cols, axis=1)          # (3H, 12H) block-diagonal

    w_head = jnp.zeros((3 * H, 4), jnp.float32)
    w_head = w_head.at[0:H, 0:2].set(params["w_dir"])
    w_head = w_head.at[H:2 * H, 2:3].set(params["w_size"])
    w_head = w_head.at[2 * H:3 * H, 3:4].set(params["w_stop"])
    b_head = jnp.concatenate(
        [params["b_dir"], params["b_size"], params["b_stop"]], axis=1
    )                                                    # (1, 4)

    return dict(
        w_shared=params["w_shared"], b_shared=params["b_shared"],
        w_ih_cat=w_ih_cat, w_hh_blk=w_hh_blk, b_cat=b_cat,
        w_head=w_head, b_head=b_head,
    )


# ----------------------------------------------------------------------------
# Pure-JAX reference (unfused, per-LSTM) for correctness check
# ----------------------------------------------------------------------------
def reference_forward(x, params):
    B, T, Din = x.shape
    H = params["w_hh_macro"].shape[0]
    shared = jnp.maximum(x @ params["w_shared"] + params["b_shared"], 0.0)

    def run_lstm(wih, whh, b):
        xg = shared @ wih + b  # (B, T, 4H), gate order i,f,g,o
        h = jnp.zeros((B, H), jnp.float32)
        c = jnp.zeros((B, H), jnp.float32)
        for t in range(T):
            g = xg[:, t, :] + h @ whh
            i_g = jax.nn.sigmoid(g[:, 0:H])
            f_g = jax.nn.sigmoid(g[:, H:2 * H])
            g_g = jnp.tanh(g[:, 2 * H:3 * H])
            o_g = jax.nn.sigmoid(g[:, 3 * H:4 * H])
            c = f_g * c + i_g * g_g
            h = o_g * jnp.tanh(c)
        return h

    h_m = run_lstm(params["w_ih_macro"], params["w_hh_macro"], params["b_macro"])
    h_v = run_lstm(params["w_ih_vol"], params["w_hh_vol"], params["b_vol"])
    h_p = run_lstm(params["w_ih_price"], params["w_hh_price"], params["b_price"])

    d = h_m @ params["w_dir"] + params["b_dir"]
    s = jax.nn.sigmoid(h_v @ params["w_size"] + params["b_size"])
    st = jnp.maximum(h_p @ params["w_stop"] + params["b_stop"], 0.0)
    return d, s, st


# ----------------------------------------------------------------------------
# Deterministic parameter init (mimics shapes of the PyTorch module)
# ----------------------------------------------------------------------------
def init_params(key, input_size, shared_dim=64, lstm_dim=64):
    ks = jax.random.split(key, 20)
    u = lambda k, shape, scale: jax.random.uniform(
        k, shape, jnp.float32, -scale, scale
    )

    params = {
        # shared Linear: torch weight (S, Din) -> stored transposed (Din, S)
        "w_shared": u(ks[0], (input_size, shared_dim), 0.1),
        "b_shared": u(ks[1], (1, shared_dim), 0.1),
        # heads: torch weight (out, H) -> stored transposed (H, out)
        "w_dir": u(ks[2], (lstm_dim, 2), 0.1),
        "b_dir": u(ks[3], (1, 2), 0.1),
        "w_size": u(ks[4], (lstm_dim, 1), 0.1),
        "b_size": u(ks[5], (1, 1), 0.1),
        "w_stop": u(ks[6], (lstm_dim, 1), 0.1),
        "b_stop": u(ks[7], (1, 1), 0.1),
    }
    # LSTMs: torch W_ih (4H, S), W_hh (4H, H), b_ih (4H,), b_hh (4H,)
    # stored transposed, biases summed (b = b_ih + b_hh), gate order i,f,g,o.
    names = ["macro", "vol", "price"]
    for n_i, name in enumerate(names):
        base = 8 + n_i * 4
        params[f"w_ih_{name}"] = u(ks[base + 0], (shared_dim, 4 * lstm_dim), 0.1)
        params[f"w_hh_{name}"] = u(ks[base + 1], (lstm_dim, 4 * lstm_dim), 0.1)
        b_ih = u(ks[base + 2], (1, 4 * lstm_dim), 0.1)
        b_hh = u(ks[base + 3], (1, 4 * lstm_dim), 0.1)
        params[f"b_{name}"] = b_ih + b_hh
    return params


if __name__ == "__main__":
    B, T, D_IN = 2, 8, 16
    SHARED, LSTM = 64, 64

    key = jax.random.PRNGKey(0)
    k_x, k_p = jax.random.split(key)
    x = jax.random.normal(k_x, (B, T, D_IN), jnp.float32)
    params = init_params(k_p, D_IN, SHARED, LSTM)
    packed = pack_params(params, LSTM)

    dir_logits, size_out, stop_out = jax.block_until_ready(
        trading_agent_forward(x, packed)
    )

    # correctness check against pure-JAX (unfused) reference
    d_ref, s_ref, st_ref = reference_forward(x, params)
    assert jnp.allclose(dir_logits, d_ref, atol=2e-5, rtol=2e-5)
    assert jnp.allclose(size_out, s_ref, atol=2e-5, rtol=2e-5)
    assert jnp.allclose(stop_out, st_ref, atol=2e-5, rtol=2e-5)

    assert dir_logits.shape == (B, 2)
    assert size_out.shape == (B, 1)
    assert stop_out.shape == (B, 1)

    print("KERNEL_OK")
</pallas_src>

<mosaic_0001>
module attributes {stable_mosaic.version = 11 : i64} {
  func.func @trading_agent_kernel(%arg0: i32, %arg1: memref<8x2x16xf32, #tpu.memory_space<vmem>>, %arg2: memref<16x64xf32, #tpu.memory_space<vmem>>, %arg3: memref<1x64xf32, #tpu.memory_space<vmem>>, %arg4: memref<64x768xf32, #tpu.memory_space<vmem>>, %arg5: memref<192x768xf32, #tpu.memory_space<vmem>>, %arg6: memref<1x768xf32, #tpu.memory_space<vmem>>, %arg7: memref<192x4xf32, #tpu.memory_space<vmem>>, %arg8: memref<1x4xf32, #tpu.memory_space<vmem>>, %arg9: memref<2x4xf32, #tpu.memory_space<vmem>>) attributes {dimension_semantics = [#tpu.dimension_semantics<parallel>], iteration_bounds = array<i64: 1>, scalar_prefetch = 0 : i64, scratch_operands = 0 : i64, tpu.core_type = #tpu.core_type<tc>, window_params = [{transform_indices = @transform_0, window_bounds = array<i64: 8, 2, 16>}, {pipeline_mode = #tpu.pipeline_mode<synchronous>, transform_indices = @transform_1, window_bounds = array<i64: 16, 64>}, {pipeline_mode = #tpu.pipeline_mode<synchronous>, transform_indices = @transform_2, window_bounds = array<i64: 1, 64>}, {pipeline_mode = #tpu.pipeline_mode<synchronous>, transform_indices = @transform_3, window_bounds = array<i64: 64, 768>}, {pipeline_mode = #tpu.pipeline_mode<synchronous>, transform_indices = @transform_4, window_bounds = array<i64: 192, 768>}, {pipeline_mode = #tpu.pipeline_mode<synchronous>, transform_indices = @transform_5, window_bounds = array<i64: 1, 768>}, {pipeline_mode = #tpu.pipeline_mode<synchronous>, transform_indices = @transform_6, window_bounds = array<i64: 192, 4>}, {pipeline_mode = #tpu.pipeline_mode<synchronous>, transform_indices = @transform_7, window_bounds = array<i64: 1, 4>}, {transform_indices = @transform_8, window_bounds = array<i64: 2, 4>}]} {
    %c0 = arith.constant 0 : index
    %c0_0 = arith.constant 0 : index
    %c0_1 = arith.constant 0 : index
    %0 = vector.load %arg1[%c0, %c0_0, %c0_1] : memref<8x2x16xf32, #tpu.memory_space<vmem>>, vector<8x2x16xf32>
    %1 = vector.shape_cast %0 : vector<8x2x16xf32> to vector<16x16xf32>
    %c0_2 = arith.constant 0 : index
    %c0_3 = arith.constant 0 : index
    %2 = vector.load %arg2[%c0_2, %c0_3] : memref<16x64xf32, #tpu.memory_space<vmem>>, vector<16x64xf32>
    %cst = arith.constant dense<0.000000e+00> : vector<16x64xf32>
    %3 = tpu.matmul %1, %2, %cst {dimension_numbers = #tpu.dot_dimension_numbers<[1], [0], [0], [1], [0, 0, 1, 1], [], []>} : vector<16x16xf32>, vector<16x64xf32>, vector<16x64xf32> -> vector<16x64xf32>
    %c0_4 = arith.constant 0 : index
    %c0_5 = arith.constant 0 : index
    %4 = vector.load %arg3[%c0_4, %c0_5] : memref<1x64xf32, #tpu.memory_space<vmem>>, vector<1x64xf32>
    %5 = vector.broadcast %4 : vector<1x64xf32> to vector<16x64xf32>
    %6 = arith.addf %3, %5 : vector<16x64xf32>
    %cst_6 = arith.constant 0.000000e+00 : f32
    %7 = vector.broadcast %cst_6 : f32 to vector<16x64xf32>
    %8 = arith.maximumf %6, %7 : vector<16x64xf32>
    %c0_7 = arith.constant 0 : index
    %c0_8 = arith.constant 0 : index
    %9 = vector.load %arg4[%c0_7, %c0_8] : memref<64x768xf32, #tpu.memory_space<vmem>>, vector<64x768xf32>
    %cst_9 = arith.constant dense<0.000000e+00> : vector<16x768xf32>
    %10 = tpu.matmul %8, %9, %cst_9 {dimension_numbers = #tpu.dot_dimension_numbers<[1], [0], [0], [1], [0, 0, 1, 1], [], []>} : vector<16x64xf32>, vector<64x768xf32>, vector<16x768xf32> -> vector<16x768xf32>
    %c0_10 = arith.constant 0 : index
    %c0_11 = arith.constant 0 : index
    %11 = vector.load %arg6[%c0_10, %c0_11] : memref<1x768xf32, #tpu.memory_space<vmem>>, vector<1x768xf32>
    %12 = vector.broadcast %11 : vector<1x768xf32> to vector<16x768xf32>
    %13 = arith.addf %10, %12 : vector<16x768xf32>
    %14 = vector.shape_cast %13 : vector<16x768xf32> to vector<8x2x768xf32>
    %c0_12 = arith.constant 0 : index
    %c0_13 = arith.constant 0 : index
    %15 = vector.load %arg5[%c0_12, %c0_13] : memref<192x768xf32, #tpu.memory_space<vmem>>, vector<192x768xf32>
    %cst_14 = arith.constant 0.000000e+00 : f32
    %16 = vector.broadcast %cst_14 : f32 to vector<2x192xf32>
    %cst_15 = arith.constant 0.000000e+00 : f32
    %17 = vector.broadcast %cst_15 : f32 to vector<2x192xf32>
    %18 = vector.extract_strided_slice %14 {offsets = [0, 0, 0], sizes = [1, 2, 768], strides = [1, 1, 1]} : vector<8x2x768xf32> to vector<1x2x768xf32>
    %19 = vector.shape_cast %18 : vector<1x2x768xf32> to vector<2x768xf32>
    %cst_16 = arith.constant dense<0.000000e+00> : vector<2x768xf32>
    %20 = tpu.matmul %16, %15, %cst_16 {dimension_numbers = #tpu.dot_dimension_numbers<[1], [0], [0], [1], [0, 0, 1, 1], [], []>} : vector<2x192xf32>, vector<192x768xf32>, vector<2x768xf32> -> vector<2x768xf32>
    %21 = arith.addf %19, %20 : vector<2x768xf32>
    %22 = vector.extract_strided_slice %21 {offsets = [0, 0], sizes = [2, 576], strides = [1, 1]} : vector<2x768xf32> to vector<2x576xf32>
    %23 = arith.negf %22 : vector<2x576xf32>
    %24 = math.exp %23 : vector<2x576xf32>
    %cst_17 = arith.constant 1.000000e+00 : f32
    %25 = vector.broadcast %cst_17 : f32 to vector<2x576xf32>
    %26 = arith.addf %25, %24 : vector<2x576xf32>
    %27 = arith.divf %25, %26 : vector<2x576xf32>
    %28 = vector.extract_strided_slice %21 {offsets = [0, 576], sizes = [2, 192], strides = [1, 1]} : vector<2x768xf32> to vector<2x192xf32>
    %29 = math.tanh %28 : vector<2x192xf32>
    %30 = vector.extract_strided_slice %27 {offsets = [0, 0], sizes = [2, 192], strides = [1, 1]} : vector<2x576xf32> to vector<2x192xf32>
    %31 = vector.extract_strided_slice %27 {offsets = [0, 192], sizes = [2, 192], strides = [1, 1]} : vector<2x576xf32> to vector<2x192xf32>
    %32 = vector.extract_strided_slice %27 {offsets = [0, 384], sizes = [2, 192], strides = [1, 1]} : vector<2x576xf32> to vector<2x192xf32>
    %33 = arith.mulf %31, %17 : vector<2x192xf32>
    %34 = arith.mulf %30, %29 : vector<2x192xf32>
    %35 = arith.addf %33, %34 : vector<2x192xf32>
    %36 = math.tanh %35 : vector<2x192xf32>
    %37 = arith.mulf %32, %36 : vector<2x192xf32>
    %38 = vector.extract_strided_slice %14 {offsets = [1, 0, 0], sizes = [1, 2, 768], strides = [1, 1, 1]} : vector<8x2x768xf32> to vector<1x2x768xf32>
    %39 = vector.shape_cast %38 : vector<1x2x768xf32> to vector<2x768xf32>
    %cst_18 = arith.constant dense<0.000000e+00> : vector<2x768xf32>
    %40 = tpu.matmul %37, %15, %cst_18 {dimension_numbers = #tpu.dot_dimension_numbers<[1], [0], [0], [1], [0, 0, 1, 1], [], []>} : vector<2x192xf32>, vector<192x768xf32>, vector<2x768xf32> -> vector<2x768xf32>
    %41 = arith.addf %39, %40 : vector<2x768xf32>
    %42 = vector.extract_strided_slice %41 {offsets = [0, 0], sizes = [2, 576], strides = [1, 1]} : vector<2x768xf32> to vector<2x576xf32>
    %43 = arith.negf %42 : vector<2x576xf32>
    %44 = math.exp %43 : vector<2x576xf32>
    %cst_19 = arith.constant 1.000000e+00 : f32
    %45 = vector.broadcast %cst_19 : f32 to vector<2x576xf32>
    %46 = arith.addf %45, %44 : vector<2x576xf32>
    %47 = arith.divf %45, %46 : vector<2x576xf32>
    %48 = vector.extract_strided_slice %41 {offsets = [0, 576], sizes = [2, 192], strides = [1, 1]} : vector<2x768xf32> to vector<2x192xf32>
    %49 = math.tanh %48 : vector<2x192xf32>
    %50 = vector.extract_strided_slice %47 {offsets = [0, 0], sizes = [2, 192], strides = [1, 1]} : vector<2x576xf32> to vector<2x192xf32>
    %51 = vector.extract_strided_slice %47 {offsets = [0, 192], sizes = [2, 192], strides = [1, 1]} : vector<2x576xf32> to vector<2x192xf32>
    %52 = vector.extract_strided_slice %47 {offsets = [0, 384], sizes = [2, 192], strides = [1, 1]} : vector<2x576xf32> to vector<2x192xf32>
    %53 = arith.mulf %51, %35 : vector<2x192xf32>
    %54 = arith.mulf %50, %49 : vector<2x192xf32>
    %55 = arith.addf %53, %54 : vector<2x192xf32>
    %56 = math.tanh %55 : vector<2x192xf32>
    %57 = arith.mulf %52, %56 : vector<2x192xf32>
    %58 = vector.extract_strided_slice %14 {offsets = [2, 0, 0], sizes = [1, 2, 768], strides = [1, 1, 1]} : vector<8x2x768xf32> to vector<1x2x768xf32>
    %59 = vector.shape_cast %58 : vector<1x2x768xf32> to vector<2x768xf32>
    %cst_20 = arith.constant dense<0.000000e+00> : vector<2x768xf32>
    %60 = tpu.matmul %57, %15, %cst_20 {dimension_numbers = #tpu.dot_dimension_numbers<[1], [0], [0], [1], [0, 0, 1, 1], [], []>} : vector<2x192xf32>, vector<192x768xf32>, vector<2x768xf32> -> vector<2x768xf32>
    %61 = arith.addf %59, %60 : vector<2x768xf32>
    %62 = vector.extract_strided_slice %61 {offsets = [0, 0], sizes = [2, 576], strides = [1, 1]} : vector<2x768xf32> to vector<2x576xf32>
    %63 = arith.negf %62 : vector<2x576xf32>
    %64 = math.exp %63 : vector<2x576xf32>
    %cst_21 = arith.constant 1.000000e+00 : f32
    %65 = vector.broadcast %cst_21 : f32 to vector<2x576xf32>
    %66 = arith.addf %65, %64 : vector<2x576xf32>
    %67 = arith.divf %65, %66 : vector<2x576xf32>
    %68 = vector.extract_strided_slice %61 {offsets = [0, 576], sizes = [2, 192], strides = [1, 1]} : vector<2x768xf32> to vector<2x192xf32>
    %69 = math.tanh %68 : vector<2x192xf32>
    %70 = vector.extract_strided_slice %67 {offsets = [0, 0], sizes = [2, 192], strides = [1, 1]} : vector<2x576xf32> to vector<2x192xf32>
    %71 = vector.extract_strided_slice %67 {offsets = [0, 192], sizes = [2, 192], strides = [1, 1]} : vector<2x576xf32> to vector<2x192xf32>
    %72 = vector.extract_strided_slice %67 {offsets = [0, 384], sizes = [2, 192], strides = [1, 1]} : vector<2x576xf32> to vector<2x192xf32>
    %73 = arith.mulf %71, %55 : vector<2x192xf32>
    %74 = arith.mulf %70, %69 : vector<2x192xf32>
    %75 = arith.addf %73, %74 : vector<2x192xf32>
    %76 = math.tanh %75 : vector<2x192xf32>
    %77 = arith.mulf %72, %76 : vector<2x192xf32>
    %78 = vector.extract_strided_slice %14 {offsets = [3, 0, 0], sizes = [1, 2, 768], strides = [1, 1, 1]} : vector<8x2x768xf32> to vector<1x2x768xf32>
    %79 = vector.shape_cast %78 : vector<1x2x768xf32> to vector<2x768xf32>
    %cst_22 = arith.constant dense<0.000000e+00> : vector<2x768xf32>
    %80 = tpu.matmul %77, %15, %cst_22 {dimension_numbers = #tpu.dot_dimension_numbers<[1], [0], [0], [1], [0, 0, 1, 1], [], []>} : vector<2x192xf32>, vector<192x768xf32>, vector<2x768xf32> -> vector<2x768xf32>
    %81 = arith.addf %79, %80 : vector<2x768xf32>
    %82 = vector.extract_strided_slice %81 {offsets = [0, 0], sizes = [2, 576], strides = [1, 1]} : vector<2x768xf32> to vector<2x576xf32>
    %83 = arith.negf %82 : vector<2x576xf32>
    %84 = math.exp %83 : vector<2x576xf32>
    %cst_23 = arith.constant 1.000000e+00 : f32
    %85 = vector.broadcast %cst_23 : f32 to vector<2x576xf32>
    %86 = arith.addf %85, %84 : vector<2x576xf32>
    %87 = arith.divf %85, %86 : vector<2x576xf32>
    %88 = vector.extract_strided_slice %81 {offsets = [0, 576], sizes = [2, 192], strides = [1, 1]} : vector<2x768xf32> to vector<2x192xf32>
    %89 = math.tanh %88 : vector<2x192xf32>
    %90 = vector.extract_strided_slice %87 {offsets = [0, 0], sizes = [2, 192], strides = [1, 1]} : vector<2x576xf32> to vector<2x192xf32>
    %91 = vector.extract_strided_slice %87 {offsets = [0, 192], sizes = [2, 192], strides = [1, 1]} : vector<2x576xf32> to vector<2x192xf32>
    %92 = vector.extract_strided_slice %87 {offsets = [0, 384], sizes = [2, 192], strides = [1, 1]} : vector<2x576xf32> to vector<2x192xf32>
    %93 = arith.mulf %91, %75 : vector<2x192xf32>
    %94 = arith.mulf %90, %89 : vector<2x192xf32>
    %95 = arith.addf %93, %94 : vector<2x192xf32>
    %96 = math.tanh %95 : vector<2x192xf32>
    %97 = arith.mulf %92, %96 : vector<2x192xf32>
    %98 = vector.extract_strided_slice %14 {offsets = [4, 0, 0], sizes = [1, 2, 768], strides = [1, 1, 1]} : vector<8x2x768xf32> to vector<1x2x768xf32>
    %99 = vector.shape_cast %98 : vector<1x2x768xf32> to vector<2x768xf32>
    %cst_24 = arith.constant dense<0.000000e+00> : vector<2x768xf32>
    %100 = tpu.matmul %97, %15, %cst_24 {dimension_numbers = #tpu.dot_dimension_numbers<[1], [0], [0], [1], [0, 0, 1, 1], [], []>} : vector<2x192xf32>, vector<192x768xf32>, vector<2x768xf32> -> vector<2x768xf32>
    %101 = arith.addf %99, %100 : vector<2x768xf32>
    %102 = vector.extract_strided_slice %101 {offsets = [0, 0], sizes = [2, 576], strides = [1, 1]} : vector<2x768xf32> to vector<2x576xf32>
    %103 = arith.negf %102 : vector<2x576xf32>
    %104 = math.exp %103 : vector<2x576xf32>
    %cst_25 = arith.constant 1.000000e+00 : f32
    %105 = vector.broadcast %cst_25 : f32 to vector<2x576xf32>
    %106 = arith.addf %105, %104 : vector<2x576xf32>
    %107 = arith.divf %105, %106 : vector<2x576xf32>
    %108 = vector.extract_strided_slice %101 {offsets = [0, 576], sizes = [2, 192], strides = [1, 1]} : vector<2x768xf32> to vector<2x192xf32>
    %109 = math.tanh %108 : vector<2x192xf32>
    %110 = vector.extract_strided_slice %107 {offsets = [0, 0], sizes = [2, 192], strides = [1, 1]} : vector<2x576xf32> to vector<2x192xf32>
    %111 = vector.extract_strided_slice %107 {offsets = [0, 192], sizes = [2, 192], strides = [1, 1]} : vector<2x576xf32> to vector<2x192xf32>
    %112 = vector.extract_strided_slice %107 {offsets = [0, 384], sizes = [2, 192], strides = [1, 1]} : vector<2x576xf32> to vector<2x192xf32>
    %113 = arith.mulf %111, %95 : vector<2x192xf32>
    %114 = arith.mulf %110, %109 : vector<2x192xf32>
    %115 = arith.addf %113, %114 : vector<2x192xf32>
    %116 = math.tanh %115 : vector<2x192xf32>
    %117 = arith.mulf %112, %116 : vector<2x192xf32>
    %118 = vector.extract_strided_slice %14 {offsets = [5, 0, 0], sizes = [1, 2, 768], strides = [1, 1, 1]} : vector<8x2x768xf32> to vector<1x2x768xf32>
    %119 = vector.shape_cast %118 : vector<1x2x768xf32> to vector<2x768xf32>
    %cst_26 = arith.constant dense<0.000000e+00> : vector<2x768xf32>
    %120 = tpu.matmul %117, %15, %cst_26 {dimension_numbers = #tpu.dot_dimension_numbers<[1], [0], [0], [1], [0, 0, 1, 1], [], []>} : vector<2x192xf32>, vector<192x768xf32>, vector<2x768xf32> -> vector<2x768xf32>
    %121 = arith.addf %119, %120 : vector<2x768xf32>
    %122 = vector.extract_strided_slice %121 {offsets = [0, 0], sizes = [2, 576], strides = [1, 1]} : vector<2x768xf32> to vector<2x576xf32>
    %123 = arith.negf %122 : vector<2x576xf32>
    %124 = math.exp %123 : vector<2x576xf32>
    %cst_27 = arith.constant 1.000000e+00 : f32
    %125 = vector.broadcast %cst_27 : f32 to vector<2x576xf32>
    %126 = arith.addf %125, %124 : vector<2x576xf32>
    %127 = arith.divf %125, %126 : vector<2x576xf32>
    %128 = vector.extract_strided_slice %121 {offsets = [0, 576], sizes = [2, 192], strides = [1, 1]} : vector<2x768xf32> to vector<2x192xf32>
    %129 = math.tanh %128 : vector<2x192xf32>
    %130 = vector.extract_strided_slice %127 {offsets = [0, 0], sizes = [2, 192], strides = [1, 1]} : vector<2x576xf32> to vector<2x192xf32>
    %131 = vector.extract_strided_slice %127 {offsets = [0, 192], sizes = [2, 192], strides = [1, 1]} : vector<2x576xf32> to vector<2x192xf32>
    %132 = vector.extract_strided_slice %127 {offsets = [0, 384], sizes = [2, 192], strides = [1, 1]} : vector<2x576xf32> to vector<2x192xf32>
    %133 = arith.mulf %131, %115 : vector<2x192xf32>
    %134 = arith.mulf %130, %129 : vector<2x192xf32>
    %135 = arith.addf %133, %134 : vector<2x192xf32>
    %136 = math.tanh %135 : vector<2x192xf32>
    %137 = arith.mulf %132, %136 : vector<2x192xf32>
    %138 = vector.extract_strided_slice %14 {offsets = [6, 0, 0], sizes = [1, 2, 768], strides = [1, 1, 1]} : vector<8x2x768xf32> to vector<1x2x768xf32>
    %139 = vector.shape_cast %138 : vector<1x2x768xf32> to vector<2x768xf32>
    %cst_28 = arith.constant dense<0.000000e+00> : vector<2x768xf32>
    %140 = tpu.matmul %137, %15, %cst_28 {dimension_numbers = #tpu.dot_dimension_numbers<[1], [0], [0], [1], [0, 0, 1, 1], [], []>} : vector<2x192xf32>, vector<192x768xf32>, vector<2x768xf32> -> vector<2x768xf32>
    %141 = arith.addf %139, %140 : vector<2x768xf32>
    %142 = vector.extract_strided_slice %141 {offsets = [0, 0], sizes = [2, 576], strides = [1, 1]} : vector<2x768xf32> to vector<2x576xf32>
    %143 = arith.negf %142 : vector<2x576xf32>
    %144 = math.exp %143 : vector<2x576xf32>
    %cst_29 = arith.constant 1.000000e+00 : f32
    %145 = vector.broadcast %cst_29 : f32 to vector<2x576xf32>
    %146 = arith.addf %145, %144 : vector<2x576xf32>
    %147 = arith.divf %145, %146 : vector<2x576xf32>
    %148 = vector.extract_strided_slice %141 {offsets = [0, 576], sizes = [2, 192], strides = [1, 1]} : vector<2x768xf32> to vector<2x192xf32>
    %149 = math.tanh %148 : vector<2x192xf32>
    %150 = vector.extract_strided_slice %147 {offsets = [0, 0], sizes = [2, 192], strides = [1, 1]} : vector<2x576xf32> to vector<2x192xf32>
    %151 = vector.extract_strided_slice %147 {offsets = [0, 192], sizes = [2, 192], strides = [1, 1]} : vector<2x576xf32> to vector<2x192xf32>
    %152 = vector.extract_strided_slice %147 {offsets = [0, 384], sizes = [2, 192], strides = [1, 1]} : vector<2x576xf32> to vector<2x192xf32>
    %153 = arith.mulf %151, %135 : vector<2x192xf32>
    %154 = arith.mulf %150, %149 : vector<2x192xf32>
    %155 = arith.addf %153, %154 : vector<2x192xf32>
    %156 = math.tanh %155 : vector<2x192xf32>
    %157 = arith.mulf %152, %156 : vector<2x192xf32>
    %158 = vector.extract_strided_slice %14 {offsets = [7, 0, 0], sizes = [1, 2, 768], strides = [1, 1, 1]} : vector<8x2x768xf32> to vector<1x2x768xf32>
    %159 = vector.shape_cast %158 : vector<1x2x768xf32> to vector<2x768xf32>
    %cst_30 = arith.constant dense<0.000000e+00> : vector<2x768xf32>
    %160 = tpu.matmul %157, %15, %cst_30 {dimension_numbers = #tpu.dot_dimension_numbers<[1], [0], [0], [1], [0, 0, 1, 1], [], []>} : vector<2x192xf32>, vector<192x768xf32>, vector<2x768xf32> -> vector<2x768xf32>
    %161 = arith.addf %159, %160 : vector<2x768xf32>
    %162 = vector.extract_strided_slice %161 {offsets = [0, 0], sizes = [2, 576], strides = [1, 1]} : vector<2x768xf32> to vector<2x576xf32>
    %163 = arith.negf %162 : vector<2x576xf32>
    %164 = math.exp %163 : vector<2x576xf32>
    %cst_31 = arith.constant 1.000000e+00 : f32
    %165 = vector.broadcast %cst_31 : f32 to vector<2x576xf32>
    %166 = arith.addf %165, %164 : vector<2x576xf32>
    %167 = arith.divf %165, %166 : vector<2x576xf32>
    %168 = vector.extract_strided_slice %161 {offsets = [0, 576], sizes = [2, 192], strides = [1, 1]} : vector<2x768xf32> to vector<2x192xf32>
    %169 = math.tanh %168 : vector<2x192xf32>
    %170 = vector.extract_strided_slice %167 {offsets = [0, 0], sizes = [2, 192], strides = [1, 1]} : vector<2x576xf32> to vector<2x192xf32>
    %171 = vector.extract_strided_slice %167 {offsets = [0, 192], sizes = [2, 192], strides = [1, 1]} : vector<2x576xf32> to vector<2x192xf32>
    %172 = vector.extract_strided_slice %167 {offsets = [0, 384], sizes = [2, 192], strides = [1, 1]} : vector<2x576xf32> to vector<2x192xf32>
    %173 = arith.mulf %171, %155 : vector<2x192xf32>
    %174 = arith.mulf %170, %169 : vector<2x192xf32>
    %175 = arith.addf %173, %174 : vector<2x192xf32>
    %176 = math.tanh %175 : vector<2x192xf32>
    %177 = arith.mulf %172, %176 : vector<2x192xf32>
    %c0_32 = arith.constant 0 : index
    %c0_33 = arith.constant 0 : index
    %178 = vector.load %arg7[%c0_32, %c0_33] : memref<192x4xf32, #tpu.memory_space<vmem>>, vector<192x4xf32>
    %cst_34 = arith.constant dense<0.000000e+00> : vector<2x4xf32>
    %179 = tpu.matmul %177, %178, %cst_34 {dimension_numbers = #tpu.dot_dimension_numbers<[1], [0], [0], [1], [0, 0, 1, 1], [], []>} : vector<2x192xf32>, vector<192x4xf32>, vector<2x4xf32> -> vector<2x4xf32>
    %c0_35 = arith.constant 0 : index
    %c0_36 = arith.constant 0 : index
    %180 = vector.load %arg8[%c0_35, %c0_36] : memref<1x4xf32, #tpu.memory_space<vmem>>, vector<1x4xf32>
    %181 = vector.broadcast %180 : vector<1x4xf32> to vector<2x4xf32>
    %182 = arith.addf %179, %181 : vector<2x4xf32>
    %183 = tpu.iota {dimensions = array<i32: 1>} : vector<2x4xi32>
    %c2_i32 = arith.constant 2 : i32
    %184 = vector.broadcast %c2_i32 : i32 to vector<2x4xi32>
    %185 = arith.cmpi eq, %183, %184 : vector<2x4xi32>
    %186 = arith.negf %182 : vector<2x4xf32>
    %187 = math.exp %186 : vector<2x4xf32>
    %cst_37 = arith.constant 1.000000e+00 : f32
    %188 = vector.broadcast %cst_37 : f32 to vector<2x4xf32>
    %189 = arith.addf %188, %187 : vector<2x4xf32>
    %190 = arith.divf %188, %189 : vector<2x4xf32>
    %c3_i32 = arith.constant 3 : i32
    %191 = vector.broadcast %c3_i32 : i32 to vector<2x4xi32>
    %192 = arith.cmpi eq, %183, %191 : vector<2x4xi32>
    %cst_38 = arith.constant 0.000000e+00 : f32
    %193 = vector.broadcast %cst_38 : f32 to vector<2x4xf32>
    %194 = arith.maximumf %182, %193 : vector<2x4xf32>
    %195 = arith.select %192, %194, %182 : vector<2x4xi1>, vector<2x4xf32>
    %196 = arith.select %185, %190, %195 : vector<2x4xi1>, vector<2x4xf32>
    %c0_39 = arith.constant 0 : index
    %c0_40 = arith.constant 0 : index
    %197 = vector.load %arg9[%c0_39, %c0_40] : memref<2x4xf32, #tpu.memory_space<vmem>>, vector<2x4xf32>
    tpu.vector_store %arg9[%c0_39, %c0_40], %196 {strides = array<i32>} : memref<2x4xf32, #tpu.memory_space<vmem>>, vector<2x4xf32>,
    return
  }
  func.func @transform_0(%arg0: i32) -> (i32, i32, i32) {
    %c0_i32 = arith.constant 0 : i32
    %c0_i32_0 = arith.constant 0 : i32
    %c0_i32_1 = arith.constant 0 : i32
    return %c0_i32, %arg0, %c0_i32_0 : i32, i32, i32
  }
  func.func @transform_1(%arg0: i32) -> (i32, i32) {
    %c0_i32 = arith.constant 0 : i32
    %c0_i32_0 = arith.constant 0 : i32
    %c0_i32_1 = arith.constant 0 : i32
    return %c0_i32, %c0_i32_0 : i32, i32
  }
  func.func @transform_2(%arg0: i32) -> (i32, i32) {
    %c0_i32 = arith.constant 0 : i32
    %c0_i32_0 = arith.constant 0 : i32
    %c0_i32_1 = arith.constant 0 : i32
    return %c0_i32, %c0_i32_0 : i32, i32
  }
  func.func @transform_3(%arg0: i32) -> (i32, i32) {
    %c0_i32 = arith.constant 0 : i32
    %c0_i32_0 = arith.constant 0 : i32
    %c0_i32_1 = arith.constant 0 : i32
    return %c0_i32, %c0_i32_0 : i32, i32
  }
  func.func @transform_4(%arg0: i32) -> (i32, i32) {
    %c0_i32 = arith.constant 0 : i32
    %c0_i32_0 = arith.constant 0 : i32
    %c0_i32_1 = arith.constant 0 : i32
    return %c0_i32, %c0_i32_0 : i32, i32
  }
  func.func @transform_5(%arg0: i32) -> (i32, i32) {
    %c0_i32 = arith.constant 0 : i32
    %c0_i32_0 = arith.constant 0 : i32
    %c0_i32_1 = arith.constant 0 : i32
    return %c0_i32, %c0_i32_0 : i32, i32
  }
  func.func @transform_6(%arg0: i32) -> (i32, i32) {
    %c0_i32 = arith.constant 0 : i32
    %c0_i32_0 = arith.constant 0 : i32
    %c0_i32_1 = arith.constant 0 : i32
    return %c0_i32, %c0_i32_0 : i32, i32
  }
  func.func @transform_7(%arg0: i32) -> (i32, i32) {
    %c0_i32 = arith.constant 0 : i32
    %c0_i32_0 = arith.constant 0 : i32
    %c0_i32_1 = arith.constant 0 : i32
    return %c0_i32, %c0_i32_0 : i32, i32
  }
  func.func @transform_8(%arg0: i32) -> (i32, i32) {
    %c0_i32 = arith.constant 0 : i32
    %c0_i32_0 = arith.constant 0 : i32
    return %arg0, %c0_i32 : i32, i32
  }
}

</mosaic_0001>

<llo_original>
// kernel: tpu_custom_call.1
$region0: #{tpu_custom_call.1}
  #allocation0 [shape = 'u32[]', space=smem, size = 0x4, offset = 0x4, fixed_abs, tag = 'smem constant byte address 0x4 - core index']
  #allocation1 [shape = 'u32[72,128]{1,0:T(1,128)}', space=vmem, size = 0x9000, scoped, tag = 'internal scratch']
  %s0 = inlined_call_operand.vmem [shape: f32[8,2,16], index: 0, kind: input, shape index: {}]
  %s1 = inlined_call_operand.vmem [shape: f32[16,64], index: 1, kind: input, shape index: {}]
  %s2 = inlined_call_operand.vmem [shape: f32[1,64], index: 2, kind: input, shape index: {}]
  %s3 = inlined_call_operand.hbm [shape: f32[64,768], index: 3, kind: input, shape index: {}]
  %s4 = inlined_call_operand.hbm [shape: f32[192,768], index: 4, kind: input, shape index: {}]
  %s5 = inlined_call_operand.vmem [shape: f32[1,768], index: 5, kind: input, shape index: {}]
  %s6 = inlined_call_operand.vmem [shape: f32[192,4], index: 6, kind: input, shape index: {}]
  %s7 = inlined_call_operand.vmem [shape: f32[1,4], index: 7, kind: input, shape index: {}]
  %s8 = inlined_call_operand.hbm [shape: f32[2,4], index: 8, kind: output, shape index: {}]
  %s9 = sld [smem:[#allocation0]]
  $region50: #{tpu_custom_call.1} parent=0
    _
  %s11 = ssub.s32 1, %s9
  %s12 = scalar_select 0, %s11, %s9
  $region1: #{tpu_custom_call.1} parent=0
    #allocation2 [shape = 'u8[196608]{0}', space=vmem, size = 0x30000, scoped, tag = 'input window, operand 3, single buffered']
    #allocation3 [shape = 's32[1]{0}', space=sflag, size = 0x4, scoped, tag = 'scoped memory for tpu_custom_call.1']
    #allocation4 [shape = 's32[1]{0}', space=sflag, size = 0x4, scoped, tag = 'scoped memory for tpu_custom_call.1']
    #allocation5 [shape = 'u8[589824]{0}', space=vmem, size = 0x90000, scoped, tag = 'input window, operand 4, single buffered']
    #allocation6 [shape = 's32[1]{0}', space=sflag, size = 0x4, scoped, tag = 'scoped memory for tpu_custom_call.1']
    #allocation7 [shape = 'u8[1024]{0}', space=vmem, size = 0x400, scoped, tag = 'output window, operand 0, single buffered']
    %13 = vsyncpa [#allocation3], 0
    %14 = vsyncpa [#allocation6], 0
    %15 = vsyncpa [#allocation4], 0
    // Predicated region
    $region2: #{tpu_custom_call.1} parent=1 // pred_check
      _
    $region3: #{tpu_custom_call.1} parent=1 // pred_check_branch
      %17 = sbr.rel (0) target = $region5
    $region4: #{tpu_custom_call.1} parent=1 // pred_region
      _
    $region5: #{tpu_custom_call.1} parent=1 // pred_fallthru
      _
    // Predicated region
    $region6: #{tpu_custom_call.1} parent=1 // pred_check
      _
    $region7: #{tpu_custom_call.1} parent=1 // pred_check_branch
      %19 = sbr.rel (0) target = $region9
    $region8: #{tpu_custom_call.1} parent=1 // pred_region
      _
    $region9: #{tpu_custom_call.1} parent=1 // pred_fallthru
      _
    // Predicated region
    $region10: #{tpu_custom_call.1} parent=1 // pred_check
      _
    $region11: #{tpu_custom_call.1} parent=1 // pred_check_branch
      %21 = sbr.rel (0) target = $region13
    $region12: #{tpu_custom_call.1} parent=1 // pred_region
      _
    $region13: #{tpu_custom_call.1} parent=1 // pred_fallthru
      _
    // Predicated region
    $region14: #{tpu_custom_call.1} parent=1 // pred_check
      _
    $region15: #{tpu_custom_call.1} parent=1 // pred_check_branch
      %23 = sbr.rel (0) target = $region17
    $region16: #{tpu_custom_call.1} parent=1 // pred_region
      %25 = vsyncadd [#allocation3], 0
      %s26 = sshll.u32 %s3, 4
      %s27 = int_to_ptr.hbm [resolvable:$true] %s26
      %s28 = sshll.u32 [#allocation2], 4
      %s29 = int_to_ptr.vmem [resolvable:$true] %s28
      %34 = dma.hbm_to_vmem [thread:$0]  %s27, 6144, %s29, [#allocation3], 768, 768, 48
    $region17: #{tpu_custom_call.1} parent=1 // pred_fallthru
      _
    // Predicated region
    $region18: #{tpu_custom_call.1} parent=1 // pred_check
      _
    $region19: #{tpu_custom_call.1} parent=1 // pred_check_branch
      %36 = sbr.rel (0) target = $region21
    $region20: #{tpu_custom_call.1} parent=1 // pred_region
      %38 = vsyncadd [#allocation6], 0
      %s39 = sshll.u32 %s4, 4
      %s40 = int_to_ptr.hbm [resolvable:$true] %s39
      %s41 = sshll.u32 [#allocation5], 4
      %s42 = int_to_ptr.vmem [resolvable:$true] %s41
      %47 = dma.hbm_to_vmem [thread:$0]  %s40, 18432, %s42, [#allocation6], 768, 768, 48
    $region21: #{tpu_custom_call.1} parent=1 // pred_fallthru
      _
    // Predicated region
    $region22: #{tpu_custom_call.1} parent=1 // pred_check
      _
    $region23: #{tpu_custom_call.1} parent=1 // pred_check_branch
      %49 = sbr.rel (0) target = $region25
    $region24: #{tpu_custom_call.1} parent=1 // pred_region
      _
    $region25: #{tpu_custom_call.1} parent=1 // pred_fallthru
      _
    // Predicated region
    $region26: #{tpu_custom_call.1} parent=1 // pred_check
      _
    $region27: #{tpu_custom_call.1} parent=1 // pred_check_branch
      %51 = sbr.rel (0) target = $region29
    $region28: #{tpu_custom_call.1} parent=1 // pred_region
      _
    $region29: #{tpu_custom_call.1} parent=1 // pred_fallthru
      _
    // Predicated region
    $region30: #{tpu_custom_call.1} parent=1 // pred_check
      _
    $region31: #{tpu_custom_call.1} parent=1 // pred_check_branch
      %53 = sbr.rel (0) target = $region33
    $region32: #{tpu_custom_call.1} parent=1 // pred_region
      _
    $region33: #{tpu_custom_call.1} parent=1 // pred_fallthru
      _
    // Predicated region
    $region34: #{tpu_custom_call.1} parent=1 // pred_check
      _
    $region35: #{tpu_custom_call.1} parent=1 // pred_check_branch
      %55 = sbr.rel (0) target = $region37
    $region36: #{tpu_custom_call.1} parent=1 // pred_region
      %57 = dma.done [#allocation3], 6144
    $region37: #{tpu_custom_call.1} parent=1 // pred_fallthru
      _
    // Predicated region
    $region38: #{tpu_custom_call.1} parent=1 // pred_check
      _
    $region39: #{tpu_custom_call.1} parent=1 // pred_check_branch
      %59 = sbr.rel (0) target = $region41
    $region40: #{tpu_custom_call.1} parent=1 // pred_region
      %61 = dma.done [#allocation6], 18432
    $region41: #{tpu_custom_call.1} parent=1 // pred_fallthru
      _
    %v62 = vld [vmem:[%s0] sm:$0x3]
    %v63 = vld [vmem:[%s0 + $0x2] sm:$0x3]
    %v64 = vld [vmem:[%s0 + $0x4] sm:$0x3]
    %v65 = vld [vmem:[%s0 + $0x6] sm:$0x3]
    %v66 = vld [vmem:[%s0 + $0x8] sm:$0x3]
    %v67 = vld [vmem:[%s0 + $0xa] sm:$0x3]
    %v68 = vld [vmem:[%s0 + $0xc] sm:$0x3]
    %v69 = vld [vmem:[%s0 + $0xe] sm:$0x3]
    %v70 = vld [vmem:[%s1] sm:$0xff]
    %v71 = vld [vmem:[%s1 + $0x8] sm:$0xff]
    %v72 = vld [vmem:[%s2] sm:$0x1]
    %v74 = vperm.slane %v72, 0
    %84 = vst [vmem:[#allocation1] ss:$4 sm:$0xff] %v62
    %s85 = scalar_lea.vmem [#allocation1], 1
    %86 = vst [vmem:[%s85] ss:$4 sm:$0xff] %v63
    %s87 = scalar_lea.vmem [#allocation1], 2
    %88 = vst [vmem:[%s87] ss:$4 sm:$0xff] %v64
    %s89 = scalar_lea.vmem [#allocation1], 3
    %90 = vst [vmem:[%s89] ss:$4 sm:$0xff] %v65
    %s91 = scalar_lea.vmem [#allocation1], 32
    %92 = vst [vmem:[%s91] ss:$4 sm:$0xff] %v66
    %s93 = scalar_lea.vmem [#allocation1], 33
    %94 = vst [vmem:[%s93] ss:$4 sm:$0xff] %v67
    %s95 = scalar_lea.vmem [#allocation1], 34
    %96 = vst [vmem:[%s95] ss:$4 sm:$0xff] %v68
    %s97 = scalar_lea.vmem [#allocation1], 35
    %98 = vst [vmem:[%s97] ss:$4 sm:$0xff] %v69
    %v99 = vld.sshfl [vmem:[#allocation1] sm:$0xff pattern:$0x73625140]
    %v100 = vld.sshfl [vmem:[#allocation1 + $0x20] sm:$0xff pattern:$0x73625140]
    %vm101 = vcmask 130048
    %v102 = vsel %vm101, %v99, 0
    %v104 = vsel %vm101, %v100, 0
    %106 = vmatpush.msra.mxu0 0.0
    %107 = vmatpush.msra.mxu0 0.0
    %108 = vmatpush.msra.mxu0 0.0
    %109 = vmatpush.msra.mxu0 0.0
    %110 = vmatpush.msra.mxu0 0.0
    %111 = vmatpush.msra.mxu0 0.0
    %112 = vmatpush.msra.mxu0 0.0
    %113 = vmatpush.msra.mxu0 0.0
    %114 = vmatpush.msra.mxu0 0.0
    %115 = vmatpush.msra.mxu0 0.0
    %116 = vmatpush.msra.mxu0 0.0
    %117 = vmatpush.msra.mxu0 0.0
    %118 = vmatpush.msra.mxu0 0.0
    %119 = vmatpush.msra.mxu0 0.0
    %120 = vmatpush.msra.mxu0 %v71
    %121 = vmatpush.msra.mxu0 %v70
    %122 = vmatmul.f32.gmra.mxu0 %v102
    %v123 = vpop.f32.mrf.mxu0
    %v124 = vadd.f32 %v74, %v123
    %125 = vmatmul.f32.gmra.mxu0 %v104
    %v126 = vpop.f32.mrf.mxu0
    %v127 = vadd.f32 %v74, %v126
    %128 = vdwg.mxu0
    %v129 = vmax.f32 %v124, 0.0
    %v130 = vmax.f32 %v127, 0.0
    %v131 = vld [vmem:[#allocation2] sm:$0xff]
    %v132 = vld [vmem:[#allocation2 + $0x8] sm:$0xff]
    %v133 = vld [vmem:[#allocation2 + $0x10] sm:$0xff]
    %v134 = vld [vmem:[#allocation2 + $0x18] sm:$0xff]
    %v135 = vld [vmem:[#allocation2 + $0x20] sm:$0xff]
    %v136 = vld [vmem:[#allocation2 + $0x28] sm:$0xff]
    %v137 = vld [vmem:[#allocation2 + $0x30] sm:$0xff]
    %v138 = vld [vmem:[#allocation2 + $0x38] sm:$0xff]
    %v139 = vld [vmem:[#allocation2 + $0x40] sm:$0xff]
    %v140 = vld [vmem:[#allocation2 + $0x48] sm:$0xff]
    %v141 = vld [vmem:[#allocation2 + $0x50] sm:$0xff]
    %v142 = vld [vmem:[#allocation2 + $0x58] sm:$0xff]
    %v143 = vld [vmem:[#allocation2 + $0x60] sm:$0xff]
    %v144 = vld [vmem:[#allocation2 + $0x68] sm:$0xff]
    %v145 = vld [vmem:[#allocation2 + $0x70] sm:$0xff]
    %v146 = vld [vmem:[#allocation2 + $0x78] sm:$0xff]
    %v147 = vld [vmem:[#allocation2 + $0x80] sm:$0xff]
    %v148 = vld [vmem:[#allocation2 + $0x88] sm:$0xff]
    %v149 = vld [vmem:[#allocation2 + $0x90] sm:$0xff]
    %v150 = vld [vmem:[#allocation2 + $0x98] sm:$0xff]
    %v151 = vld [vmem:[#allocation2 + $0xa0] sm:$0xff]
    %v152 = vld [vmem:[#allocation2 + $0xa8] sm:$0xff]
    %v153 = vld [vmem:[#allocation2 + $0xb0] sm:$0xff]
    %v154 = vld [vmem:[#allocation2 + $0xb8] sm:$0xff]
    %v155 = vld [vmem:[#allocation2 + $0xc0] sm:$0xff]
    %v156 = vld [vmem:[#allocation2 + $0xc8] sm:$0xff]
    %v157 = vld [vmem:[#allocation2 + $0xd0] sm:$0xff]
    %v158 = vld [vmem:[#allocation2 + $0xd8] sm:$0xff]
    %v159 = vld [vmem:[#allocation2 + $0xe0] sm:$0xff]
    %v160 = vld [vmem:[#allocation2 + $0xe8] sm:$0xff]
    %v161 = vld [vmem:[#allocation2 + $0xf0] sm:$0xff]
    %v162 = vld [vmem:[#allocation2 + $0xf8] sm:$0xff]
    %v163 = vld [vmem:[#allocation2 + $0x100] sm:$0xff]
    %v164 = vld [vmem:[#allocation2 + $0x108] sm:$0xff]
    %v165 = vld [vmem:[#allocation2 + $0x110] sm:$0xff]
    %v166 = vld [vmem:[#allocation2 + $0x118] sm:$0xff]
    %v167 = vld [vmem:[#allocation2 + $0x120] sm:$0xff]
    %v168 = vld [vmem:[#allocation2 + $0x128] sm:$0xff]
    %v169 = vld [vmem:[#allocation2 + $0x130] sm:$0xff]
    %v170 = vld [vmem:[#allocation2 + $0x138] sm:$0xff]
    %v171 = vld [vmem:[#allocation2 + $0x140] sm:$0xff]
    %v172 = vld [vmem:[#allocation2 + $0x148] sm:$0xff]
    %v173 = vld [vmem:[#allocation2 + $0x150] sm:$0xff]
    %v174 = vld [vmem:[#allocation2 + $0x158] sm:$0xff]
    %v175 = vld [vmem:[#allocation2 + $0x160] sm:$0xff]
    %v176 = vld [vmem:[#allocation2 + $0x168] sm:$0xff]
    %v177 = vld [vmem:[#allocation2 + $0x170] sm:$0xff]
    %v178 = vld [vmem:[#allocation2 + $0x178] sm:$0xff]
    %v179 = vld [vmem:[%s5] sm:$0x3f]
    %v181 = vperm.slane %v179, 0
    %v182 = vperm.slane %v179, 1
    %v183 = vperm.slane %v179, 2
    %v184 = vperm.slane %v179, 3
    %v185 = vperm.slane %v179, 4
    %v186 = vperm.slane %v179, 5
    %vm193 = vcmask 523264
    %v195 = vsel %vm193, %v129, 0
    %v198 = vsel %vm193, %v130, 0
    %200 = vmatpush.msra.mxu0 0.0
    %201 = vmatpush.msra.mxu0 0.0
    %202 = vmatpush.msra.mxu0 0.0
    %203 = vmatpush.msra.mxu0 0.0
    %204 = vmatpush.msra.mxu0 0.0
    %205 = vmatpush.msra.mxu0 0.0
    %206 = vmatpush.msra.mxu0 0.0
    %207 = vmatpush.msra.mxu0 0.0
    %208 = vmatpush.msra.mxu0 %v173
    %209 = vmatpush.msra.mxu0 %v167
    %210 = vmatpush.msra.mxu0 %v161
    %211 = vmatpush.msra.mxu0 %v155
    %212 = vmatpush.msra.mxu0 %v149
    %213 = vmatpush.msra.mxu0 %v143
    %214 = vmatpush.msra.mxu0 %v137
    %215 = vmatpush.msra.mxu0 %v131
    %216 = vmatmul.f32.gmra.mxu0 %v195
    %v217 = vpop.f32.mrf.mxu0
    %v218 = vadd.f32 %v181, %v217
    %219 = vmatmul.f32.gmra.mxu0 %v198
    %v220 = vpop.f32.mrf.mxu0
    %v221 = vadd.f32 %v181, %v220
    %222 = vdwg.mxu0
    %223 = vmatpush.msra.mxu0 0.0
    %224 = vmatpush.msra.mxu0 0.0
    %225 = vmatpush.msra.mxu0 0.0
    %226 = vmatpush.msra.mxu0 0.0
    %227 = vmatpush.msra.mxu0 0.0
    %228 = vmatpush.msra.mxu0 0.0
    %229 = vmatpush.msra.mxu0 0.0
    %230 = vmatpush.msra.mxu0 0.0
    %231 = vmatpush.msra.mxu0 %v174
    %232 = vmatpush.msra.mxu0 %v168
    %233 = vmatpush.msra.mxu0 %v162
    %234 = vmatpush.msra.mxu0 %v156
    %235 = vmatpush.msra.mxu0 %v150
    %236 = vmatpush.msra.mxu0 %v144
    %237 = vmatpush.msra.mxu0 %v138
    %238 = vmatpush.msra.mxu0 %v132
    %239 = vmatmul.f32.gmra.mxu0 %v195
    %v240 = vpop.f32.mrf.mxu0
    %v241 = vadd.f32 %v182, %v240
    %242 = vmatmul.f32.gmra.mxu0 %v198
    %v243 = vpop.f32.mrf.mxu0
    %v244 = vadd.f32 %v182, %v243
    %245 = vdwg.mxu0
    %246 = vmatpush.msra.mxu0 0.0
    %247 = vmatpush.msra.mxu0 0.0
    %248 = vmatpush.msra.mxu0 0.0
    %249 = vmatpush.msra.mxu0 0.0
    %250 = vmatpush.msra.mxu0 0.0
    %251 = vmatpush.msra.mxu0 0.0
    %252 = vmatpush.msra.mxu0 0.0
    %253 = vmatpush.msra.mxu0 0.0
    %254 = vmatpush.msra.mxu0 %v175
    %255 = vmatpush.msra.mxu0 %v169
    %256 = vmatpush.msra.mxu0 %v163
    %257 = vmatpush.msra.mxu0 %v157
    %258 = vmatpush.msra.mxu0 %v151
    %259 = vmatpush.msra.mxu0 %v145
    %260 = vmatpush.msra.mxu0 %v139
    %261 = vmatpush.msra.mxu0 %v133
    %262 = vmatmul.f32.gmra.mxu0 %v195
    %v263 = vpop.f32.mrf.mxu0
    %v264 = vadd.f32 %v183, %v263
    %265 = vmatmul.f32.gmra.mxu0 %v198
    %v266 = vpop.f32.mrf.mxu0
    %v267 = vadd.f32 %v183, %v266
    %268 = vdwg.mxu0
    %269 = vmatpush.msra.mxu0 0.0
    %270 = vmatpush.msra.mxu0 0.0
    %271 = vmatpush.msra.mxu0 0.0
    %272 = vmatpush.msra.mxu0 0.0
    %273 = vmatpush.msra.mxu0 0.0
    %274 = vmatpush.msra.mxu0 0.0
    %275 = vmatpush.msra.mxu0 0.0
    %276 = vmatpush.msra.mxu0 0.0
    %277 = vmatpush.msra.mxu0 %v176
    %278 = vmatpush.msra.mxu0 %v170
    %279 = vmatpush.msra.mxu0 %v164
    %280 = vmatpush.msra.mxu0 %v158
    %281 = vmatpush.msra.mxu0 %v152
    %282 = vmatpush.msra.mxu0 %v146
    %283 = vmatpush.msra.mxu0 %v140
    %284 = vmatpush.msra.mxu0 %v134
    %285 = vmatmul.f32.gmra.mxu0 %v195
    %v286 = vpop.f32.mrf.mxu0
    %v287 = vadd.f32 %v184, %v286
    %288 = vmatmul.f32.gmra.mxu0 %v198
    %v289 = vpop.f32.mrf.mxu0
    %v290 = vadd.f32 %v184, %v289
    %291 = vdwg.mxu0
    %292 = vmatpush.msra.mxu0 0.0
    %293 = vmatpush.msra.mxu0 0.0
    %294 = vmatpush.msra.mxu0 0.0
    %295 = vmatpush.msra.mxu0 0.0
    %296 = vmatpush.msra.mxu0 0.0
    %297 = vmatpush.msra.mxu0 0.0
    %298 = vmatpush.msra.mxu0 0.0
    %299 = vmatpush.msra.mxu0 0.0
    %300 = vmatpush.msra.mxu0 %v177
    %301 = vmatpush.msra.mxu0 %v171
    %302 = vmatpush.msra.mxu0 %v165
    %303 = vmatpush.msra.mxu0 %v159
    %304 = vmatpush.msra.mxu0 %v153
    %305 = vmatpush.msra.mxu0 %v147
    %306 = vmatpush.msra.mxu0 %v141
    %307 = vmatpush.msra.mxu0 %v135
    %308 = vmatmul.f32.gmra.mxu0 %v195
    %v309 = vpop.f32.mrf.mxu0
    %v310 = vadd.f32 %v185, %v309
    %311 = vmatmul.f32.gmra.mxu0 %v198
    %v312 = vpop.f32.mrf.mxu0
    %v313 = vadd.f32 %v185, %v312
    %314 = vdwg.mxu0
    %315 = vmatpush.msra.mxu0 0.0
    %316 = vmatpush.msra.mxu0 0.0
    %317 = vmatpush.msra.mxu0 0.0
    %318 = vmatpush.msra.mxu0 0.0
    %319 = vmatpush.msra.mxu0 0.0
    %320 = vmatpush.msra.mxu0 0.0
    %321 = vmatpush.msra.mxu0 0.0
    %322 = vmatpush.msra.mxu0 0.0
    %323 = vmatpush.msra.mxu0 %v178
    %324 = vmatpush.msra.mxu0 %v172
    %325 = vmatpush.msra.mxu0 %v166
    %326 = vmatpush.msra.mxu0 %v160
    %327 = vmatpush.msra.mxu0 %v154
    %328 = vmatpush.msra.mxu0 %v148
    %329 = vmatpush.msra.mxu0 %v142
    %330 = vmatpush.msra.mxu0 %v136
    %331 = vmatmul.f32.gmra.mxu0 %v195
    %v332 = vpop.f32.mrf.mxu0
    %v333 = vadd.f32 %v186, %v332
    %334 = vmatmul.f32.gmra.mxu0 %v198
    %v335 = vpop.f32.mrf.mxu0
    %v336 = vadd.f32 %v186, %v335
    %337 = vdwg.mxu0
    %v350 = vrot.slane %v241, 6
    %v351 = vrot.slane %v264, 4
    %v352 = vrot.slane %v287, 2
    %v353 = vrot.slane %v333, 6
    %v354 = vrot.slane %v244, 6
    %v355 = vrot.slane %v267, 4
    %v356 = vrot.slane %v290, 2
    %v357 = vrot.slane %v336, 6
    %vm358 = vcmask 1041408
    %v359 = vsel %vm358, %v218, %v350
    %vm360 = vcmask 1045508
    %v361 = vsel %vm360, %v351, %v352
    %vm362 = vcmask 1043456
    %v363 = vsel %vm362, %v359, %v361
    %v364 = vsel %vm358, %v310, %v353
    %vm365 = vcmask 1043458
    %v366 = vsel %vm365, %v218, %v350
    %vm367 = vcmask 1045504
    %v368 = vsel %vm367, %v352, %v351
    %vm369 = vcmask 1045506
    %v370 = vsel %vm369, %v366, %v368
    %v371 = vrot.slane %v370, 2
    %v372 = vsel %vm365, %v310, %v353
    %v373 = vrot.slane %v372, 2
    %v374 = vsel %vm360, %v218, %v350
    %v375 = vsel %vm358, %v351, %v352
    %v376 = vsel %vm362, %v375, %v374
    %v377 = vrot.slane %v376, 4
    %v378 = vsel %vm360, %v310, %v353
    %v379 = vrot.slane %v378, 4
    %v380 = vsel %vm367, %v350, %v218
    %v381 = vsel %vm365, %v351, %v352
    %v382 = vsel %vm369, %v381, %v380
    %v383 = vrot.slane %v382, 6
    %v384 = vsel %vm367, %v353, %v310
    %v385 = vrot.slane %v384, 6
    %v386 = vsel %vm358, %v221, %v354
    %v387 = vsel %vm360, %v355, %v356
    %v388 = vsel %vm362, %v386, %v387
    %v389 = vsel %vm358, %v313, %v357
    %v390 = vsel %vm365, %v221, %v354
    %v391 = vsel %vm367, %v356, %v355
    %v392 = vsel %vm369, %v390, %v391
    %v393 = vrot.slane %v392, 2
    %v394 = vsel %vm365, %v313, %v357
    %v395 = vrot.slane %v394, 2
    %v396 = vsel %vm360, %v221, %v354
    %v397 = vsel %vm358, %v355, %v356
    %v398 = vsel %vm362, %v397, %v396
    %v399 = vrot.slane %v398, 4
    %v400 = vsel %vm360, %v313, %v357
    %v401 = vrot.slane %v400, 4
    %v402 = vsel %vm367, %v354, %v221
    %v403 = vsel %vm365, %v355, %v356
    %v404 = vsel %vm369, %v403, %v402
    %v405 = vrot.slane %v404, 6
    %v406 = vsel %vm367, %v357, %v313
    %v407 = vrot.slane %v406, 6
    %v424 = vld [vmem:[#allocation5] sm:$0xff]
    %v425 = vld [vmem:[#allocation5 + $0x8] sm:$0xff]
    %v426 = vld [vmem:[#allocation5 + $0x10] sm:$0xff]
    %v427 = vld [vmem:[#allocation5 + $0x18] sm:$0xff]
    %v428 = vld [vmem:[#allocation5 + $0x20] sm:$0xff]
    %v429 = vld [vmem:[#allocation5 + $0x28] sm:$0xff]
    %v430 = vld [vmem:[#allocation5 + $0x30] sm:$0xff]
    %v431 = vld [vmem:[#allocation5 + $0x38] sm:$0xff]
    %v432 = vld [vmem:[#allocation5 + $0x40] sm:$0xff]
    %v433 = vld [vmem:[#allocation5 + $0x48] sm:$0xff]
    %v434 = vld [vmem:[#allocation5 + $0x50] sm:$0xff]
    %v435 = vld [vmem:[#allocation5 + $0x58] sm:$0xff]
    %v436 = vld [vmem:[#allocation5 + $0x60] sm:$0xff]
    %v437 = vld [vmem:[#allocation5 + $0x68] sm:$0xff]
    %v438 = vld [vmem:[#allocation5 + $0x70] sm:$0xff]
    %v439 = vld [vmem:[#allocation5 + $0x78] sm:$0xff]
    %v440 = vld [vmem:[#allocation5 + $0x80] sm:$0xff]
    %v441 = vld [vmem:[#allocation5 + $0x88] sm:$0xff]
    %v442 = vld [vmem:[#allocation5 + $0x90] sm:$0xff]
    %v443 = vld [vmem:[#allocation5 + $0x98] sm:$0xff]
    %v444 = vld [vmem:[#allocation5 + $0xa0] sm:$0xff]
    %v445 = vld [vmem:[#allocation5 + $0xa8] sm:$0xff]
    %v446 = vld [vmem:[#allocation5 + $0xb0] sm:$0xff]
    %v447 = vld [vmem:[#allocation5 + $0xb8] sm:$0xff]
    %v448 = vld [vmem:[#allocation5 + $0xc0] sm:$0xff]
    %v449 = vld [vmem:[#allocation5 + $0xc8] sm:$0xff]
    %v450 = vld [vmem:[#allocation5 + $0xd0] sm:$0xff]
    %v451 = vld [vmem:[#allocation5 + $0xd8] sm:$0xff]
    %v452 = vld [vmem:[#allocation5 + $0xe0] sm:$0xff]
    %v453 = vld [vmem:[#allocation5 + $0xe8] sm:$0xff]
    %v454 = vld [vmem:[#allocation5 + $0xf0] sm:$0xff]
    %v455 = vld [vmem:[#allocation5 + $0xf8] sm:$0xff]
    %v456 = vld [vmem:[#allocation5 + $0x100] sm:$0xff]
    %v457 = vld [vmem:[#allocation5 + $0x108] sm:$0xff]
    %v458 = vld [vmem:[#allocation5 + $0x110] sm:$0xff]
    %v459 = vld [vmem:[#allocation5 + $0x118] sm:$0xff]
    %v460 = vld [vmem:[#allocation5 + $0x120] sm:$0xff]
    %v461 = vld [vmem:[#allocation5 + $0x128] sm:$0xff]
    %v462 = vld [vmem:[#allocation5 + $0x130] sm:$0xff]
    %v463 = vld [vmem:[#allocation5 + $0x138] sm:$0xff]
    %v464 = vld [vmem:[#allocation5 + $0x140] sm:$0xff]
    %v465 = vld [vmem:[#allocation5 + $0x148] sm:$0xff]
    %v466 = vld [vmem:[#allocation5 + $0x150] sm:$0xff]
    %v467 = vld [vmem:[#allocation5 + $0x158] sm:$0xff]
    %v468 = vld [vmem:[#allocation5 + $0x160] sm:$0xff]
    %v469 = vld [vmem:[#allocation5 + $0x168] sm:$0xff]
    %v470 = vld [vmem:[#allocation5 + $0x170] sm:$0xff]
    %v471 = vld [vmem:[#allocation5 + $0x178] sm:$0xff]
    %v472 = vld [vmem:[#allocation5 + $0x180] sm:$0xff]
    %v473 = vld [vmem:[#allocation5 + $0x188] sm:$0xff]
    %v474 = vld [vmem:[#allocation5 + $0x190] sm:$0xff]
    %v475 = vld [vmem:[#allocation5 + $0x198] sm:$0xff]
    %v476 = vld [vmem:[#allocation5 + $0x1a0] sm:$0xff]
    %v477 = vld [vmem:[#allocation5 + $0x1a8] sm:$0xff]
    %v478 = vld [vmem:[#allocation5 + $0x1b0] sm:$0xff]
    %v479 = vld [vmem:[#allocation5 + $0x1b8] sm:$0xff]
    %v480 = vld [vmem:[#allocation5 + $0x1c0] sm:$0xff]
    %v481 = vld [vmem:[#allocation5 + $0x1c8] sm:$0xff]
    %v482 = vld [vmem:[#allocation5 + $0x1d0] sm:$0xff]
    %v483 = vld [vmem:[#allocation5 + $0x1d8] sm:$0xff]
    %v484 = vld [vmem:[#allocation5 + $0x1e0] sm:$0xff]
    %v485 = vld [vmem:[#allocation5 + $0x1e8] sm:$0xff]
    %v486 = vld [vmem:[#allocation5 + $0x1f0] sm:$0xff]
    %v487 = vld [vmem:[#allocation5 + $0x1f8] sm:$0xff]
    %v488 = vld [vmem:[#allocation5 + $0x200] sm:$0xff]
    %v489 = vld [vmem:[#allocation5 + $0x208] sm:$0xff]
    %v490 = vld [vmem:[#allocation5 + $0x210] sm:$0xff]
    %v491 = vld [vmem:[#allocation5 + $0x218] sm:$0xff]
    %v492 = vld [vmem:[#allocation5 + $0x220] sm:$0xff]
    %v493 = vld [vmem:[#allocation5 + $0x228] sm:$0xff]
    %v494 = vld [vmem:[#allocation5 + $0x230] sm:$0xff]
    %v495 = vld [vmem:[#allocation5 + $0x238] sm:$0xff]
    %v496 = vld [vmem:[#allocation5 + $0x240] sm:$0xff]
    %v497 = vld [vmem:[#allocation5 + $0x248] sm:$0xff]
    %v498 = vld [vmem:[#allocation5 + $0x250] sm:$0xff]
    %v499 = vld [vmem:[#allocation5 + $0x258] sm:$0xff]
    %v500 = vld [vmem:[#allocation5 + $0x260] sm:$0xff]
    %v501 = vld [vmem:[#allocation5 + $0x268] sm:$0xff]
    %v502 = vld [vmem:[#allocation5 + $0x270] sm:$0xff]
    %v503 = vld [vmem:[#allocation5 + $0x278] sm:$0xff]
    %v504 = vld [vmem:[#allocation5 + $0x280] sm:$0xff]
    %v505 = vld [vmem:[#allocation5 + $0x288] sm:$0xff]
    %v506 = vld [vmem:[#allocation5 + $0x290] sm:$0xff]
    %v507 = vld [vmem:[#allocation5 + $0x298] sm:$0xff]
    %v508 = vld [vmem:[#allocation5 + $0x2a0] sm:$0xff]
    %v509 = vld [vmem:[#allocation5 + $0x2a8] sm:$0xff]
    %v510 = vld [vmem:[#allocation5 + $0x2b0] sm:$0xff]
    %v511 = vld [vmem:[#allocation5 + $0x2b8] sm:$0xff]
    %v512 = vld [vmem:[#allocation5 + $0x2c0] sm:$0xff]
    %v513 = vld [vmem:[#allocation5 + $0x2c8] sm:$0xff]
    %v514 = vld [vmem:[#allocation5 + $0x2d0] sm:$0xff]
    %v515 = vld [vmem:[#allocation5 + $0x2d8] sm:$0xff]
    %v516 = vld [vmem:[#allocation5 + $0x2e0] sm:$0xff]
    %v517 = vld [vmem:[#allocation5 + $0x2e8] sm:$0xff]
    %v518 = vld [vmem:[#allocation5 + $0x2f0] sm:$0xff]
    %v519 = vld [vmem:[#allocation5 + $0x2f8] sm:$0xff]
    %v520 = vld [vmem:[#allocation5 + $0x300] sm:$0xff]
    %v521 = vld [vmem:[#allocation5 + $0x308] sm:$0xff]
    %v522 = vld [vmem:[#allocation5 + $0x310] sm:$0xff]
    %v523 = vld [vmem:[#allocation5 + $0x318] sm:$0xff]
    %v524 = vld [vmem:[#allocation5 + $0x320] sm:$0xff]
    %v525 = vld [vmem:[#allocation5 + $0x328] sm:$0xff]
    %v526 = vld [vmem:[#allocation5 + $0x330] sm:$0xff]
    %v527 = vld [vmem:[#allocation5 + $0x338] sm:$0xff]
    %v528 = vld [vmem:[#allocation5 + $0x340] sm:$0xff]
    %v529 = vld [vmem:[#allocation5 + $0x348] sm:$0xff]
    %v530 = vld [vmem:[#allocation5 + $0x350] sm:$0xff]
    %v531 = vld [vmem:[#allocation5 + $0x358] sm:$0xff]
    %v532 = vld [vmem:[#allocation5 + $0x360] sm:$0xff]
    %v533 = vld [vmem:[#allocation5 + $0x368] sm:$0xff]
    %v534 = vld [vmem:[#allocation5 + $0x370] sm:$0xff]
    %v535 = vld [vmem:[#allocation5 + $0x378] sm:$0xff]
    %v536 = vld [vmem:[#allocation5 + $0x380] sm:$0xff]
    %v537 = vld [vmem:[#allocation5 + $0x388] sm:$0xff]
    %v538 = vld [vmem:[#allocation5 + $0x390] sm:$0xff]
    %v539 = vld [vmem:[#allocation5 + $0x398] sm:$0xff]
    %v540 = vld [vmem:[#allocation5 + $0x3a0] sm:$0xff]
    %v541 = vld [vmem:[#allocation5 + $0x3a8] sm:$0xff]
    %v542 = vld [vmem:[#allocation5 + $0x3b0] sm:$0xff]
    %v543 = vld [vmem:[#allocation5 + $0x3b8] sm:$0xff]
    %v544 = vld [vmem:[#allocation5 + $0x3c0] sm:$0xff]
    %v545 = vld [vmem:[#allocation5 + $0x3c8] sm:$0xff]
    %v546 = vld [vmem:[#allocation5 + $0x3d0] sm:$0xff]
    %v547 = vld [vmem:[#allocation5 + $0x3d8] sm:$0xff]
    %v548 = vld [vmem:[#allocation5 + $0x3e0] sm:$0xff]
    %v549 = vld [vmem:[#allocation5 + $0x3e8] sm:$0xff]
    %v550 = vld [vmem:[#allocation5 + $0x3f0] sm:$0xff]
    %v551 = vld [vmem:[#allocation5 + $0x3f8] sm:$0xff]
    %v552 = vld [vmem:[#allocation5 + $0x400] sm:$0xff]
    %v553 = vld [vmem:[#allocation5 + $0x408] sm:$0xff]
    %v554 = vld [vmem:[#allocation5 + $0x410] sm:$0xff]
    %v555 = vld [vmem:[#allocation5 + $0x418] sm:$0xff]
    %v556 = vld [vmem:[#allocation5 + $0x420] sm:$0xff]
    %v557 = vld [vmem:[#allocation5 + $0x428] sm:$0xff]
    %v558 = vld [vmem:[#allocation5 + $0x430] sm:$0xff]
    %v559 = vld [vmem:[#allocation5 + $0x438] sm:$0xff]
    %v560 = vld [vmem:[#allocation5 + $0x440] sm:$0xff]
    %v561 = vld [vmem:[#allocation5 + $0x448] sm:$0xff]
    %v562 = vld [vmem:[#allocation5 + $0x450] sm:$0xff]
    %v563 = vld [vmem:[#allocation5 + $0x458] sm:$0xff]
    %v564 = vld [vmem:[#allocation5 + $0x460] sm:$0xff]
    %v565 = vld [vmem:[#allocation5 + $0x468] sm:$0xff]
    %v566 = vld [vmem:[#allocation5 + $0x470] sm:$0xff]
    %v567 = vld [vmem:[#allocation5 + $0x478] sm:$0xff]
    %v569 = vsel %vm193, 0.0, 0
    %571 = vmatpush.msra.mxu0 %v514
    %572 = vmatpush.msra.mxu0 %v508
    %573 = vmatpush.msra.mxu0 %v502
    %574 = vmatpush.msra.mxu0 %v496
    %575 = vmatpush.msra.mxu0 %v490
    %576 = vmatpush.msra.mxu0 %v484
    %577 = vmatpush.msra.mxu0 %v478
    %578 = vmatpush.msra.mxu0 %v472
    %579 = vmatpush.msra.mxu0 %v466
    %580 = vmatpush.msra.mxu0 %v460
    %581 = vmatpush.msra.mxu0 %v454
    %582 = vmatpush.msra.mxu0 %v448
    %583 = vmatpush.msra.mxu0 %v442
    %584 = vmatpush.msra.mxu0 %v436
    %585 = vmatpush.msra.mxu0 %v430
    %586 = vmatpush.msra.mxu0 %v424
    %587 = vmatmul.f32.gmra.mxu0 0.0
    %v588 = vpop.f32.mrf.mxu0
    %v589 = vadd.f32 0.0, %v588
    %590 = vdwg.mxu0
    %591 = vmatpush.msra.mxu0 0.0
    %592 = vmatpush.msra.mxu0 0.0
    %593 = vmatpush.msra.mxu0 0.0
    %594 = vmatpush.msra.mxu0 0.0
    %595 = vmatpush.msra.mxu0 0.0
    %596 = vmatpush.msra.mxu0 0.0
    %597 = vmatpush.msra.mxu0 0.0
    %598 = vmatpush.msra.mxu0 0.0
    %599 = vmatpush.msra.mxu0 %v562
    %600 = vmatpush.msra.mxu0 %v556
    %601 = vmatpush.msra.mxu0 %v550
    %602 = vmatpush.msra.mxu0 %v544
    %603 = vmatpush.msra.mxu0 %v538
    %604 = vmatpush.msra.mxu0 %v532
    %605 = vmatpush.msra.mxu0 %v526
    %606 = vmatpush.msra.mxu0 %v520
    %607 = vmatmul.f32.gmra.mxu0 %v569
    %v608 = vpop.f32.mrf.mxu0
    %v609 = vadd.f32 %v589, %v608
    %610 = vdwg.mxu0
    %611 = vmatpush.msra.mxu0 %v515
    %612 = vmatpush.msra.mxu0 %v509
    %613 = vmatpush.msra.mxu0 %v503
    %614 = vmatpush.msra.mxu0 %v497
    %615 = vmatpush.msra.mxu0 %v491
    %616 = vmatpush.msra.mxu0 %v485
    %617 = vmatpush.msra.mxu0 %v479
    %618 = vmatpush.msra.mxu0 %v473
    %619 = vmatpush.msra.mxu0 %v467
    %620 = vmatpush.msra.mxu0 %v461
    %621 = vmatpush.msra.mxu0 %v455
    %622 = vmatpush.msra.mxu0 %v449
    %623 = vmatpush.msra.mxu0 %v443
    %624 = vmatpush.msra.mxu0 %v437
    %625 = vmatpush.msra.mxu0 %v431
    %626 = vmatpush.msra.mxu0 %v425
    %627 = vmatmul.f32.gmra.mxu0 0.0
    %v628 = vpop.f32.mrf.mxu0
    %v629 = vadd.f32 0.0, %v628
    %630 = vdwg.mxu0
    %631 = vmatpush.msra.mxu0 0.0
    %632 = vmatpush.msra.mxu0 0.0
    %633 = vmatpush.msra.mxu0 0.0
    %634 = vmatpush.msra.mxu0 0.0
    %635 = vmatpush.msra.mxu0 0.0
    %636 = vmatpush.msra.mxu0 0.0
    %637 = vmatpush.msra.mxu0 0.0
    %638 = vmatpush.msra.mxu0 0.0
    %639 = vmatpush.msra.mxu0 %v563
    %640 = vmatpush.msra.mxu0 %v557
    %641 = vmatpush.msra.mxu0 %v551
    %642 = vmatpush.msra.mxu0 %v545
    %643 = vmatpush.msra.mxu0 %v539
    %644 = vmatpush.msra.mxu0 %v533
    %645 = vmatpush.msra.mxu0 %v527
    %646 = vmatpush.msra.mxu0 %v521
    %647 = vmatmul.f32.gmra.mxu0 %v569
    %v648 = vpop.f32.mrf.mxu0
    %v649 = vadd.f32 %v629, %v648
    %650 = vdwg.mxu0
    %651 = vmatpush.msra.mxu0 %v516
    %652 = vmatpush.msra.mxu0 %v510
    %653 = vmatpush.msra.mxu0 %v504
    %654 = vmatpush.msra.mxu0 %v498
    %655 = vmatpush.msra.mxu0 %v492
    %656 = vmatpush.msra.mxu0 %v486
    %657 = vmatpush.msra.mxu0 %v480
    %658 = vmatpush.msra.mxu0 %v474
    %659 = vmatpush.msra.mxu0 %v468
    %660 = vmatpush.msra.mxu0 %v462
    %661 = vmatpush.msra.mxu0 %v456
    %662 = vmatpush.msra.mxu0 %v450
    %663 = vmatpush.msra.mxu0 %v444
    %664 = vmatpush.msra.mxu0 %v438
    %665 = vmatpush.msra.mxu0 %v432
    %666 = vmatpush.msra.mxu0 %v426
    %667 = vmatmul.f32.gmra.mxu0 0.0
    %v668 = vpop.f32.mrf.mxu0
    %v669 = vadd.f32 0.0, %v668
    %670 = vdwg.mxu0
    %671 = vmatpush.msra.mxu0 0.0
    %672 = vmatpush.msra.mxu0 0.0
    %673 = vmatpush.msra.mxu0 0.0
    %674 = vmatpush.msra.mxu0 0.0
    %675 = vmatpush.msra.mxu0 0.0
    %676 = vmatpush.msra.mxu0 0.0
    %677 = vmatpush.msra.mxu0 0.0
    %678 = vmatpush.msra.mxu0 0.0
    %679 = vmatpush.msra.mxu0 %v564
    %680 = vmatpush.msra.mxu0 %v558
    %681 = vmatpush.msra.mxu0 %v552
    %682 = vmatpush.msra.mxu0 %v546
    %683 = vmatpush.msra.mxu0 %v540
    %684 = vmatpush.msra.mxu0 %v534
    %685 = vmatpush.msra.mxu0 %v528
    %686 = vmatpush.msra.mxu0 %v522
    %687 = vmatmul.f32.gmra.mxu0 %v569
    %v688 = vpop.f32.mrf.mxu0
    %v689 = vadd.f32 %v669, %v688
    %690 = vdwg.mxu0
    %691 = vmatpush.msra.mxu0 %v517
    %692 = vmatpush.msra.mxu0 %v511
    %693 = vmatpush.msra.mxu0 %v505
    %694 = vmatpush.msra.mxu0 %v499
    %695 = vmatpush.msra.mxu0 %v493
    %696 = vmatpush.msra.mxu0 %v487
    %697 = vmatpush.msra.mxu0 %v481
    %698 = vmatpush.msra.mxu0 %v475
    %699 = vmatpush.msra.mxu0 %v469
    %700 = vmatpush.msra.mxu0 %v463
    %701 = vmatpush.msra.mxu0 %v457
    %702 = vmatpush.msra.mxu0 %v451
    %703 = vmatpush.msra.mxu0 %v445
    %704 = vmatpush.msra.mxu0 %v439
    %705 = vmatpush.msra.mxu0 %v433
    %706 = vmatpush.msra.mxu0 %v427
    %707 = vmatmul.f32.gmra.mxu0 0.0
    %v708 = vpop.f32.mrf.mxu0
    %v709 = vadd.f32 0.0, %v708
    %710 = vdwg.mxu0
    %711 = vmatpush.msra.mxu0 0.0
    %712 = vmatpush.msra.mxu0 0.0
    %713 = vmatpush.msra.mxu0 0.0
    %714 = vmatpush.msra.mxu0 0.0
    %715 = vmatpush.msra.mxu0 0.0
    %716 = vmatpush.msra.mxu0 0.0
    %717 = vmatpush.msra.mxu0 0.0
    %718 = vmatpush.msra.mxu0 0.0
    %719 = vmatpush.msra.mxu0 %v565
    %720 = vmatpush.msra.mxu0 %v559
    %721 = vmatpush.msra.mxu0 %v553
    %722 = vmatpush.msra.mxu0 %v547
    %723 = vmatpush.msra.mxu0 %v541
    %724 = vmatpush.msra.mxu0 %v535
    %725 = vmatpush.msra.mxu0 %v529
    %726 = vmatpush.msra.mxu0 %v523
    %727 = vmatmul.f32.gmra.mxu0 %v569
    %v728 = vpop.f32.mrf.mxu0
    %v729 = vadd.f32 %v709, %v728
    %730 = vdwg.mxu0
    %731 = vmatpush.msra.mxu0 %v518
    %732 = vmatpush.msra.mxu0 %v512
    %733 = vmatpush.msra.mxu0 %v506
    %734 = vmatpush.msra.mxu0 %v500
    %735 = vmatpush.msra.mxu0 %v494
    %736 = vmatpush.msra.mxu0 %v488
    %737 = vmatpush.msra.mxu0 %v482
    %738 = vmatpush.msra.mxu0 %v476
    %739 = vmatpush.msra.mxu0 %v470
    %740 = vmatpush.msra.mxu0 %v464
    %741 = vmatpush.msra.mxu0 %v458
    %742 = vmatpush.msra.mxu0 %v452
    %743 = vmatpush.msra.mxu0 %v446
    %744 = vmatpush.msra.mxu0 %v440
    %745 = vmatpush.msra.mxu0 %v434
    %746 = vmatpush.msra.mxu0 %v428
    %747 = vmatmul.f32.gmra.mxu0 0.0
    %v748 = vpop.f32.mrf.mxu0
    %v749 = vadd.f32 0.0, %v748
    %750 = vdwg.mxu0
    %751 = vmatpush.msra.mxu0 0.0
    %752 = vmatpush.msra.mxu0 0.0
    %753 = vmatpush.msra.mxu0 0.0
    %754 = vmatpush.msra.mxu0 0.0
    %755 = vmatpush.msra.mxu0 0.0
    %756 = vmatpush.msra.mxu0 0.0
    %757 = vmatpush.msra.mxu0 0.0
    %758 = vmatpush.msra.mxu0 0.0
    %759 = vmatpush.msra.mxu0 %v566
    %760 = vmatpush.msra.mxu0 %v560
    %761 = vmatpush.msra.mxu0 %v554
    %762 = vmatpush.msra.mxu0 %v548
    %763 = vmatpush.msra.mxu0 %v542
    %764 = vmatpush.msra.mxu0 %v536
    %765 = vmatpush.msra.mxu0 %v530
    %766 = vmatpush.msra.mxu0 %v524
    %767 = vmatmul.f32.gmra.mxu0 %v569
    %v768 = vpop.f32.mrf.mxu0
    %v769 = vadd.f32 %v749, %v768
    %770 = vdwg.mxu0
    %771 = vmatpush.msra.mxu0 %v519
    %772 = vmatpush.msra.mxu0 %v513
    %773 = vmatpush.msra.mxu0 %v507
    %774 = vmatpush.msra.mxu0 %v501
    %775 = vmatpush.msra.mxu0 %v495
    %776 = vmatpush.msra.mxu0 %v489
    %777 = vmatpush.msra.mxu0 %v483
    %778 = vmatpush.msra.mxu0 %v477
    %779 = vmatpush.msra.mxu0 %v471
    %780 = vmatpush.msra.mxu0 %v465
    %781 = vmatpush.msra.mxu0 %v459
    %782 = vmatpush.msra.mxu0 %v453
    %783 = vmatpush.msra.mxu0 %v447
    %784 = vmatpush.msra.mxu0 %v441
    %785 = vmatpush.msra.mxu0 %v435
    %786 = vmatpush.msra.mxu0 %v429
    %787 = vmatmul.f32.gmra.mxu0 0.0
    %v788 = vpop.f32.mrf.mxu0
    %v789 = vadd.f32 0.0, %v788
    %790 = vdwg.mxu0
    %791 = vmatpush.msra.mxu0 0.0
    %792 = vmatpush.msra.mxu0 0.0
    %793 = vmatpush.msra.mxu0 0.0
    %794 = vmatpush.msra.mxu0 0.0
    %795 = vmatpush.msra.mxu0 0.0
    %796 = vmatpush.msra.mxu0 0.0
    %797 = vmatpush.msra.mxu0 0.0
    %798 = vmatpush.msra.mxu0 0.0
    %799 = vmatpush.msra.mxu0 %v567
    %800 = vmatpush.msra.mxu0 %v561
    %801 = vmatpush.msra.mxu0 %v555
    %802 = vmatpush.msra.mxu0 %v549
    %803 = vmatpush.msra.mxu0 %v543
    %804 = vmatpush.msra.mxu0 %v537
    %805 = vmatpush.msra.mxu0 %v531
    %806 = vmatpush.msra.mxu0 %v525
    %807 = vmatmul.f32.gmra.mxu0 %v569
    %v808 = vpop.f32.mrf.mxu0
    %v809 = vadd.f32 %v789, %v808
    %810 = vdwg.mxu0
    %v817 = vrot.slane %v649, 6
    %v818 = vrot.slane %v689, 4
    %v819 = vrot.slane %v729, 2
    %v820 = vrot.slane %v809, 6
    %v821 = vsel %vm358, %v609, %v817
    %v822 = vsel %vm360, %v818, %v819
    %v823 = vsel %vm362, %v821, %v822
    %v824 = vsel %vm358, %v769, %v820
    %v827 = vadd.f32 %v363, %v823
    %v828 = vadd.f32 %v364, %v824
    %v829 = vxor.u32 %v827, 2147483648
    %v830 = vxor.u32 %v828, 2147483648
    %v831 = vmul.f32 %v829, 1.442695
    %v832 = vpow.pop %v831
    %v833 = vmul.f32 %v830, 1.442695
    %v834 = vpow.pop %v833
    %v835 = vadd.f32 %v832, 1.0
    %v836 = vadd.f32 %v834, 1.0
    %v837 = vrcp.pop %v835
    %v838 = vmul.f32 %v835, %v837
    %v839 = vsub.f32 1.0, %v838
    %v840 = vmul.f32 %v837, %v839
    %v841 = vadd.f32 %v837, %v840
    %vm842 = vweird.f32 %v835
    %vm843 = vweird.f32 %v837
    %vm844 = vmor %vm842, %vm843
    %v845 = vsel %vm844, %v837, %v841
    %v846 = vand.u32 2147483647, %v835
    %vm847 = vcmp.eq.f32.partialorder %v846, 8.507059e+37
    %v848 = vand.u32 %v835, 2147483648
    %v849 = vor.u32 1.1754944e-38, %v848
    %v850 = vsel %vm847, %v849, %v845
    %v851 = vmul.f32 1.0, %v850
    %v852 = vrcp.pop %v836
    %v853 = vmul.f32 %v836, %v852
    %v854 = vsub.f32 1.0, %v853
    %v855 = vmul.f32 %v852, %v854
    %v856 = vadd.f32 %v852, %v855
    %vm857 = vweird.f32 %v836
    %vm858 = vweird.f32 %v852
    %vm859 = vmor %vm857, %vm858
    %v860 = vsel %vm859, %v852, %v856
    %v861 = vand.u32 2147483647, %v836
    %vm862 = vcmp.eq.f32.partialorder %v861, 8.507059e+37
    %v863 = vand.u32 %v836, 2147483648
    %v864 = vor.u32 1.1754944e-38, %v863
    %v865 = vsel %vm862, %v864, %v860
    %v866 = vmul.f32 1.0, %v865
    %v867 = vtanh.pop %v828
    %869 = vrot.lane.b32.xlu0 %v851, 64
    %v870 = vpop.permute.xlu0 %869
    %v871 = vrot.slane %v870, 2
    %v872 = vrot.slane %v870, 4
    %v873 = vsel %vm193, %v871, %v872
    %v875 = vmul.f32 %v873, 0.0
    %877 = vrot.lane.b32.xlu0 %v867, 64
    %v878 = vpop.permute.xlu0 %877
    %v879 = vrot.slane %v878, 2
    %v880 = vsel %vm193, %v878, %v879
    %v882 = vmul.f32 %v851, %v880
    %v883 = vadd.f32 %v875, %v882
    %v884 = vtanh.pop %v883
    %v886 = vrot.slane %v851, 6
    %v887 = vrot.slane %v866, 6
    %v888 = vsel %vm358, %v886, %v887
    %v890 = vmul.f32 %v888, %v884
    %892 = vst [vmem:[#allocation1] ss:$4 sm:$0xff] %v890
    %v893 = vld.sshfl [vmem:[#allocation1] sm:$0xff pattern:$0x73625140]
    %v894 = vld.sshfl [vmem:[#allocation1 + $0x8] sm:$0xff pattern:$0x73625140]
    %v896 = vsel %vm193, %v894, 0
    %898 = vmatpush.msra.mxu0 %v514
    %899 = vmatpush.msra.mxu0 %v508
    %900 = vmatpush.msra.mxu0 %v502
    %901 = vmatpush.msra.mxu0 %v496
    %902 = vmatpush.msra.mxu0 %v490
    %903 = vmatpush.msra.mxu0 %v484
    %904 = vmatpush.msra.mxu0 %v478
    %905 = vmatpush.msra.mxu0 %v472
    %906 = vmatpush.msra.mxu0 %v466
    %907 = vmatpush.msra.mxu0 %v460
    %908 = vmatpush.msra.mxu0 %v454
    %909 = vmatpush.msra.mxu0 %v448
    %910 = vmatpush.msra.mxu0 %v442
    %911 = vmatpush.msra.mxu0 %v436
    %912 = vmatpush.msra.mxu0 %v430
    %913 = vmatpush.msra.mxu0 %v424
    %914 = vmatmul.f32.gmra.mxu0 %v893
    %v915 = vpop.f32.mrf.mxu0
    %v916 = vadd.f32 0.0, %v915
    %917 = vdwg.mxu0
    %918 = vmatpush.msra.mxu0 0.0
    %919 = vmatpush.msra.mxu0 0.0
    %920 = vmatpush.msra.mxu0 0.0
    %921 = vmatpush.msra.mxu0 0.0
    %922 = vmatpush.msra.mxu0 0.0
    %923 = vmatpush.msra.mxu0 0.0
    %924 = vmatpush.msra.mxu0 0.0
    %925 = vmatpush.msra.mxu0 0.0
    %926 = vmatpush.msra.mxu0 %v562
    %927 = vmatpush.msra.mxu0 %v556
    %928 = vmatpush.msra.mxu0 %v550
    %929 = vmatpush.msra.mxu0 %v544
    %930 = vmatpush.msra.mxu0 %v538
    %931 = vmatpush.msra.mxu0 %v532
    %932 = vmatpush.msra.mxu0 %v526
    %933 = vmatpush.msra.mxu0 %v520
    %934 = vmatmul.f32.gmra.mxu0 %v896
    %v935 = vpop.f32.mrf.mxu0
    %v936 = vadd.f32 %v916, %v935
    %937 = vdwg.mxu0
    %938 = vmatpush.msra.mxu0 %v515
    %939 = vmatpush.msra.mxu0 %v509
    %940 = vmatpush.msra.mxu0 %v503
    %941 = vmatpush.msra.mxu0 %v497
    %942 = vmatpush.msra.mxu0 %v491
    %943 = vmatpush.msra.mxu0 %v485
    %944 = vmatpush.msra.mxu0 %v479
    %945 = vmatpush.msra.mxu0 %v473
    %946 = vmatpush.msra.mxu0 %v467
    %947 = vmatpush.msra.mxu0 %v461
    %948 = vmatpush.msra.mxu0 %v455
    %949 = vmatpush.msra.mxu0 %v449
    %950 = vmatpush.msra.mxu0 %v443
    %951 = vmatpush.msra.mxu0 %v437
    %952 = vmatpush.msra.mxu0 %v431
    %953 = vmatpush.msra.mxu0 %v425
    %954 = vmatmul.f32.gmra.mxu0 %v893
    %v955 = vpop.f32.mrf.mxu0
    %v956 = vadd.f32 0.0, %v955
    %957 = vdwg.mxu0
    %958 = vmatpush.msra.mxu0 0.0
    %959 = vmatpush.msra.mxu0 0.0
    %960 = vmatpush.msra.mxu0 0.0
    %961 = vmatpush.msra.mxu0 0.0
    %962 = vmatpush.msra.mxu0 0.0
    %963 = vmatpush.msra.mxu0 0.0
    %964 = vmatpush.msra.mxu0 0.0
    %965 = vmatpush.msra.mxu0 0.0
    %966 = vmatpush.msra.mxu0 %v563
    %967 = vmatpush.msra.mxu0 %v557
    %968 = vmatpush.msra.mxu0 %v551
    %969 = vmatpush.msra.mxu0 %v545
    %970 = vmatpush.msra.mxu0 %v539
    %971 = vmatpush.msra.mxu0 %v533
    %972 = vmatpush.msra.mxu0 %v527
    %973 = vmatpush.msra.mxu0 %v521
    %974 = vmatmul.f32.gmra.mxu0 %v896
    %v975 = vpop.f32.mrf.mxu0
    %v976 = vadd.f32 %v956, %v975
    %977 = vdwg.mxu0
    %978 = vmatpush.msra.mxu0 %v516
    %979 = vmatpush.msra.mxu0 %v510
    %980 = vmatpush.msra.mxu0 %v504
    %981 = vmatpush.msra.mxu0 %v498
    %982 = vmatpush.msra.mxu0 %v492
    %983 = vmatpush.msra.mxu0 %v486
    %984 = vmatpush.msra.mxu0 %v480
    %985 = vmatpush.msra.mxu0 %v474
    %986 = vmatpush.msra.mxu0 %v468
    %987 = vmatpush.msra.mxu0 %v462
    %988 = vmatpush.msra.mxu0 %v456
    %989 = vmatpush.msra.mxu0 %v450
    %990 = vmatpush.msra.mxu0 %v444
    %991 = vmatpush.msra.mxu0 %v438
    %992 = vmatpush.msra.mxu0 %v432
    %993 = vmatpush.msra.mxu0 %v426
    %994 = vmatmul.f32.gmra.mxu0 %v893
    %v995 = vpop.f32.mrf.mxu0
    %v996 = vadd.f32 0.0, %v995
    %997 = vdwg.mxu0
    %998 = vmatpush.msra.mxu0 0.0
    %999 = vmatpush.msra.mxu0 0.0
    %1000 = vmatpush.msra.mxu0 0.0
    %1001 = vmatpush.msra.mxu0 0.0
    %1002 = vmatpush.msra.mxu0 0.0
    %1003 = vmatpush.msra.mxu0 0.0
    %1004 = vmatpush.msra.mxu0 0.0
    %1005 = vmatpush.msra.mxu0 0.0
    %1006 = vmatpush.msra.mxu0 %v564
    %1007 = vmatpush.msra.mxu0 %v558
    %1008 = vmatpush.msra.mxu0 %v552
    %1009 = vmatpush.msra.mxu0 %v546
    %1010 = vmatpush.msra.mxu0 %v540
    %1011 = vmatpush.msra.mxu0 %v534
    %1012 = vmatpush.msra.mxu0 %v528
    %1013 = vmatpush.msra.mxu0 %v522
    %1014 = vmatmul.f32.gmra.mxu0 %v896
    %v1015 = vpop.f32.mrf.mxu0
    %v1016 = vadd.f32 %v996, %v1015
    %1017 = vdwg.mxu0
    %1018 = vmatpush.msra.mxu0 %v517
    %1019 = vmatpush.msra.mxu0 %v511
    %1020 = vmatpush.msra.mxu0 %v505
    %1021 = vmatpush.msra.mxu0 %v499
    %1022 = vmatpush.msra.mxu0 %v493
    %1023 = vmatpush.msra.mxu0 %v487
    %1024 = vmatpush.msra.mxu0 %v481
    %1025 = vmatpush.msra.mxu0 %v475
    %1026 = vmatpush.msra.mxu0 %v469
    %1027 = vmatpush.msra.mxu0 %v463
    %1028 = vmatpush.msra.mxu0 %v457
    %1029 = vmatpush.msra.mxu0 %v451
    %1030 = vmatpush.msra.mxu0 %v445
    %1031 = vmatpush.msra.mxu0 %v439
    %1032 = vmatpush.msra.mxu0 %v433
    %1033 = vmatpush.msra.mxu0 %v427
    %1034 = vmatmul.f32.gmra.mxu0 %v893
    %v1035 = vpop.f32.mrf.mxu0
    %v1036 = vadd.f32 0.0, %v1035
    %1037 = vdwg.mxu0
    %1038 = vmatpush.msra.mxu0 0.0
    %1039 = vmatpush.msra.mxu0 0.0
    %1040 = vmatpush.msra.mxu0 0.0
    %1041 = vmatpush.msra.mxu0 0.0
    %1042 = vmatpush.msra.mxu0 0.0
    %1043 = vmatpush.msra.mxu0 0.0
    %1044 = vmatpush.msra.mxu0 0.0
    %1045 = vmatpush.msra.mxu0 0.0
    %1046 = vmatpush.msra.mxu0 %v565
    %1047 = vmatpush.msra.mxu0 %v559
    %1048 = vmatpush.msra.mxu0 %v553
    %1049 = vmatpush.msra.mxu0 %v547
    %1050 = vmatpush.msra.mxu0 %v541
    %1051 = vmatpush.msra.mxu0 %v535
    %1052 = vmatpush.msra.mxu0 %v529
    %1053 = vmatpush.msra.mxu0 %v523
    %1054 = vmatmul.f32.gmra.mxu0 %v896
    %v1055 = vpop.f32.mrf.mxu0
    %v1056 = vadd.f32 %v1036, %v1055
    %1057 = vdwg.mxu0
    %1058 = vmatpush.msra.mxu0 %v518
    %1059 = vmatpush.msra.mxu0 %v512
    %1060 = vmatpush.msra.mxu0 %v506
    %1061 = vmatpush.msra.mxu0 %v500
    %1062 = vmatpush.msra.mxu0 %v494
    %1063 = vmatpush.msra.mxu0 %v488
    %1064 = vmatpush.msra.mxu0 %v482
    %1065 = vmatpush.msra.mxu0 %v476
    %1066 = vmatpush.msra.mxu0 %v470
    %1067 = vmatpush.msra.mxu0 %v464
    %1068 = vmatpush.msra.mxu0 %v458
    %1069 = vmatpush.msra.mxu0 %v452
    %1070 = vmatpush.msra.mxu0 %v446
    %1071 = vmatpush.msra.mxu0 %v440
    %1072 = vmatpush.msra.mxu0 %v434
    %1073 = vmatpush.msra.mxu0 %v428
    %1074 = vmatmul.f32.gmra.mxu0 %v893
    %v1075 = vpop.f32.mrf.mxu0
    %v1076 = vadd.f32 0.0, %v1075
    %1077 = vdwg.mxu0
    %1078 = vmatpush.msra.mxu0 0.0
    %1079 = vmatpush.msra.mxu0 0.0
    %1080 = vmatpush.msra.mxu0 0.0
    %1081 = vmatpush.msra.mxu0 0.0
    %1082 = vmatpush.msra.mxu0 0.0
    %1083 = vmatpush.msra.mxu0 0.0
    %1084 = vmatpush.msra.mxu0 0.0
    %1085 = vmatpush.msra.mxu0 0.0
    %1086 = vmatpush.msra.mxu0 %v566
    %1087 = vmatpush.msra.mxu0 %v560
    %1088 = vmatpush.msra.mxu0 %v554
    %1089 = vmatpush.msra.mxu0 %v548
    %1090 = vmatpush.msra.mxu0 %v542
    %1091 = vmatpush.msra.mxu0 %v536
    %1092 = vmatpush.msra.mxu0 %v530
    %1093 = vmatpush.msra.mxu0 %v524
    %1094 = vmatmul.f32.gmra.mxu0 %v896
    %v1095 = vpop.f32.mrf.mxu0
    %v1096 = vadd.f32 %v1076, %v1095
    %1097 = vdwg.mxu0
    %1098 = vmatpush.msra.mxu0 %v519
    %1099 = vmatpush.msra.mxu0 %v513
    %1100 = vmatpush.msra.mxu0 %v507
    %1101 = vmatpush.msra.mxu0 %v501
    %1102 = vmatpush.msra.mxu0 %v495
    %1103 = vmatpush.msra.mxu0 %v489
    %1104 = vmatpush.msra.mxu0 %v483
    %1105 = vmatpush.msra.mxu0 %v477
    %1106 = vmatpush.msra.mxu0 %v471
    %1107 = vmatpush.msra.mxu0 %v465
    %1108 = vmatpush.msra.mxu0 %v459
    %1109 = vmatpush.msra.mxu0 %v453
    %1110 = vmatpush.msra.mxu0 %v447
    %1111 = vmatpush.msra.mxu0 %v441
    %1112 = vmatpush.msra.mxu0 %v435
    %1113 = vmatpush.msra.mxu0 %v429
    %1114 = vmatmul.f32.gmra.mxu0 %v893
    %v1115 = vpop.f32.mrf.mxu0
    %v1116 = vadd.f32 0.0, %v1115
    %1117 = vdwg.mxu0
    %1118 = vmatpush.msra.mxu0 0.0
    %1119 = vmatpush.msra.mxu0 0.0
    %1120 = vmatpush.msra.mxu0 0.0
    %1121 = vmatpush.msra.mxu0 0.0
    %1122 = vmatpush.msra.mxu0 0.0
    %1123 = vmatpush.msra.mxu0 0.0
    %1124 = vmatpush.msra.mxu0 0.0
    %1125 = vmatpush.msra.mxu0 0.0
    %1126 = vmatpush.msra.mxu0 %v567
    %1127 = vmatpush.msra.mxu0 %v561
    %1128 = vmatpush.msra.mxu0 %v555
    %1129 = vmatpush.msra.mxu0 %v549
    %1130 = vmatpush.msra.mxu0 %v543
    %1131 = vmatpush.msra.mxu0 %v537
    %1132 = vmatpush.msra.mxu0 %v531
    %1133 = vmatpush.msra.mxu0 %v525
    %1134 = vmatmul.f32.gmra.mxu0 %v896
    %v1135 = vpop.f32.mrf.mxu0
    %v1136 = vadd.f32 %v1116, %v1135
    %1137 = vdwg.mxu0
    %v1144 = vrot.slane %v976, 6
    %v1145 = vrot.slane %v1016, 4
    %v1146 = vrot.slane %v1056, 2
    %v1147 = vrot.slane %v1136, 6
    %v1148 = vsel %vm358, %v936, %v1144
    %v1149 = vsel %vm360, %v1145, %v1146
    %v1150 = vsel %vm362, %v1148, %v1149
    %v1151 = vsel %vm358, %v1096, %v1147
    %v1154 = vadd.f32 %v371, %v1150
    %v1155 = vadd.f32 %v373, %v1151
    %v1156 = vxor.u32 %v1154, 2147483648
    %v1157 = vxor.u32 %v1155, 2147483648
    %v1158 = vmul.f32 %v1156, 1.442695
    %v1159 = vpow.pop %v1158
    %v1160 = vmul.f32 %v1157, 1.442695
    %v1161 = vpow.pop %v1160
    %v1162 = vadd.f32 %v1159, 1.0
    %v1163 = vadd.f32 %v1161, 1.0
    %v1164 = vrcp.pop %v1162
    %v1165 = vmul.f32 %v1162, %v1164
    %v1166 = vsub.f32 1.0, %v1165
    %v1167 = vmul.f32 %v1164, %v1166
    %v1168 = vadd.f32 %v1164, %v1167
    %vm1169 = vweird.f32 %v1162
    %vm1170 = vweird.f32 %v1164
    %vm1171 = vmor %vm1169, %vm1170
    %v1172 = vsel %vm1171, %v1164, %v1168
    %v1173 = vand.u32 2147483647, %v1162
    %vm1174 = vcmp.eq.f32.partialorder %v1173, 8.507059e+37
    %v1175 = vand.u32 %v1162, 2147483648
    %v1176 = vor.u32 1.1754944e-38, %v1175
    %v1177 = vsel %vm1174, %v1176, %v1172
    %v1178 = vmul.f32 1.0, %v1177
    %v1179 = vrcp.pop %v1163
    %v1180 = vmul.f32 %v1163, %v1179
    %v1181 = vsub.f32 1.0, %v1180
    %v1182 = vmul.f32 %v1179, %v1181
    %v1183 = vadd.f32 %v1179, %v1182
    %vm1184 = vweird.f32 %v1163
    %vm1185 = vweird.f32 %v1179
    %vm1186 = vmor %vm1184, %vm1185
    %v1187 = vsel %vm1186, %v1179, %v1183
    %v1188 = vand.u32 2147483647, %v1163
    %vm1189 = vcmp.eq.f32.partialorder %v1188, 8.507059e+37
    %v1190 = vand.u32 %v1163, 2147483648
    %v1191 = vor.u32 1.1754944e-38, %v1190
    %v1192 = vsel %vm1189, %v1191, %v1187
    %v1193 = vmul.f32 1.0, %v1192
    %v1194 = vtanh.pop %v1155
    %1196 = vrot.lane.b32.xlu0 %v1178, 64
    %v1197 = vpop.permute.xlu0 %1196
    %v1198 = vrot.slane %v1197, 2
    %v1199 = vrot.slane %v1197, 4
    %v1200 = vsel %vm193, %v1198, %v1199
    %v1202 = vmul.f32 %v1200, %v883
    %1204 = vrot.lane.b32.xlu0 %v1194, 64
    %v1205 = vpop.permute.xlu0 %1204
    %v1206 = vrot.slane %v1205, 2
    %v1207 = vsel %vm193, %v1205, %v1206
    %v1209 = vmul.f32 %v1178, %v1207
    %v1210 = vadd.f32 %v1202, %v1209
    %v1211 = vtanh.pop %v1210
    %v1213 = vrot.slane %v1178, 6
    %v1214 = vrot.slane %v1193, 6
    %v1215 = vsel %vm358, %v1213, %v1214
    %v1217 = vmul.f32 %v1215, %v1211
    %1219 = vst [vmem:[#allocation1] ss:$4 sm:$0xff] %v1217
    %v1220 = vld.sshfl [vmem:[#allocation1] sm:$0xff pattern:$0x73625140]
    %v1221 = vld.sshfl [vmem:[#allocation1 + $0x8] sm:$0xff pattern:$0x73625140]
    %v1223 = vsel %vm193, %v1221, 0
    %1225 = vmatpush.msra.mxu0 %v514
    %1226 = vmatpush.msra.mxu0 %v508
    %1227 = vmatpush.msra.mxu0 %v502
    %1228 = vmatpush.msra.mxu0 %v496
    %1229 = vmatpush.msra.mxu0 %v490
    %1230 = vmatpush.msra.mxu0 %v484
    %1231 = vmatpush.msra.mxu0 %v478
    %1232 = vmatpush.msra.mxu0 %v472
    %1233 = vmatpush.msra.mxu0 %v466
    %1234 = vmatpush.msra.mxu0 %v460
    %1235 = vmatpush.msra.mxu0 %v454
    %1236 = vmatpush.msra.mxu0 %v448
    %1237 = vmatpush.msra.mxu0 %v442
    %1238 = vmatpush.msra.mxu0 %v436
    %1239 = vmatpush.msra.mxu0 %v430
    %1240 = vmatpush.msra.mxu0 %v424
    %1241 = vmatmul.f32.gmra.mxu0 %v1220
    %v1242 = vpop.f32.mrf.mxu0
    %v1243 = vadd.f32 0.0, %v1242
    %1244 = vdwg.mxu0
    %1245 = vmatpush.msra.mxu0 0.0
    %1246 = vmatpush.msra.mxu0 0.0
    %1247 = vmatpush.msra.mxu0 0.0
    %1248 = vmatpush.msra.mxu0 0.0
    %1249 = vmatpush.msra.mxu0 0.0
    %1250 = vmatpush.msra.mxu0 0.0
    %1251 = vmatpush.msra.mxu0 0.0
    %1252 = vmatpush.msra.mxu0 0.0
    %1253 = vmatpush.msra.mxu0 %v562
    %1254 = vmatpush.msra.mxu0 %v556
    %1255 = vmatpush.msra.mxu0 %v550
    %1256 = vmatpush.msra.mxu0 %v544
    %1257 = vmatpush.msra.mxu0 %v538
    %1258 = vmatpush.msra.mxu0 %v532
    %1259 = vmatpush.msra.mxu0 %v526
    %1260 = vmatpush.msra.mxu0 %v520
    %1261 = vmatmul.f32.gmra.mxu0 %v1223
    %v1262 = vpop.f32.mrf.mxu0
    %v1263 = vadd.f32 %v1243, %v1262
    %1264 = vdwg.mxu0
    %1265 = vmatpush.msra.mxu0 %v515
    %1266 = vmatpush.msra.mxu0 %v509
    %1267 = vmatpush.msra.mxu0 %v503
    %1268 = vmatpush.msra.mxu0 %v497
    %1269 = vmatpush.msra.mxu0 %v491
    %1270 = vmatpush.msra.mxu0 %v485
    %1271 = vmatpush.msra.mxu0 %v479
    %1272 = vmatpush.msra.mxu0 %v473
    %1273 = vmatpush.msra.mxu0 %v467
    %1274 = vmatpush.msra.mxu0 %v461
    %1275 = vmatpush.msra.mxu0 %v455
    %1276 = vmatpush.msra.mxu0 %v449
    %1277 = vmatpush.msra.mxu0 %v443
    %1278 = vmatpush.msra.mxu0 %v437
    %1279 = vmatpush.msra.mxu0 %v431
    %1280 = vmatpush.msra.mxu0 %v425
    %1281 = vmatmul.f32.gmra.mxu0 %v1220
    %v1282 = vpop.f32.mrf.mxu0
    %v1283 = vadd.f32 0.0, %v1282
    %1284 = vdwg.mxu0
    %1285 = vmatpush.msra.mxu0 0.0
    %1286 = vmatpush.msra.mxu0 0.0
    %1287 = vmatpush.msra.mxu0 0.0
    %1288 = vmatpush.msra.mxu0 0.0
    %1289 = vmatpush.msra.mxu0 0.0
    %1290 = vmatpush.msra.mxu0 0.0
    %1291 = vmatpush.msra.mxu0 0.0
    %1292 = vmatpush.msra.mxu0 0.0
    %1293 = vmatpush.msra.mxu0 %v563
    %1294 = vmatpush.msra.mxu0 %v557
    %1295 = vmatpush.msra.mxu0 %v551
    %1296 = vmatpush.msra.mxu0 %v545
    %1297 = vmatpush.msra.mxu0 %v539
    %1298 = vmatpush.msra.mxu0 %v533
    %1299 = vmatpush.msra.mxu0 %v527
    %1300 = vmatpush.msra.mxu0 %v521
    %1301 = vmatmul.f32.gmra.mxu0 %v1223
    %v1302 = vpop.f32.mrf.mxu0
    %v1303 = vadd.f32 %v1283, %v1302
    %1304 = vdwg.mxu0
    %1305 = vmatpush.msra.mxu0 %v516
    %1306 = vmatpush.msra.mxu0 %v510
    %1307 = vmatpush.msra.mxu0 %v504
    %1308 = vmatpush.msra.mxu0 %v498
    %1309 = vmatpush.msra.mxu0 %v492
    %1310 = vmatpush.msra.mxu0 %v486
    %1311 = vmatpush.msra.mxu0 %v480
    %1312 = vmatpush.msra.mxu0 %v474
    %1313 = vmatpush.msra.mxu0 %v468
    %1314 = vmatpush.msra.mxu0 %v462
    %1315 = vmatpush.msra.mxu0 %v456
    %1316 = vmatpush.msra.mxu0 %v450
    %1317 = vmatpush.msra.mxu0 %v444
    %1318 = vmatpush.msra.mxu0 %v438
    %1319 = vmatpush.msra.mxu0 %v432
    %1320 = vmatpush.msra.mxu0 %v426
    %1321 = vmatmul.f32.gmra.mxu0 %v1220
    %v1322 = vpop.f32.mrf.mxu0
    %v1323 = vadd.f32 0.0, %v1322
    %1324 = vdwg.mxu0
    %1325 = vmatpush.msra.mxu0 0.0
    %1326 = vmatpush.msra.mxu0 0.0
    %1327 = vmatpush.msra.mxu0 0.0
    %1328 = vmatpush.msra.mxu0 0.0
    %1329 = vmatpush.msra.mxu0 0.0
    %1330 = vmatpush.msra.mxu0 0.0
    %1331 = vmatpush.msra.mxu0 0.0
    %1332 = vmatpush.msra.mxu0 0.0
    %1333 = vmatpush.msra.mxu0 %v564
    %1334 = vmatpush.msra.mxu0 %v558
    %1335 = vmatpush.msra.mxu0 %v552
    %1336 = vmatpush.msra.mxu0 %v546
    %1337 = vmatpush.msra.mxu0 %v540
    %1338 = vmatpush.msra.mxu0 %v534
    %1339 = vmatpush.msra.mxu0 %v528
    %1340 = vmatpush.msra.mxu0 %v522
    %1341 = vmatmul.f32.gmra.mxu0 %v1223
    %v1342 = vpop.f32.mrf.mxu0
    %v1343 = vadd.f32 %v1323, %v1342
    %1344 = vdwg.mxu0
    %1345 = vmatpush.msra.mxu0 %v517
    %1346 = vmatpush.msra.mxu0 %v511
    %1347 = vmatpush.msra.mxu0 %v505
    %1348 = vmatpush.msra.mxu0 %v499
    %1349 = vmatpush.msra.mxu0 %v493
    %1350 = vmatpush.msra.mxu0 %v487
    %1351 = vmatpush.msra.mxu0 %v481
    %1352 = vmatpush.msra.mxu0 %v475
    %1353 = vmatpush.msra.mxu0 %v469
    %1354 = vmatpush.msra.mxu0 %v463
    %1355 = vmatpush.msra.mxu0 %v457
    %1356 = vmatpush.msra.mxu0 %v451
    %1357 = vmatpush.msra.mxu0 %v445
    %1358 = vmatpush.msra.mxu0 %v439
    %1359 = vmatpush.msra.mxu0 %v433
    %1360 = vmatpush.msra.mxu0 %v427
    %1361 = vmatmul.f32.gmra.mxu0 %v1220
    %v1362 = vpop.f32.mrf.mxu0
    %v1363 = vadd.f32 0.0, %v1362
    %1364 = vdwg.mxu0
    %1365 = vmatpush.msra.mxu0 0.0
    %1366 = vmatpush.msra.mxu0 0.0
    %1367 = vmatpush.msra.mxu0 0.0
    %1368 = vmatpush.msra.mxu0 0.0
    %1369 = vmatpush.msra.mxu0 0.0
    %1370 = vmatpush.msra.mxu0 0.0
    %1371 = vmatpush.msra.mxu0 0.0
    %1372 = vmatpush.msra.mxu0 0.0
    %1373 = vmatpush.msra.mxu0 %v565
    %1374 = vmatpush.msra.mxu0 %v559
    %1375 = vmatpush.msra.mxu0 %v553
    %1376 = vmatpush.msra.mxu0 %v547
    %1377 = vmatpush.msra.mxu0 %v541
    %1378 = vmatpush.msra.mxu0 %v535
    %1379 = vmatpush.msra.mxu0 %v529
    %1380 = vmatpush.msra.mxu0 %v523
    %1381 = vmatmul.f32.gmra.mxu0 %v1223
    %v1382 = vpop.f32.mrf.mxu0
    %v1383 = vadd.f32 %v1363, %v1382
    %1384 = vdwg.mxu0
    %1385 = vmatpush.msra.mxu0 %v518
    %1386 = vmatpush.msra.mxu0 %v512
    %1387 = vmatpush.msra.mxu0 %v506
    %1388 = vmatpush.msra.mxu0 %v500
    %1389 = vmatpush.msra.mxu0 %v494
    %1390 = vmatpush.msra.mxu0 %v488
    %1391 = vmatpush.msra.mxu0 %v482
    %1392 = vmatpush.msra.mxu0 %v476
    %1393 = vmatpush.msra.mxu0 %v470
    %1394 = vmatpush.msra.mxu0 %v464
    %1395 = vmatpush.msra.mxu0 %v458
    %1396 = vmatpush.msra.mxu0 %v452
    %1397 = vmatpush.msra.mxu0 %v446
    %1398 = vmatpush.msra.mxu0 %v440
    %1399 = vmatpush.msra.mxu0 %v434
    %1400 = vmatpush.msra.mxu0 %v428
    %1401 = vmatmul.f32.gmra.mxu0 %v1220
    %v1402 = vpop.f32.mrf.mxu0
    %v1403 = vadd.f32 0.0, %v1402
    %1404 = vdwg.mxu0
    %1405 = vmatpush.msra.mxu0 0.0
    %1406 = vmatpush.msra.mxu0 0.0
    %1407 = vmatpush.msra.mxu0 0.0
    %1408 = vmatpush.msra.mxu0 0.0
    %1409 = vmatpush.msra.mxu0 0.0
    %1410 = vmatpush.msra.mxu0 0.0
    %1411 = vmatpush.msra.mxu0 0.0
    %1412 = vmatpush.msra.mxu0 0.0
    %1413 = vmatpush.msra.mxu0 %v566
    %1414 = vmatpush.msra.mxu0 %v560
    %1415 = vmatpush.msra.mxu0 %v554
    %1416 = vmatpush.msra.mxu0 %v548
    %1417 = vmatpush.msra.mxu0 %v542
    %1418 = vmatpush.msra.mxu0 %v536
    %1419 = vmatpush.msra.mxu0 %v530
    %1420 = vmatpush.msra.mxu0 %v524
    %1421 = vmatmul.f32.gmra.mxu0 %v1223
    %v1422 = vpop.f32.mrf.mxu0
    %v1423 = vadd.f32 %v1403, %v1422
    %1424 = vdwg.mxu0
    %1425 = vmatpush.msra.mxu0 %v519
    %1426 = vmatpush.msra.mxu0 %v513
    %1427 = vmatpush.msra.mxu0 %v507
    %1428 = vmatpush.msra.mxu0 %v501
    %1429 = vmatpush.msra.mxu0 %v495
    %1430 = vmatpush.msra.mxu0 %v489
    %1431 = vmatpush.msra.mxu0 %v483
    %1432 = vmatpush.msra.mxu0 %v477
    %1433 = vmatpush.msra.mxu0 %v471
    %1434 = vmatpush.msra.mxu0 %v465
    %1435 = vmatpush.msra.mxu0 %v459
    %1436 = vmatpush.msra.mxu0 %v453
    %1437 = vmatpush.msra.mxu0 %v447
    %1438 = vmatpush.msra.mxu0 %v441
    %1439 = vmatpush.msra.mxu0 %v435
    %1440 = vmatpush.msra.mxu0 %v429
    %1441 = vmatmul.f32.gmra.mxu0 %v1220
    %v1442 = vpop.f32.mrf.mxu0
    %v1443 = vadd.f32 0.0, %v1442
    %1444 = vdwg.mxu0
    %1445 = vmatpush.msra.mxu0 0.0
    %1446 = vmatpush.msra.mxu0 0.0
    %1447 = vmatpush.msra.mxu0 0.0
    %1448 = vmatpush.msra.mxu0 0.0
    %1449 = vmatpush.msra.mxu0 0.0
    %1450 = vmatpush.msra.mxu0 0.0
    %1451 = vmatpush.msra.mxu0 0.0
    %1452 = vmatpush.msra.mxu0 0.0
    %1453 = vmatpush.msra.mxu0 %v567
    %1454 = vmatpush.msra.mxu0 %v561
    %1455 = vmatpush.msra.mxu0 %v555
    %1456 = vmatpush.msra.mxu0 %v549
    %1457 = vmatpush.msra.mxu0 %v543
    %1458 = vmatpush.msra.mxu0 %v537
    %1459 = vmatpush.msra.mxu0 %v531
    %1460 = vmatpush.msra.mxu0 %v525
    %1461 = vmatmul.f32.gmra.mxu0 %v1223
    %v1462 = vpop.f32.mrf.mxu0
    %v1463 = vadd.f32 %v1443, %v1462
    %1464 = vdwg.mxu0
    %v1471 = vrot.slane %v1303, 6
    %v1472 = vrot.slane %v1343, 4
    %v1473 = vrot.slane %v1383, 2
    %v1474 = vrot.slane %v1463, 6
    %v1475 = vsel %vm358, %v1263, %v1471
    %v1476 = vsel %vm360, %v1472, %v1473
    %v1477 = vsel %vm362, %v1475, %v1476
    %v1478 = vsel %vm358, %v1423, %v1474
    %v1481 = vadd.f32 %v377, %v1477
    %v1482 = vadd.f32 %v379, %v1478
    %v1483 = vxor.u32 %v1481, 2147483648
    %v1484 = vxor.u32 %v1482, 2147483648
    %v1485 = vmul.f32 %v1483, 1.442695
    %v1486 = vpow.pop %v1485
    %v1487 = vmul.f32 %v1484, 1.442695
    %v1488 = vpow.pop %v1487
    %v1489 = vadd.f32 %v1486, 1.0
    %v1490 = vadd.f32 %v1488, 1.0
    %v1491 = vrcp.pop %v1489
    %v1492 = vmul.f32 %v1489, %v1491
    %v1493 = vsub.f32 1.0, %v1492
    %v1494 = vmul.f32 %v1491, %v1493
    %v1495 = vadd.f32 %v1491, %v1494
    %vm1496 = vweird.f32 %v1489
    %vm1497 = vweird.f32 %v1491
    %vm1498 = vmor %vm1496, %vm1497
    %v1499 = vsel %vm1498, %v1491, %v1495
    %v1500 = vand.u32 2147483647, %v1489
    %vm1501 = vcmp.eq.f32.partialorder %v1500, 8.507059e+37
    %v1502 = vand.u32 %v1489, 2147483648
    %v1503 = vor.u32 1.1754944e-38, %v1502
    %v1504 = vsel %vm1501, %v1503, %v1499
    %v1505 = vmul.f32 1.0, %v1504
    %v1506 = vrcp.pop %v1490
    %v1507 = vmul.f32 %v1490, %v1506
    %v1508 = vsub.f32 1.0, %v1507
    %v1509 = vmul.f32 %v1506, %v1508
    %v1510 = vadd.f32 %v1506, %v1509
    %vm1511 = vweird.f32 %v1490
    %vm1512 = vweird.f32 %v1506
    %vm1513 = vmor %vm1511, %vm1512
    %v1514 = vsel %vm1513, %v1506, %v1510
    %v1515 = vand.u32 2147483647, %v1490
    %vm1516 = vcmp.eq.f32.partialorder %v1515, 8.507059e+37
    %v1517 = vand.u32 %v1490, 2147483648
    %v1518 = vor.u32 1.1754944e-38, %v1517
    %v1519 = vsel %vm1516, %v1518, %v1514
    %v1520 = vmul.f32 1.0, %v1519
    %v1521 = vtanh.pop %v1482
    %1523 = vrot.lane.b32.xlu0 %v1505, 64
    %v1524 = vpop.permute.xlu0 %1523
    %v1525 = vrot.slane %v1524, 2
    %v1526 = vrot.slane %v1524, 4
    %v1527 = vsel %vm193, %v1525, %v1526
    %v1529 = vmul.f32 %v1527, %v1210
    %1531 = vrot.lane.b32.xlu0 %v1521, 64
    %v1532 = vpop.permute.xlu0 %1531
    %v1533 = vrot.slane %v1532, 2
    %v1534 = vsel %vm193, %v1532, %v1533
    %v1536 = vmul.f32 %v1505, %v1534
    %v1537 = vadd.f32 %v1529, %v1536
    %v1538 = vtanh.pop %v1537
    %v1540 = vrot.slane %v1505, 6
    %v1541 = vrot.slane %v1520, 6
    %v1542 = vsel %vm358, %v1540, %v1541
    %v1544 = vmul.f32 %v1542, %v1538
    %1546 = vst [vmem:[#allocation1] ss:$4 sm:$0xff] %v1544
    %v1547 = vld.sshfl [vmem:[#allocation1] sm:$0xff pattern:$0x73625140]
    %v1548 = vld.sshfl [vmem:[#allocation1 + $0x8] sm:$0xff pattern:$0x73625140]
    %v1550 = vsel %vm193, %v1548, 0
    %1552 = vmatpush.msra.mxu0 %v514
    %1553 = vmatpush.msra.mxu0 %v508
    %1554 = vmatpush.msra.mxu0 %v502
    %1555 = vmatpush.msra.mxu0 %v496
    %1556 = vmatpush.msra.mxu0 %v490
    %1557 = vmatpush.msra.mxu0 %v484
    %1558 = vmatpush.msra.mxu0 %v478
    %1559 = vmatpush.msra.mxu0 %v472
    %1560 = vmatpush.msra.mxu0 %v466
    %1561 = vmatpush.msra.mxu0 %v460
    %1562 = vmatpush.msra.mxu0 %v454
    %1563 = vmatpush.msra.mxu0 %v448
    %1564 = vmatpush.msra.mxu0 %v442
    %1565 = vmatpush.msra.mxu0 %v436
    %1566 = vmatpush.msra.mxu0 %v430
    %1567 = vmatpush.msra.mxu0 %v424
    %1568 = vmatmul.f32.gmra.mxu0 %v1547
    %v1569 = vpop.f32.mrf.mxu0
    %v1570 = vadd.f32 0.0, %v1569
    %1571 = vdwg.mxu0
    %1572 = vmatpush.msra.mxu0 0.0
    %1573 = vmatpush.msra.mxu0 0.0
    %1574 = vmatpush.msra.mxu0 0.0
    %1575 = vmatpush.msra.mxu0 0.0
    %1576 = vmatpush.msra.mxu0 0.0
    %1577 = vmatpush.msra.mxu0 0.0
    %1578 = vmatpush.msra.mxu0 0.0
    %1579 = vmatpush.msra.mxu0 0.0
    %1580 = vmatpush.msra.mxu0 %v562
    %1581 = vmatpush.msra.mxu0 %v556
    %1582 = vmatpush.msra.mxu0 %v550
    %1583 = vmatpush.msra.mxu0 %v544
    %1584 = vmatpush.msra.mxu0 %v538
    %1585 = vmatpush.msra.mxu0 %v532
    %1586 = vmatpush.msra.mxu0 %v526
    %1587 = vmatpush.msra.mxu0 %v520
    %1588 = vmatmul.f32.gmra.mxu0 %v1550
    %v1589 = vpop.f32.mrf.mxu0
    %v1590 = vadd.f32 %v1570, %v1589
    %1591 = vdwg.mxu0
    %1592 = vmatpush.msra.mxu0 %v515
    %1593 = vmatpush.msra.mxu0 %v509
    %1594 = vmatpush.msra.mxu0 %v503
    %1595 = vmatpush.msra.mxu0 %v497
    %1596 = vmatpush.msra.mxu0 %v491
    %1597 = vmatpush.msra.mxu0 %v485
    %1598 = vmatpush.msra.mxu0 %v479
    %1599 = vmatpush.msra.mxu0 %v473
    %1600 = vmatpush.msra.mxu0 %v467
    %1601 = vmatpush.msra.mxu0 %v461
    %1602 = vmatpush.msra.mxu0 %v455
    %1603 = vmatpush.msra.mxu0 %v449
    %1604 = vmatpush.msra.mxu0 %v443
    %1605 = vmatpush.msra.mxu0 %v437
    %1606 = vmatpush.msra.mxu0 %v431
    %1607 = vmatpush.msra.mxu0 %v425
    %1608 = vmatmul.f32.gmra.mxu0 %v1547
    %v1609 = vpop.f32.mrf.mxu0
    %v1610 = vadd.f32 0.0, %v1609
    %1611 = vdwg.mxu0
    %1612 = vmatpush.msra.mxu0 0.0
    %1613 = vmatpush.msra.mxu0 0.0
    %1614 = vmatpush.msra.mxu0 0.0
    %1615 = vmatpush.msra.mxu0 0.0
    %1616 = vmatpush.msra.mxu0 0.0
    %1617 = vmatpush.msra.mxu0 0.0
    %1618 = vmatpush.msra.mxu0 0.0
    %1619 = vmatpush.msra.mxu0 0.0
    %1620 = vmatpush.msra.mxu0 %v563
    %1621 = vmatpush.msra.mxu0 %v557
    %1622 = vmatpush.msra.mxu0 %v551
    %1623 = vmatpush.msra.mxu0 %v545
    %1624 = vmatpush.msra.mxu0 %v539
    %1625 = vmatpush.msra.mxu0 %v533
    %1626 = vmatpush.msra.mxu0 %v527
    %1627 = vmatpush.msra.mxu0 %v521
    %1628 = vmatmul.f32.gmra.mxu0 %v1550
    %v1629 = vpop.f32.mrf.mxu0
    %v1630 = vadd.f32 %v1610, %v1629
    %1631 = vdwg.mxu0
    %1632 = vmatpush.msra.mxu0 %v516
    %1633 = vmatpush.msra.mxu0 %v510
    %1634 = vmatpush.msra.mxu0 %v504
    %1635 = vmatpush.msra.mxu0 %v498
    %1636 = vmatpush.msra.mxu0 %v492
    %1637 = vmatpush.msra.mxu0 %v486
    %1638 = vmatpush.msra.mxu0 %v480
    %1639 = vmatpush.msra.mxu0 %v474
    %1640 = vmatpush.msra.mxu0 %v468
    %1641 = vmatpush.msra.mxu0 %v462
    %1642 = vmatpush.msra.mxu0 %v456
    %1643 = vmatpush.msra.mxu0 %v450
    %1644 = vmatpush.msra.mxu0 %v444
    %1645 = vmatpush.msra.mxu0 %v438
    %1646 = vmatpush.msra.mxu0 %v432
    %1647 = vmatpush.msra.mxu0 %v426
    %1648 = vmatmul.f32.gmra.mxu0 %v1547
    %v1649 = vpop.f32.mrf.mxu0
    %v1650 = vadd.f32 0.0, %v1649
    %1651 = vdwg.mxu0
    %1652 = vmatpush.msra.mxu0 0.0
    %1653 = vmatpush.msra.mxu0 0.0
    %1654 = vmatpush.msra.mxu0 0.0
    %1655 = vmatpush.msra.mxu0 0.0
    %1656 = vmatpush.msra.mxu0 0.0
    %1657 = vmatpush.msra.mxu0 0.0
    %1658 = vmatpush.msra.mxu0 0.0
    %1659 = vmatpush.msra.mxu0 0.0
    %1660 = vmatpush.msra.mxu0 %v564
    %1661 = vmatpush.msra.mxu0 %v558
    %1662 = vmatpush.msra.mxu0 %v552
    %1663 = vmatpush.msra.mxu0 %v546
    %1664 = vmatpush.msra.mxu0 %v540
    %1665 = vmatpush.msra.mxu0 %v534
    %1666 = vmatpush.msra.mxu0 %v528
    %1667 = vmatpush.msra.mxu0 %v522
    %1668 = vmatmul.f32.gmra.mxu0 %v1550
    %v1669 = vpop.f32.mrf.mxu0
    %v1670 = vadd.f32 %v1650, %v1669
    %1671 = vdwg.mxu0
    %1672 = vmatpush.msra.mxu0 %v517
    %1673 = vmatpush.msra.mxu0 %v511
    %1674 = vmatpush.msra.mxu0 %v505
    %1675 = vmatpush.msra.mxu0 %v499
    %1676 = vmatpush.msra.mxu0 %v493
    %1677 = vmatpush.msra.mxu0 %v487
    %1678 = vmatpush.msra.mxu0 %v481
    %1679 = vmatpush.msra.mxu0 %v475
    %1680 = vmatpush.msra.mxu0 %v469
    %1681 = vmatpush.msra.mxu0 %v463
    %1682 = vmatpush.msra.mxu0 %v457
    %1683 = vmatpush.msra.mxu0 %v451
    %1684 = vmatpush.msra.mxu0 %v445
    %1685 = vmatpush.msra.mxu0 %v439
    %1686 = vmatpush.msra.mxu0 %v433
    %1687 = vmatpush.msra.mxu0 %v427
    %1688 = vmatmul.f32.gmra.mxu0 %v1547
    %v1689 = vpop.f32.mrf.mxu0
    %v1690 = vadd.f32 0.0, %v1689
    %1691 = vdwg.mxu0
    %1692 = vmatpush.msra.mxu0 0.0
    %1693 = vmatpush.msra.mxu0 0.0
    %1694 = vmatpush.msra.mxu0 0.0
    %1695 = vmatpush.msra.mxu0 0.0
    %1696 = vmatpush.msra.mxu0 0.0
    %1697 = vmatpush.msra.mxu0 0.0
    %1698 = vmatpush.msra.mxu0 0.0
    %1699 = vmatpush.msra.mxu0 0.0
    %1700 = vmatpush.msra.mxu0 %v565
    %1701 = vmatpush.msra.mxu0 %v559
    %1702 = vmatpush.msra.mxu0 %v553
    %1703 = vmatpush.msra.mxu0 %v547
    %1704 = vmatpush.msra.mxu0 %v541
    %1705 = vmatpush.msra.mxu0 %v535
    %1706 = vmatpush.msra.mxu0 %v529
    %1707 = vmatpush.msra.mxu0 %v523
    %1708 = vmatmul.f32.gmra.mxu0 %v1550
    %v1709 = vpop.f32.mrf.mxu0
    %v1710 = vadd.f32 %v1690, %v1709
    %1711 = vdwg.mxu0
    %1712 = vmatpush.msra.mxu0 %v518
    %1713 = vmatpush.msra.mxu0 %v512
    %1714 = vmatpush.msra.mxu0 %v506
    %1715 = vmatpush.msra.mxu0 %v500
    %1716 = vmatpush.msra.mxu0 %v494
    %1717 = vmatpush.msra.mxu0 %v488
    %1718 = vmatpush.msra.mxu0 %v482
    %1719 = vmatpush.msra.mxu0 %v476
    %1720 = vmatpush.msra.mxu0 %v470
    %1721 = vmatpush.msra.mxu0 %v464
    %1722 = vmatpush.msra.mxu0 %v458
    %1723 = vmatpush.msra.mxu0 %v452
    %1724 = vmatpush.msra.mxu0 %v446
    %1725 = vmatpush.msra.mxu0 %v440
    %1726 = vmatpush.msra.mxu0 %v434
    %1727 = vmatpush.msra.mxu0 %v428
    %1728 = vmatmul.f32.gmra.mxu0 %v1547
    %v1729 = vpop.f32.mrf.mxu0
    %v1730 = vadd.f32 0.0, %v1729
    %1731 = vdwg.mxu0
    %1732 = vmatpush.msra.mxu0 0.0
    %1733 = vmatpush.msra.mxu0 0.0
    %1734 = vmatpush.msra.mxu0 0.0
    %1735 = vmatpush.msra.mxu0 0.0
    %1736 = vmatpush.msra.mxu0 0.0
    %1737 = vmatpush.msra.mxu0 0.0
    %1738 = vmatpush.msra.mxu0 0.0
    %1739 = vmatpush.msra.mxu0 0.0
    %1740 = vmatpush.msra.mxu0 %v566
    %1741 = vmatpush.msra.mxu0 %v560
    %1742 = vmatpush.msra.mxu0 %v554
    %1743 = vmatpush.msra.mxu0 %v548
    %1744 = vmatpush.msra.mxu0 %v542
    %1745 = vmatpush.msra.mxu0 %v536
    %1746 = vmatpush.msra.mxu0 %v530
    %1747 = vmatpush.msra.mxu0 %v524
    %1748 = vmatmul.f32.gmra.mxu0 %v1550
    %v1749 = vpop.f32.mrf.mxu0
    %v1750 = vadd.f32 %v1730, %v1749
    %1751 = vdwg.mxu0
    %1752 = vmatpush.msra.mxu0 %v519
    %1753 = vmatpush.msra.mxu0 %v513
    %1754 = vmatpush.msra.mxu0 %v507
    %1755 = vmatpush.msra.mxu0 %v501
    %1756 = vmatpush.msra.mxu0 %v495
    %1757 = vmatpush.msra.mxu0 %v489
    %1758 = vmatpush.msra.mxu0 %v483
    %1759 = vmatpush.msra.mxu0 %v477
    %1760 = vmatpush.msra.mxu0 %v471
    %1761 = vmatpush.msra.mxu0 %v465
    %1762 = vmatpush.msra.mxu0 %v459
    %1763 = vmatpush.msra.mxu0 %v453
    %1764 = vmatpush.msra.mxu0 %v447
    %1765 = vmatpush.msra.mxu0 %v441
    %1766 = vmatpush.msra.mxu0 %v435
    %1767 = vmatpush.msra.mxu0 %v429
    %1768 = vmatmul.f32.gmra.mxu0 %v1547
    %v1769 = vpop.f32.mrf.mxu0
    %v1770 = vadd.f32 0.0, %v1769
    %1771 = vdwg.mxu0
    %1772 = vmatpush.msra.mxu0 0.0
    %1773 = vmatpush.msra.mxu0 0.0
    %1774 = vmatpush.msra.mxu0 0.0
    %1775 = vmatpush.msra.mxu0 0.0
    %1776 = vmatpush.msra.mxu0 0.0
    %1777 = vmatpush.msra.mxu0 0.0
    %1778 = vmatpush.msra.mxu0 0.0
    %1779 = vmatpush.msra.mxu0 0.0
    %1780 = vmatpush.msra.mxu0 %v567
    %1781 = vmatpush.msra.mxu0 %v561
    %1782 = vmatpush.msra.mxu0 %v555
    %1783 = vmatpush.msra.mxu0 %v549
    %1784 = vmatpush.msra.mxu0 %v543
    %1785 = vmatpush.msra.mxu0 %v537
    %1786 = vmatpush.msra.mxu0 %v531
    %1787 = vmatpush.msra.mxu0 %v525
    %1788 = vmatmul.f32.gmra.mxu0 %v1550
    %v1789 = vpop.f32.mrf.mxu0
    %v1790 = vadd.f32 %v1770, %v1789
    %1791 = vdwg.mxu0
    %v1798 = vrot.slane %v1630, 6
    %v1799 = vrot.slane %v1670, 4
    %v1800 = vrot.slane %v1710, 2
    %v1801 = vrot.slane %v1790, 6
    %v1802 = vsel %vm358, %v1590, %v1798
    %v1803 = vsel %vm360, %v1799, %v1800
    %v1804 = vsel %vm362, %v1802, %v1803
    %v1805 = vsel %vm358, %v1750, %v1801
    %v1808 = vadd.f32 %v383, %v1804
    %v1809 = vadd.f32 %v385, %v1805
    %v1810 = vxor.u32 %v1808, 2147483648
    %v1811 = vxor.u32 %v1809, 2147483648
    %v1812 = vmul.f32 %v1810, 1.442695
    %v1813 = vpow.pop %v1812
    %v1814 = vmul.f32 %v1811, 1.442695
    %v1815 = vpow.pop %v1814
    %v1816 = vadd.f32 %v1813, 1.0
    %v1817 = vadd.f32 %v1815, 1.0
    %v1818 = vrcp.pop %v1816
    %v1819 = vmul.f32 %v1816, %v1818
    %v1820 = vsub.f32 1.0, %v1819
    %v1821 = vmul.f32 %v1818, %v1820
    %v1822 = vadd.f32 %v1818, %v1821
    %vm1823 = vweird.f32 %v1816
    %vm1824 = vweird.f32 %v1818
    %vm1825 = vmor %vm1823, %vm1824
    %v1826 = vsel %vm1825, %v1818, %v1822
    %v1827 = vand.u32 2147483647, %v1816
    %vm1828 = vcmp.eq.f32.partialorder %v1827, 8.507059e+37
    %v1829 = vand.u32 %v1816, 2147483648
    %v1830 = vor.u32 1.1754944e-38, %v1829
    %v1831 = vsel %vm1828, %v1830, %v1826
    %v1832 = vmul.f32 1.0, %v1831
    %v1833 = vrcp.pop %v1817
    %v1834 = vmul.f32 %v1817, %v1833
    %v1835 = vsub.f32 1.0, %v1834
    %v1836 = vmul.f32 %v1833, %v1835
    %v1837 = vadd.f32 %v1833, %v1836
    %vm1838 = vweird.f32 %v1817
    %vm1839 = vweird.f32 %v1833
    %vm1840 = vmor %vm1838, %vm1839
    %v1841 = vsel %vm1840, %v1833, %v1837
    %v1842 = vand.u32 2147483647, %v1817
    %vm1843 = vcmp.eq.f32.partialorder %v1842, 8.507059e+37
    %v1844 = vand.u32 %v1817, 2147483648
    %v1845 = vor.u32 1.1754944e-38, %v1844
    %v1846 = vsel %vm1843, %v1845, %v1841
    %v1847 = vmul.f32 1.0, %v1846
    %v1848 = vtanh.pop %v1809
    %1850 = vrot.lane.b32.xlu0 %v1832, 64
    %v1851 = vpop.permute.xlu0 %1850
    %v1852 = vrot.slane %v1851, 2
    %v1853 = vrot.slane %v1851, 4
    %v1854 = vsel %vm193, %v1852, %v1853
    %v1856 = vmul.f32 %v1854, %v1537
    %1858 = vrot.lane.b32.xlu0 %v1848, 64
    %v1859 = vpop.permute.xlu0 %1858
    %v1860 = vrot.slane %v1859, 2
    %v1861 = vsel %vm193, %v1859, %v1860
    %v1863 = vmul.f32 %v1832, %v1861
    %v1864 = vadd.f32 %v1856, %v1863
    %v1865 = vtanh.pop %v1864
    %v1867 = vrot.slane %v1832, 6
    %v1868 = vrot.slane %v1847, 6
    %v1869 = vsel %vm358, %v1867, %v1868
    %v1871 = vmul.f32 %v1869, %v1865
    %1873 = vst [vmem:[#allocation1] ss:$4 sm:$0xff] %v1871
    %v1874 = vld.sshfl [vmem:[#allocation1] sm:$0xff pattern:$0x73625140]
    %v1875 = vld.sshfl [vmem:[#allocation1 + $0x8] sm:$0xff pattern:$0x73625140]
    %v1877 = vsel %vm193, %v1875, 0
    %1879 = vmatpush.msra.mxu0 %v514
    %1880 = vmatpush.msra.mxu0 %v508
    %1881 = vmatpush.msra.mxu0 %v502
    %1882 = vmatpush.msra.mxu0 %v496
    %1883 = vmatpush.msra.mxu0 %v490
    %1884 = vmatpush.msra.mxu0 %v484
    %1885 = vmatpush.msra.mxu0 %v478
    %1886 = vmatpush.msra.mxu0 %v472
    %1887 = vmatpush.msra.mxu0 %v466
    %1888 = vmatpush.msra.mxu0 %v460
    %1889 = vmatpush.msra.mxu0 %v454
    %1890 = vmatpush.msra.mxu0 %v448
    %1891 = vmatpush.msra.mxu0 %v442
    %1892 = vmatpush.msra.mxu0 %v436
    %1893 = vmatpush.msra.mxu0 %v430
    %1894 = vmatpush.msra.mxu0 %v424
    %1895 = vmatmul.f32.gmra.mxu0 %v1874
    %v1896 = vpop.f32.mrf.mxu0
    %v1897 = vadd.f32 0.0, %v1896
    %1898 = vdwg.mxu0
    %1899 = vmatpush.msra.mxu0 0.0
    %1900 = vmatpush.msra.mxu0 0.0
    %1901 = vmatpush.msra.mxu0 0.0
    %1902 = vmatpush.msra.mxu0 0.0
    %1903 = vmatpush.msra.mxu0 0.0
    %1904 = vmatpush.msra.mxu0 0.0
    %1905 = vmatpush.msra.mxu0 0.0
    %1906 = vmatpush.msra.mxu0 0.0
    %1907 = vmatpush.msra.mxu0 %v562
    %1908 = vmatpush.msra.mxu0 %v556
    %1909 = vmatpush.msra.mxu0 %v550
    %1910 = vmatpush.msra.mxu0 %v544
    %1911 = vmatpush.msra.mxu0 %v538
    %1912 = vmatpush.msra.mxu0 %v532
    %1913 = vmatpush.msra.mxu0 %v526
    %1914 = vmatpush.msra.mxu0 %v520
    %1915 = vmatmul.f32.gmra.mxu0 %v1877
    %v1916 = vpop.f32.mrf.mxu0
    %v1917 = vadd.f32 %v1897, %v1916
    %1918 = vdwg.mxu0
    %1919 = vmatpush.msra.mxu0 %v515
    %1920 = vmatpush.msra.mxu0 %v509
    %1921 = vmatpush.msra.mxu0 %v503
    %1922 = vmatpush.msra.mxu0 %v497
    %1923 = vmatpush.msra.mxu0 %v491
    %1924 = vmatpush.msra.mxu0 %v485
    %1925 = vmatpush.msra.mxu0 %v479
    %1926 = vmatpush.msra.mxu0 %v473
    %1927 = vmatpush.msra.mxu0 %v467
    %1928 = vmatpush.msra.mxu0 %v461
    %1929 = vmatpush.msra.mxu0 %v455
    %1930 = vmatpush.msra.mxu0 %v449
    %1931 = vmatpush.msra.mxu0 %v443
    %1932 = vmatpush.msra.mxu0 %v437
    %1933 = vmatpush.msra.mxu0 %v431
    %1934 = vmatpush.msra.mxu0 %v425
    %1935 = vmatmul.f32.gmra.mxu0 %v1874
    %v1936 = vpop.f32.mrf.mxu0
    %v1937 = vadd.f32 0.0, %v1936
    %1938 = vdwg.mxu0
    %1939 = vmatpush.msra.mxu0 0.0
    %1940 = vmatpush.msra.mxu0 0.0
    %1941 = vmatpush.msra.mxu0 0.0
    %1942 = vmatpush.msra.mxu0 0.0
    %1943 = vmatpush.msra.mxu0 0.0
    %1944 = vmatpush.msra.mxu0 0.0
    %1945 = vmatpush.msra.mxu0 0.0
    %1946 = vmatpush.msra.mxu0 0.0
    %1947 = vmatpush.msra.mxu0 %v563
    %1948 = vmatpush.msra.mxu0 %v557
    %1949 = vmatpush.msra.mxu0 %v551
    %1950 = vmatpush.msra.mxu0 %v545
    %1951 = vmatpush.msra.mxu0 %v539
    %1952 = vmatpush.msra.mxu0 %v533
    %1953 = vmatpush.msra.mxu0 %v527
    %1954 = vmatpush.msra.mxu0 %v521
    %1955 = vmatmul.f32.gmra.mxu0 %v1877
    %v1956 = vpop.f32.mrf.mxu0
    %v1957 = vadd.f32 %v1937, %v1956
    %1958 = vdwg.mxu0
    %1959 = vmatpush.msra.mxu0 %v516
    %1960 = vmatpush.msra.mxu0 %v510
    %1961 = vmatpush.msra.mxu0 %v504
    %1962 = vmatpush.msra.mxu0 %v498
    %1963 = vmatpush.msra.mxu0 %v492
    %1964 = vmatpush.msra.mxu0 %v486
    %1965 = vmatpush.msra.mxu0 %v480
    %1966 = vmatpush.msra.mxu0 %v474
    %1967 = vmatpush.msra.mxu0 %v468
    %1968 = vmatpush.msra.mxu0 %v462
    %1969 = vmatpush.msra.mxu0 %v456
    %1970 = vmatpush.msra.mxu0 %v450
    %1971 = vmatpush.msra.mxu0 %v444
    %1972 = vmatpush.msra.mxu0 %v438
    %1973 = vmatpush.msra.mxu0 %v432
    %1974 = vmatpush.msra.mxu0 %v426
    %1975 = vmatmul.f32.gmra.mxu0 %v1874
    %v1976 = vpop.f32.mrf.mxu0
    %v1977 = vadd.f32 0.0, %v1976
    %1978 = vdwg.mxu0
    %1979 = vmatpush.msra.mxu0 0.0
    %1980 = vmatpush.msra.mxu0 0.0
    %1981 = vmatpush.msra.mxu0 0.0
    %1982 = vmatpush.msra.mxu0 0.0
    %1983 = vmatpush.msra.mxu0 0.0
    %1984 = vmatpush.msra.mxu0 0.0
    %1985 = vmatpush.msra.mxu0 0.0
    %1986 = vmatpush.msra.mxu0 0.0
    %1987 = vmatpush.msra.mxu0 %v564
    %1988 = vmatpush.msra.mxu0 %v558
    %1989 = vmatpush.msra.mxu0 %v552
    %1990 = vmatpush.msra.mxu0 %v546
    %1991 = vmatpush.msra.mxu0 %v540
    %1992 = vmatpush.msra.mxu0 %v534
    %1993 = vmatpush.msra.mxu0 %v528
    %1994 = vmatpush.msra.mxu0 %v522
    %1995 = vmatmul.f32.gmra.mxu0 %v1877
    %v1996 = vpop.f32.mrf.mxu0
    %v1997 = vadd.f32 %v1977, %v1996
    %1998 = vdwg.mxu0
    %1999 = vmatpush.msra.mxu0 %v517
    %2000 = vmatpush.msra.mxu0 %v511
    %2001 = vmatpush.msra.mxu0 %v505
    %2002 = vmatpush.msra.mxu0 %v499
    %2003 = vmatpush.msra.mxu0 %v493
    %2004 = vmatpush.msra.mxu0 %v487
    %2005 = vmatpush.msra.mxu0 %v481
    %2006 = vmatpush.msra.mxu0 %v475
    %2007 = vmatpush.msra.mxu0 %v469
    %2008 = vmatpush.msra.mxu0 %v463
    %2009 = vmatpush.msra.mxu0 %v457
    %2010 = vmatpush.msra.mxu0 %v451
    %2011 = vmatpush.msra.mxu0 %v445
    %2012 = vmatpush.msra.mxu0 %v439
    %2013 = vmatpush.msra.mxu0 %v433
    %2014 = vmatpush.msra.mxu0 %v427
    %2015 = vmatmul.f32.gmra.mxu0 %v1874
    %v2016 = vpop.f32.mrf.mxu0
    %v2017 = vadd.f32 0.0, %v2016
    %2018 = vdwg.mxu0
    %2019 = vmatpush.msra.mxu0 0.0
    %2020 = vmatpush.msra.mxu0 0.0
    %2021 = vmatpush.msra.mxu0 0.0
    %2022 = vmatpush.msra.mxu0 0.0
    %2023 = vmatpush.msra.mxu0 0.0
    %2024 = vmatpush.msra.mxu0 0.0
    %2025 = vmatpush.msra.mxu0 0.0
    %2026 = vmatpush.msra.mxu0 0.0
    %2027 = vmatpush.msra.mxu0 %v565
    %2028 = vmatpush.msra.mxu0 %v559
    %2029 = vmatpush.msra.mxu0 %v553
    %2030 = vmatpush.msra.mxu0 %v547
    %2031 = vmatpush.msra.mxu0 %v541
    %2032 = vmatpush.msra.mxu0 %v535
    %2033 = vmatpush.msra.mxu0 %v529
    %2034 = vmatpush.msra.mxu0 %v523
    %2035 = vmatmul.f32.gmra.mxu0 %v1877
    %v2036 = vpop.f32.mrf.mxu0
    %v2037 = vadd.f32 %v2017, %v2036
    %2038 = vdwg.mxu0
    %2039 = vmatpush.msra.mxu0 %v518
    %2040 = vmatpush.msra.mxu0 %v512
    %2041 = vmatpush.msra.mxu0 %v506
    %2042 = vmatpush.msra.mxu0 %v500
    %2043 = vmatpush.msra.mxu0 %v494
    %2044 = vmatpush.msra.mxu0 %v488
    %2045 = vmatpush.msra.mxu0 %v482
    %2046 = vmatpush.msra.mxu0 %v476
    %2047 = vmatpush.msra.mxu0 %v470
    %2048 = vmatpush.msra.mxu0 %v464
    %2049 = vmatpush.msra.mxu0 %v458
    %2050 = vmatpush.msra.mxu0 %v452
    %2051 = vmatpush.msra.mxu0 %v446
    %2052 = vmatpush.msra.mxu0 %v440
    %2053 = vmatpush.msra.mxu0 %v434
    %2054 = vmatpush.msra.mxu0 %v428
    %2055 = vmatmul.f32.gmra.mxu0 %v1874
    %v2056 = vpop.f32.mrf.mxu0
    %v2057 = vadd.f32 0.0, %v2056
    %2058 = vdwg.mxu0
    %2059 = vmatpush.msra.mxu0 0.0
    %2060 = vmatpush.msra.mxu0 0.0
    %2061 = vmatpush.msra.mxu0 0.0
    %2062 = vmatpush.msra.mxu0 0.0
    %2063 = vmatpush.msra.mxu0 0.0
    %2064 = vmatpush.msra.mxu0 0.0
    %2065 = vmatpush.msra.mxu0 0.0
    %2066 = vmatpush.msra.mxu0 0.0
    %2067 = vmatpush.msra.mxu0 %v566
    %2068 = vmatpush.msra.mxu0 %v560
    %2069 = vmatpush.msra.mxu0 %v554
    %2070 = vmatpush.msra.mxu0 %v548
    %2071 = vmatpush.msra.mxu0 %v542
    %2072 = vmatpush.msra.mxu0 %v536
    %2073 = vmatpush.msra.mxu0 %v530
    %2074 = vmatpush.msra.mxu0 %v524
    %2075 = vmatmul.f32.gmra.mxu0 %v1877
    %v2076 = vpop.f32.mrf.mxu0
    %v2077 = vadd.f32 %v2057, %v2076
    %2078 = vdwg.mxu0
    %2079 = vmatpush.msra.mxu0 %v519
    %2080 = vmatpush.msra.mxu0 %v513
    %2081 = vmatpush.msra.mxu0 %v507
    %2082 = vmatpush.msra.mxu0 %v501
    %2083 = vmatpush.msra.mxu0 %v495
    %2084 = vmatpush.msra.mxu0 %v489
    %2085 = vmatpush.msra.mxu0 %v483
    %2086 = vmatpush.msra.mxu0 %v477
    %2087 = vmatpush.msra.mxu0 %v471
    %2088 = vmatpush.msra.mxu0 %v465
    %2089 = vmatpush.msra.mxu0 %v459
    %2090 = vmatpush.msra.mxu0 %v453
    %2091 = vmatpush.msra.mxu0 %v447
    %2092 = vmatpush.msra.mxu0 %v441
    %2093 = vmatpush.msra.mxu0 %v435
    %2094 = vmatpush.msra.mxu0 %v429
    %2095 = vmatmul.f32.gmra.mxu0 %v1874
    %v2096 = vpop.f32.mrf.mxu0
    %v2097 = vadd.f32 0.0, %v2096
    %2098 = vdwg.mxu0
    %2099 = vmatpush.msra.mxu0 0.0
    %2100 = vmatpush.msra.mxu0 0.0
    %2101 = vmatpush.msra.mxu0 0.0
    %2102 = vmatpush.msra.mxu0 0.0
    %2103 = vmatpush.msra.mxu0 0.0
    %2104 = vmatpush.msra.mxu0 0.0
    %2105 = vmatpush.msra.mxu0 0.0
    %2106 = vmatpush.msra.mxu0 0.0
    %2107 = vmatpush.msra.mxu0 %v567
    %2108 = vmatpush.msra.mxu0 %v561
    %2109 = vmatpush.msra.mxu0 %v555
    %2110 = vmatpush.msra.mxu0 %v549
    %2111 = vmatpush.msra.mxu0 %v543
    %2112 = vmatpush.msra.mxu0 %v537
    %2113 = vmatpush.msra.mxu0 %v531
    %2114 = vmatpush.msra.mxu0 %v525
    %2115 = vmatmul.f32.gmra.mxu0 %v1877
    %v2116 = vpop.f32.mrf.mxu0
    %v2117 = vadd.f32 %v2097, %v2116
    %2118 = vdwg.mxu0
    %v2125 = vrot.slane %v1957, 6
    %v2126 = vrot.slane %v1997, 4
    %v2127 = vrot.slane %v2037, 2
    %v2128 = vrot.slane %v2117, 6
    %v2129 = vsel %vm358, %v1917, %v2125
    %v2130 = vsel %vm360, %v2126, %v2127
    %v2131 = vsel %vm362, %v2129, %v2130
    %v2132 = vsel %vm358, %v2077, %v2128
    %v2135 = vadd.f32 %v388, %v2131
    %v2136 = vadd.f32 %v389, %v2132
    %v2137 = vxor.u32 %v2135, 2147483648
    %v2138 = vxor.u32 %v2136, 2147483648
    %v2139 = vmul.f32 %v2137, 1.442695
    %v2140 = vpow.pop %v2139
    %v2141 = vmul.f32 %v2138, 1.442695
    %v2142 = vpow.pop %v2141
    %v2143 = vadd.f32 %v2140, 1.0
    %v2144 = vadd.f32 %v2142, 1.0
    %v2145 = vrcp.pop %v2143
    %v2146 = vmul.f32 %v2143, %v2145
    %v2147 = vsub.f32 1.0, %v2146
    %v2148 = vmul.f32 %v2145, %v2147
    %v2149 = vadd.f32 %v2145, %v2148
    %vm2150 = vweird.f32 %v2143
    %vm2151 = vweird.f32 %v2145
    %vm2152 = vmor %vm2150, %vm2151
    %v2153 = vsel %vm2152, %v2145, %v2149
    %v2154 = vand.u32 2147483647, %v2143
    %vm2155 = vcmp.eq.f32.partialorder %v2154, 8.507059e+37
    %v2156 = vand.u32 %v2143, 2147483648
    %v2157 = vor.u32 1.1754944e-38, %v2156
    %v2158 = vsel %vm2155, %v2157, %v2153
    %v2159 = vmul.f32 1.0, %v2158
    %v2160 = vrcp.pop %v2144
    %v2161 = vmul.f32 %v2144, %v2160
    %v2162 = vsub.f32 1.0, %v2161
    %v2163 = vmul.f32 %v2160, %v2162
    %v2164 = vadd.f32 %v2160, %v2163
    %vm2165 = vweird.f32 %v2144
    %vm2166 = vweird.f32 %v2160
    %vm2167 = vmor %vm2165, %vm2166
    %v2168 = vsel %vm2167, %v2160, %v2164
    %v2169 = vand.u32 2147483647, %v2144
    %vm2170 = vcmp.eq.f32.partialorder %v2169, 8.507059e+37
    %v2171 = vand.u32 %v2144, 2147483648
    %v2172 = vor.u32 1.1754944e-38, %v2171
    %v2173 = vsel %vm2170, %v2172, %v2168
    %v2174 = vmul.f32 1.0, %v2173
    %v2175 = vtanh.pop %v2136
    %2177 = vrot.lane.b32.xlu0 %v2159, 64
    %v2178 = vpop.permute.xlu0 %2177
    %v2179 = vrot.slane %v2178, 2
    %v2180 = vrot.slane %v2178, 4
    %v2181 = vsel %vm193, %v2179, %v2180
    %v2183 = vmul.f32 %v2181, %v1864
    %2185 = vrot.lane.b32.xlu0 %v2175, 64
    %v2186 = vpop.permute.xlu0 %2185
    %v2187 = vrot.slane %v2186, 2
    %v2188 = vsel %vm193, %v2186, %v2187
    %v2190 = vmul.f32 %v2159, %v2188
    %v2191 = vadd.f32 %v2183, %v2190
    %v2192 = vtanh.pop %v2191
    %v2194 = vrot.slane %v2159, 6
    %v2195 = vrot.slane %v2174, 6
    %v2196 = vsel %vm358, %v2194, %v2195
    %v2198 = vmul.f32 %v2196, %v2192
    %2200 = vst [vmem:[#allocation1] ss:$4 sm:$0xff] %v2198
    %v2201 = vld.sshfl [vmem:[#allocation1] sm:$0xff pattern:$0x73625140]
    %v2202 = vld.sshfl [vmem:[#allocation1 + $0x8] sm:$0xff pattern:$0x73625140]
    %v2204 = vsel %vm193, %v2202, 0
    %2206 = vmatpush.msra.mxu0 %v514
    %2207 = vmatpush.msra.mxu0 %v508
    %2208 = vmatpush.msra.mxu0 %v502
    %2209 = vmatpush.msra.mxu0 %v496
    %2210 = vmatpush.msra.mxu0 %v490
    %2211 = vmatpush.msra.mxu0 %v484
    %2212 = vmatpush.msra.mxu0 %v478
    %2213 = vmatpush.msra.mxu0 %v472
    %2214 = vmatpush.msra.mxu0 %v466
    %2215 = vmatpush.msra.mxu0 %v460
    %2216 = vmatpush.msra.mxu0 %v454
    %2217 = vmatpush.msra.mxu0 %v448
    %2218 = vmatpush.msra.mxu0 %v442
    %2219 = vmatpush.msra.mxu0 %v436
    %2220 = vmatpush.msra.mxu0 %v430
    %2221 = vmatpush.msra.mxu0 %v424
    %2222 = vmatmul.f32.gmra.mxu0 %v2201
    %v2223 = vpop.f32.mrf.mxu0
    %v2224 = vadd.f32 0.0, %v2223
    %2225 = vdwg.mxu0
    %2226 = vmatpush.msra.mxu0 0.0
    %2227 = vmatpush.msra.mxu0 0.0
    %2228 = vmatpush.msra.mxu0 0.0
    %2229 = vmatpush.msra.mxu0 0.0
    %2230 = vmatpush.msra.mxu0 0.0
    %2231 = vmatpush.msra.mxu0 0.0
    %2232 = vmatpush.msra.mxu0 0.0
    %2233 = vmatpush.msra.mxu0 0.0
    %2234 = vmatpush.msra.mxu0 %v562
    %2235 = vmatpush.msra.mxu0 %v556
    %2236 = vmatpush.msra.mxu0 %v550
    %2237 = vmatpush.msra.mxu0 %v544
    %2238 = vmatpush.msra.mxu0 %v538
    %2239 = vmatpush.msra.mxu0 %v532
    %2240 = vmatpush.msra.mxu0 %v526
    %2241 = vmatpush.msra.mxu0 %v520
    %2242 = vmatmul.f32.gmra.mxu0 %v2204
    %v2243 = vpop.f32.mrf.mxu0
    %v2244 = vadd.f32 %v2224, %v2243
    %2245 = vdwg.mxu0
    %2246 = vmatpush.msra.mxu0 %v515
    %2247 = vmatpush.msra.mxu0 %v509
    %2248 = vmatpush.msra.mxu0 %v503
    %2249 = vmatpush.msra.mxu0 %v497
    %2250 = vmatpush.msra.mxu0 %v491
    %2251 = vmatpush.msra.mxu0 %v485
    %2252 = vmatpush.msra.mxu0 %v479
    %2253 = vmatpush.msra.mxu0 %v473
    %2254 = vmatpush.msra.mxu0 %v467
    %2255 = vmatpush.msra.mxu0 %v461
    %2256 = vmatpush.msra.mxu0 %v455
    %2257 = vmatpush.msra.mxu0 %v449
    %2258 = vmatpush.msra.mxu0 %v443
    %2259 = vmatpush.msra.mxu0 %v437
    %2260 = vmatpush.msra.mxu0 %v431
    %2261 = vmatpush.msra.mxu0 %v425
    %2262 = vmatmul.f32.gmra.mxu0 %v2201
    %v2263 = vpop.f32.mrf.mxu0
    %v2264 = vadd.f32 0.0, %v2263
    %2265 = vdwg.mxu0
    %2266 = vmatpush.msra.mxu0 0.0
    %2267 = vmatpush.msra.mxu0 0.0
    %2268 = vmatpush.msra.mxu0 0.0
    %2269 = vmatpush.msra.mxu0 0.0
    %2270 = vmatpush.msra.mxu0 0.0
    %2271 = vmatpush.msra.mxu0 0.0
    %2272 = vmatpush.msra.mxu0 0.0
    %2273 = vmatpush.msra.mxu0 0.0
    %2274 = vmatpush.msra.mxu0 %v563
    %2275 = vmatpush.msra.mxu0 %v557
    %2276 = vmatpush.msra.mxu0 %v551
    %2277 = vmatpush.msra.mxu0 %v545
    %2278 = vmatpush.msra.mxu0 %v539
    %2279 = vmatpush.msra.mxu0 %v533
    %2280 = vmatpush.msra.mxu0 %v527
    %2281 = vmatpush.msra.mxu0 %v521
    %2282 = vmatmul.f32.gmra.mxu0 %v2204
    %v2283 = vpop.f32.mrf.mxu0
    %v2284 = vadd.f32 %v2264, %v2283
    %2285 = vdwg.mxu0
    %2286 = vmatpush.msra.mxu0 %v516
    %2287 = vmatpush.msra.mxu0 %v510
    %2288 = vmatpush.msra.mxu0 %v504
    %2289 = vmatpush.msra.mxu0 %v498
    %2290 = vmatpush.msra.mxu0 %v492
    %2291 = vmatpush.msra.mxu0 %v486
    %2292 = vmatpush.msra.mxu0 %v480
    %2293 = vmatpush.msra.mxu0 %v474
    %2294 = vmatpush.msra.mxu0 %v468
    %2295 = vmatpush.msra.mxu0 %v462
    %2296 = vmatpush.msra.mxu0 %v456
    %2297 = vmatpush.msra.mxu0 %v450
    %2298 = vmatpush.msra.mxu0 %v444
    %2299 = vmatpush.msra.mxu0 %v438
    %2300 = vmatpush.msra.mxu0 %v432
    %2301 = vmatpush.msra.mxu0 %v426
    %2302 = vmatmul.f32.gmra.mxu0 %v2201
    %v2303 = vpop.f32.mrf.mxu0
    %v2304 = vadd.f32 0.0, %v2303
    %2305 = vdwg.mxu0
    %2306 = vmatpush.msra.mxu0 0.0
    %2307 = vmatpush.msra.mxu0 0.0
    %2308 = vmatpush.msra.mxu0 0.0
    %2309 = vmatpush.msra.mxu0 0.0
    %2310 = vmatpush.msra.mxu0 0.0
    %2311 = vmatpush.msra.mxu0 0.0
    %2312 = vmatpush.msra.mxu0 0.0
    %2313 = vmatpush.msra.mxu0 0.0
    %2314 = vmatpush.msra.mxu0 %v564
    %2315 = vmatpush.msra.mxu0 %v558
    %2316 = vmatpush.msra.mxu0 %v552
    %2317 = vmatpush.msra.mxu0 %v546
    %2318 = vmatpush.msra.mxu0 %v540
    %2319 = vmatpush.msra.mxu0 %v534
    %2320 = vmatpush.msra.mxu0 %v528
    %2321 = vmatpush.msra.mxu0 %v522
    %2322 = vmatmul.f32.gmra.mxu0 %v2204
    %v2323 = vpop.f32.mrf.mxu0
    %v2324 = vadd.f32 %v2304, %v2323
    %2325 = vdwg.mxu0
    %2326 = vmatpush.msra.mxu0 %v517
    %2327 = vmatpush.msra.mxu0 %v511
    %2328 = vmatpush.msra.mxu0 %v505
    %2329 = vmatpush.msra.mxu0 %v499
    %2330 = vmatpush.msra.mxu0 %v493
    %2331 = vmatpush.msra.mxu0 %v487
    %2332 = vmatpush.msra.mxu0 %v481
    %2333 = vmatpush.msra.mxu0 %v475
    %2334 = vmatpush.msra.mxu0 %v469
    %2335 = vmatpush.msra.mxu0 %v463
    %2336 = vmatpush.msra.mxu0 %v457
    %2337 = vmatpush.msra.mxu0 %v451
    %2338 = vmatpush.msra.mxu0 %v445
    %2339 = vmatpush.msra.mxu0 %v439
    %2340 = vmatpush.msra.mxu0 %v433
    %2341 = vmatpush.msra.mxu0 %v427
    %2342 = vmatmul.f32.gmra.mxu0 %v2201
    %v2343 = vpop.f32.mrf.mxu0
    %v2344 = vadd.f32 0.0, %v2343
    %2345 = vdwg.mxu0
    %2346 = vmatpush.msra.mxu0 0.0
    %2347 = vmatpush.msra.mxu0 0.0
    %2348 = vmatpush.msra.mxu0 0.0
    %2349 = vmatpush.msra.mxu0 0.0
    %2350 = vmatpush.msra.mxu0 0.0
    %2351 = vmatpush.msra.mxu0 0.0
    %2352 = vmatpush.msra.mxu0 0.0
    %2353 = vmatpush.msra.mxu0 0.0
    %2354 = vmatpush.msra.mxu0 %v565
    %2355 = vmatpush.msra.mxu0 %v559
    %2356 = vmatpush.msra.mxu0 %v553
    %2357 = vmatpush.msra.mxu0 %v547
    %2358 = vmatpush.msra.mxu0 %v541
    %2359 = vmatpush.msra.mxu0 %v535
    %2360 = vmatpush.msra.mxu0 %v529
    %2361 = vmatpush.msra.mxu0 %v523
    %2362 = vmatmul.f32.gmra.mxu0 %v2204
    %v2363 = vpop.f32.mrf.mxu0
    %v2364 = vadd.f32 %v2344, %v2363
    %2365 = vdwg.mxu0
    %2366 = vmatpush.msra.mxu0 %v518
    %2367 = vmatpush.msra.mxu0 %v512
    %2368 = vmatpush.msra.mxu0 %v506
    %2369 = vmatpush.msra.mxu0 %v500
    %2370 = vmatpush.msra.mxu0 %v494
    %2371 = vmatpush.msra.mxu0 %v488
    %2372 = vmatpush.msra.mxu0 %v482
    %2373 = vmatpush.msra.mxu0 %v476
    %2374 = vmatpush.msra.mxu0 %v470
    %2375 = vmatpush.msra.mxu0 %v464
    %2376 = vmatpush.msra.mxu0 %v458
    %2377 = vmatpush.msra.mxu0 %v452
    %2378 = vmatpush.msra.mxu0 %v446
    %2379 = vmatpush.msra.mxu0 %v440
    %2380 = vmatpush.msra.mxu0 %v434
    %2381 = vmatpush.msra.mxu0 %v428
    %2382 = vmatmul.f32.gmra.mxu0 %v2201
    %v2383 = vpop.f32.mrf.mxu0
    %v2384 = vadd.f32 0.0, %v2383
    %2385 = vdwg.mxu0
    %2386 = vmatpush.msra.mxu0 0.0
    %2387 = vmatpush.msra.mxu0 0.0
    %2388 = vmatpush.msra.mxu0 0.0
    %2389 = vmatpush.msra.mxu0 0.0
    %2390 = vmatpush.msra.mxu0 0.0
    %2391 = vmatpush.msra.mxu0 0.0
    %2392 = vmatpush.msra.mxu0 0.0
    %2393 = vmatpush.msra.mxu0 0.0
    %2394 = vmatpush.msra.mxu0 %v566
    %2395 = vmatpush.msra.mxu0 %v560
    %2396 = vmatpush.msra.mxu0 %v554
    %2397 = vmatpush.msra.mxu0 %v548
    %2398 = vmatpush.msra.mxu0 %v542
    %2399 = vmatpush.msra.mxu0 %v536
    %2400 = vmatpush.msra.mxu0 %v530
    %2401 = vmatpush.msra.mxu0 %v524
    %2402 = vmatmul.f32.gmra.mxu0 %v2204
    %v2403 = vpop.f32.mrf.mxu0
    %v2404 = vadd.f32 %v2384, %v2403
    %2405 = vdwg.mxu0
    %2406 = vmatpush.msra.mxu0 %v519
    %2407 = vmatpush.msra.mxu0 %v513
    %2408 = vmatpush.msra.mxu0 %v507
    %2409 = vmatpush.msra.mxu0 %v501
    %2410 = vmatpush.msra.mxu0 %v495
    %2411 = vmatpush.msra.mxu0 %v489
    %2412 = vmatpush.msra.mxu0 %v483
    %2413 = vmatpush.msra.mxu0 %v477
    %2414 = vmatpush.msra.mxu0 %v471
    %2415 = vmatpush.msra.mxu0 %v465
    %2416 = vmatpush.msra.mxu0 %v459
    %2417 = vmatpush.msra.mxu0 %v453
    %2418 = vmatpush.msra.mxu0 %v447
    %2419 = vmatpush.msra.mxu0 %v441
    %2420 = vmatpush.msra.mxu0 %v435
    %2421 = vmatpush.msra.mxu0 %v429
    %2422 = vmatmul.f32.gmra.mxu0 %v2201
    %v2423 = vpop.f32.mrf.mxu0
    %v2424 = vadd.f32 0.0, %v2423
    %2425 = vdwg.mxu0
    %2426 = vmatpush.msra.mxu0 0.0
    %2427 = vmatpush.msra.mxu0 0.0
    %2428 = vmatpush.msra.mxu0 0.0
    %2429 = vmatpush.msra.mxu0 0.0
    %2430 = vmatpush.msra.mxu0 0.0
    %2431 = vmatpush.msra.mxu0 0.0
    %2432 = vmatpush.msra.mxu0 0.0
    %2433 = vmatpush.msra.mxu0 0.0
    %2434 = vmatpush.msra.mxu0 %v567
    %2435 = vmatpush.msra.mxu0 %v561
    %2436 = vmatpush.msra.mxu0 %v555
    %2437 = vmatpush.msra.mxu0 %v549
    %2438 = vmatpush.msra.mxu0 %v543
    %2439 = vmatpush.msra.mxu0 %v537
    %2440 = vmatpush.msra.mxu0 %v531
    %2441 = vmatpush.msra.mxu0 %v525
    %2442 = vmatmul.f32.gmra.mxu0 %v2204
    %v2443 = vpop.f32.mrf.mxu0
    %v2444 = vadd.f32 %v2424, %v2443
    %2445 = vdwg.mxu0
    %v2452 = vrot.slane %v2284, 6
    %v2453 = vrot.slane %v2324, 4
    %v2454 = vrot.slane %v2364, 2
    %v2455 = vrot.slane %v2444, 6
    %v2456 = vsel %vm358, %v2244, %v2452
    %v2457 = vsel %vm360, %v2453, %v2454
    %v2458 = vsel %vm362, %v2456, %v2457
    %v2459 = vsel %vm358, %v2404, %v2455
    %v2462 = vadd.f32 %v393, %v2458
    %v2463 = vadd.f32 %v395, %v2459
    %v2464 = vxor.u32 %v2462, 2147483648
    %v2465 = vxor.u32 %v2463, 2147483648
    %v2466 = vmul.f32 %v2464, 1.442695
    %v2467 = vpow.pop %v2466
    %v2468 = vmul.f32 %v2465, 1.442695
    %v2469 = vpow.pop %v2468
    %v2470 = vadd.f32 %v2467, 1.0
    %v2471 = vadd.f32 %v2469, 1.0
    %v2472 = vrcp.pop %v2470
    %v2473 = vmul.f32 %v2470, %v2472
    %v2474 = vsub.f32 1.0, %v2473
    %v2475 = vmul.f32 %v2472, %v2474
    %v2476 = vadd.f32 %v2472, %v2475
    %vm2477 = vweird.f32 %v2470
    %vm2478 = vweird.f32 %v2472
    %vm2479 = vmor %vm2477, %vm2478
    %v2480 = vsel %vm2479, %v2472, %v2476
    %v2481 = vand.u32 2147483647, %v2470
    %vm2482 = vcmp.eq.f32.partialorder %v2481, 8.507059e+37
    %v2483 = vand.u32 %v2470, 2147483648
    %v2484 = vor.u32 1.1754944e-38, %v2483
    %v2485 = vsel %vm2482, %v2484, %v2480
    %v2486 = vmul.f32 1.0, %v2485
    %v2487 = vrcp.pop %v2471
    %v2488 = vmul.f32 %v2471, %v2487
    %v2489 = vsub.f32 1.0, %v2488
    %v2490 = vmul.f32 %v2487, %v2489
    %v2491 = vadd.f32 %v2487, %v2490
    %vm2492 = vweird.f32 %v2471
    %vm2493 = vweird.f32 %v2487
    %vm2494 = vmor %vm2492, %vm2493
    %v2495 = vsel %vm2494, %v2487, %v2491
    %v2496 = vand.u32 2147483647, %v2471
    %vm2497 = vcmp.eq.f32.partialorder %v2496, 8.507059e+37
    %v2498 = vand.u32 %v2471, 2147483648
    %v2499 = vor.u32 1.1754944e-38, %v2498
    %v2500 = vsel %vm2497, %v2499, %v2495
    %v2501 = vmul.f32 1.0, %v2500
    %v2502 = vtanh.pop %v2463
    %2504 = vrot.lane.b32.xlu0 %v2486, 64
    %v2505 = vpop.permute.xlu0 %2504
    %v2506 = vrot.slane %v2505, 2
    %v2507 = vrot.slane %v2505, 4
    %v2508 = vsel %vm193, %v2506, %v2507
    %v2510 = vmul.f32 %v2508, %v2191
    %2512 = vrot.lane.b32.xlu0 %v2502, 64
    %v2513 = vpop.permute.xlu0 %2512
    %v2514 = vrot.slane %v2513, 2
    %v2515 = vsel %vm193, %v2513, %v2514
    %v2517 = vmul.f32 %v2486, %v2515
    %v2518 = vadd.f32 %v2510, %v2517
    %v2519 = vtanh.pop %v2518
    %v2521 = vrot.slane %v2486, 6
    %v2522 = vrot.slane %v2501, 6
    %v2523 = vsel %vm358, %v2521, %v2522
    %v2525 = vmul.f32 %v2523, %v2519
    %2527 = vst [vmem:[#allocation1] ss:$4 sm:$0xff] %v2525
    %v2528 = vld.sshfl [vmem:[#allocation1] sm:$0xff pattern:$0x73625140]
    %v2529 = vld.sshfl [vmem:[#allocation1 + $0x8] sm:$0xff pattern:$0x73625140]
    %v2531 = vsel %vm193, %v2529, 0
    %2533 = vmatpush.msra.mxu0 %v514
    %2534 = vmatpush.msra.mxu0 %v508
    %2535 = vmatpush.msra.mxu0 %v502
    %2536 = vmatpush.msra.mxu0 %v496
    %2537 = vmatpush.msra.mxu0 %v490
    %2538 = vmatpush.msra.mxu0 %v484
    %2539 = vmatpush.msra.mxu0 %v478
    %2540 = vmatpush.msra.mxu0 %v472
    %2541 = vmatpush.msra.mxu0 %v466
    %2542 = vmatpush.msra.mxu0 %v460
    %2543 = vmatpush.msra.mxu0 %v454
    %2544 = vmatpush.msra.mxu0 %v448
    %2545 = vmatpush.msra.mxu0 %v442
    %2546 = vmatpush.msra.mxu0 %v436
    %2547 = vmatpush.msra.mxu0 %v430
    %2548 = vmatpush.msra.mxu0 %v424
    %2549 = vmatmul.f32.gmra.mxu0 %v2528
    %v2550 = vpop.f32.mrf.mxu0
    %v2551 = vadd.f32 0.0, %v2550
    %2552 = vdwg.mxu0
    %2553 = vmatpush.msra.mxu0 0.0
    %2554 = vmatpush.msra.mxu0 0.0
    %2555 = vmatpush.msra.mxu0 0.0
    %2556 = vmatpush.msra.mxu0 0.0
    %2557 = vmatpush.msra.mxu0 0.0
    %2558 = vmatpush.msra.mxu0 0.0
    %2559 = vmatpush.msra.mxu0 0.0
    %2560 = vmatpush.msra.mxu0 0.0
    %2561 = vmatpush.msra.mxu0 %v562
    %2562 = vmatpush.msra.mxu0 %v556
    %2563 = vmatpush.msra.mxu0 %v550
    %2564 = vmatpush.msra.mxu0 %v544
    %2565 = vmatpush.msra.mxu0 %v538
    %2566 = vmatpush.msra.mxu0 %v532
    %2567 = vmatpush.msra.mxu0 %v526
    %2568 = vmatpush.msra.mxu0 %v520
    %2569 = vmatmul.f32.gmra.mxu0 %v2531
    %v2570 = vpop.f32.mrf.mxu0
    %v2571 = vadd.f32 %v2551, %v2570
    %2572 = vdwg.mxu0
    %2573 = vmatpush.msra.mxu0 %v515
    %2574 = vmatpush.msra.mxu0 %v509
    %2575 = vmatpush.msra.mxu0 %v503
    %2576 = vmatpush.msra.mxu0 %v497
    %2577 = vmatpush.msra.mxu0 %v491
    %2578 = vmatpush.msra.mxu0 %v485
    %2579 = vmatpush.msra.mxu0 %v479
    %2580 = vmatpush.msra.mxu0 %v473
    %2581 = vmatpush.msra.mxu0 %v467
    %2582 = vmatpush.msra.mxu0 %v461
    %2583 = vmatpush.msra.mxu0 %v455
    %2584 = vmatpush.msra.mxu0 %v449
    %2585 = vmatpush.msra.mxu0 %v443
    %2586 = vmatpush.msra.mxu0 %v437
    %2587 = vmatpush.msra.mxu0 %v431
    %2588 = vmatpush.msra.mxu0 %v425
    %2589 = vmatmul.f32.gmra.mxu0 %v2528
    %v2590 = vpop.f32.mrf.mxu0
    %v2591 = vadd.f32 0.0, %v2590
    %2592 = vdwg.mxu0
    %2593 = vmatpush.msra.mxu0 0.0
    %2594 = vmatpush.msra.mxu0 0.0
    %2595 = vmatpush.msra.mxu0 0.0
    %2596 = vmatpush.msra.mxu0 0.0
    %2597 = vmatpush.msra.mxu0 0.0
    %2598 = vmatpush.msra.mxu0 0.0
    %2599 = vmatpush.msra.mxu0 0.0
    %2600 = vmatpush.msra.mxu0 0.0
    %2601 = vmatpush.msra.mxu0 %v563
    %2602 = vmatpush.msra.mxu0 %v557
    %2603 = vmatpush.msra.mxu0 %v551
    %2604 = vmatpush.msra.mxu0 %v545
    %2605 = vmatpush.msra.mxu0 %v539
    %2606 = vmatpush.msra.mxu0 %v533
    %2607 = vmatpush.msra.mxu0 %v527
    %2608 = vmatpush.msra.mxu0 %v521
    %2609 = vmatmul.f32.gmra.mxu0 %v2531
    %v2610 = vpop.f32.mrf.mxu0
    %v2611 = vadd.f32 %v2591, %v2610
    %2612 = vdwg.mxu0
    %2613 = vmatpush.msra.mxu0 %v516
    %2614 = vmatpush.msra.mxu0 %v510
    %2615 = vmatpush.msra.mxu0 %v504
    %2616 = vmatpush.msra.mxu0 %v498
    %2617 = vmatpush.msra.mxu0 %v492
    %2618 = vmatpush.msra.mxu0 %v486
    %2619 = vmatpush.msra.mxu0 %v480
    %2620 = vmatpush.msra.mxu0 %v474
    %2621 = vmatpush.msra.mxu0 %v468
    %2622 = vmatpush.msra.mxu0 %v462
    %2623 = vmatpush.msra.mxu0 %v456
    %2624 = vmatpush.msra.mxu0 %v450
    %2625 = vmatpush.msra.mxu0 %v444
    %2626 = vmatpush.msra.mxu0 %v438
    %2627 = vmatpush.msra.mxu0 %v432
    %2628 = vmatpush.msra.mxu0 %v426
    %2629 = vmatmul.f32.gmra.mxu0 %v2528
    %v2630 = vpop.f32.mrf.mxu0
    %v2631 = vadd.f32 0.0, %v2630
    %2632 = vdwg.mxu0
    %2633 = vmatpush.msra.mxu0 0.0
    %2634 = vmatpush.msra.mxu0 0.0
    %2635 = vmatpush.msra.mxu0 0.0
    %2636 = vmatpush.msra.mxu0 0.0
    %2637 = vmatpush.msra.mxu0 0.0
    %2638 = vmatpush.msra.mxu0 0.0
    %2639 = vmatpush.msra.mxu0 0.0
    %2640 = vmatpush.msra.mxu0 0.0
    %2641 = vmatpush.msra.mxu0 %v564
    %2642 = vmatpush.msra.mxu0 %v558
    %2643 = vmatpush.msra.mxu0 %v552
    %2644 = vmatpush.msra.mxu0 %v546
    %2645 = vmatpush.msra.mxu0 %v540
    %2646 = vmatpush.msra.mxu0 %v534
    %2647 = vmatpush.msra.mxu0 %v528
    %2648 = vmatpush.msra.mxu0 %v522
    %2649 = vmatmul.f32.gmra.mxu0 %v2531
    %v2650 = vpop.f32.mrf.mxu0
    %v2651 = vadd.f32 %v2631, %v2650
    %2652 = vdwg.mxu0
    %2653 = vmatpush.msra.mxu0 %v517
    %2654 = vmatpush.msra.mxu0 %v511
    %2655 = vmatpush.msra.mxu0 %v505
    %2656 = vmatpush.msra.mxu0 %v499
    %2657 = vmatpush.msra.mxu0 %v493
    %2658 = vmatpush.msra.mxu0 %v487
    %2659 = vmatpush.msra.mxu0 %v481
    %2660 = vmatpush.msra.mxu0 %v475
    %2661 = vmatpush.msra.mxu0 %v469
    %2662 = vmatpush.msra.mxu0 %v463
    %2663 = vmatpush.msra.mxu0 %v457
    %2664 = vmatpush.msra.mxu0 %v451
    %2665 = vmatpush.msra.mxu0 %v445
    %2666 = vmatpush.msra.mxu0 %v439
    %2667 = vmatpush.msra.mxu0 %v433
    %2668 = vmatpush.msra.mxu0 %v427
    %2669 = vmatmul.f32.gmra.mxu0 %v2528
    %v2670 = vpop.f32.mrf.mxu0
    %v2671 = vadd.f32 0.0, %v2670
    %2672 = vdwg.mxu0
    %2673 = vmatpush.msra.mxu0 0.0
    %2674 = vmatpush.msra.mxu0 0.0
    %2675 = vmatpush.msra.mxu0 0.0
    %2676 = vmatpush.msra.mxu0 0.0
    %2677 = vmatpush.msra.mxu0 0.0
    %2678 = vmatpush.msra.mxu0 0.0
    %2679 = vmatpush.msra.mxu0 0.0
    %2680 = vmatpush.msra.mxu0 0.0
    %2681 = vmatpush.msra.mxu0 %v565
    %2682 = vmatpush.msra.mxu0 %v559
    %2683 = vmatpush.msra.mxu0 %v553
    %2684 = vmatpush.msra.mxu0 %v547
    %2685 = vmatpush.msra.mxu0 %v541
    %2686 = vmatpush.msra.mxu0 %v535
    %2687 = vmatpush.msra.mxu0 %v529
    %2688 = vmatpush.msra.mxu0 %v523
    %2689 = vmatmul.f32.gmra.mxu0 %v2531
    %v2690 = vpop.f32.mrf.mxu0
    %v2691 = vadd.f32 %v2671, %v2690
    %2692 = vdwg.mxu0
    %2693 = vmatpush.msra.mxu0 %v518
    %2694 = vmatpush.msra.mxu0 %v512
    %2695 = vmatpush.msra.mxu0 %v506
    %2696 = vmatpush.msra.mxu0 %v500
    %2697 = vmatpush.msra.mxu0 %v494
    %2698 = vmatpush.msra.mxu0 %v488
    %2699 = vmatpush.msra.mxu0 %v482
    %2700 = vmatpush.msra.mxu0 %v476
    %2701 = vmatpush.msra.mxu0 %v470
    %2702 = vmatpush.msra.mxu0 %v464
    %2703 = vmatpush.msra.mxu0 %v458
    %2704 = vmatpush.msra.mxu0 %v452
    %2705 = vmatpush.msra.mxu0 %v446
    %2706 = vmatpush.msra.mxu0 %v440
    %2707 = vmatpush.msra.mxu0 %v434
    %2708 = vmatpush.msra.mxu0 %v428
    %2709 = vmatmul.f32.gmra.mxu0 %v2528
    %v2710 = vpop.f32.mrf.mxu0
    %v2711 = vadd.f32 0.0, %v2710
    %2712 = vdwg.mxu0
    %2713 = vmatpush.msra.mxu0 0.0
    %2714 = vmatpush.msra.mxu0 0.0
    %2715 = vmatpush.msra.mxu0 0.0
    %2716 = vmatpush.msra.mxu0 0.0
    %2717 = vmatpush.msra.mxu0 0.0
    %2718 = vmatpush.msra.mxu0 0.0
    %2719 = vmatpush.msra.mxu0 0.0
    %2720 = vmatpush.msra.mxu0 0.0
    %2721 = vmatpush.msra.mxu0 %v566
    %2722 = vmatpush.msra.mxu0 %v560
    %2723 = vmatpush.msra.mxu0 %v554
    %2724 = vmatpush.msra.mxu0 %v548
    %2725 = vmatpush.msra.mxu0 %v542
    %2726 = vmatpush.msra.mxu0 %v536
    %2727 = vmatpush.msra.mxu0 %v530
    %2728 = vmatpush.msra.mxu0 %v524
    %2729 = vmatmul.f32.gmra.mxu0 %v2531
    %v2730 = vpop.f32.mrf.mxu0
    %v2731 = vadd.f32 %v2711, %v2730
    %2732 = vdwg.mxu0
    %2733 = vmatpush.msra.mxu0 %v519
    %2734 = vmatpush.msra.mxu0 %v513
    %2735 = vmatpush.msra.mxu0 %v507
    %2736 = vmatpush.msra.mxu0 %v501
    %2737 = vmatpush.msra.mxu0 %v495
    %2738 = vmatpush.msra.mxu0 %v489
    %2739 = vmatpush.msra.mxu0 %v483
    %2740 = vmatpush.msra.mxu0 %v477
    %2741 = vmatpush.msra.mxu0 %v471
    %2742 = vmatpush.msra.mxu0 %v465
    %2743 = vmatpush.msra.mxu0 %v459
    %2744 = vmatpush.msra.mxu0 %v453
    %2745 = vmatpush.msra.mxu0 %v447
    %2746 = vmatpush.msra.mxu0 %v441
    %2747 = vmatpush.msra.mxu0 %v435
    %2748 = vmatpush.msra.mxu0 %v429
    %2749 = vmatmul.f32.gmra.mxu0 %v2528
    %v2750 = vpop.f32.mrf.mxu0
    %v2751 = vadd.f32 0.0, %v2750
    %2752 = vdwg.mxu0
    %2753 = vmatpush.msra.mxu0 0.0
    %2754 = vmatpush.msra.mxu0 0.0
    %2755 = vmatpush.msra.mxu0 0.0
    %2756 = vmatpush.msra.mxu0 0.0
    %2757 = vmatpush.msra.mxu0 0.0
    %2758 = vmatpush.msra.mxu0 0.0
    %2759 = vmatpush.msra.mxu0 0.0
    %2760 = vmatpush.msra.mxu0 0.0
    %2761 = vmatpush.msra.mxu0 %v567
    %2762 = vmatpush.msra.mxu0 %v561
    %2763 = vmatpush.msra.mxu0 %v555
    %2764 = vmatpush.msra.mxu0 %v549
    %2765 = vmatpush.msra.mxu0 %v543
    %2766 = vmatpush.msra.mxu0 %v537
    %2767 = vmatpush.msra.mxu0 %v531
    %2768 = vmatpush.msra.mxu0 %v525
    %2769 = vmatmul.f32.gmra.mxu0 %v2531
    %v2770 = vpop.f32.mrf.mxu0
    %v2771 = vadd.f32 %v2751, %v2770
    %2772 = vdwg.mxu0
    %v2779 = vrot.slane %v2611, 6
    %v2780 = vrot.slane %v2651, 4
    %v2781 = vrot.slane %v2691, 2
    %v2782 = vrot.slane %v2771, 6
    %v2783 = vsel %vm358, %v2571, %v2779
    %v2784 = vsel %vm360, %v2780, %v2781
    %v2785 = vsel %vm362, %v2783, %v2784
    %v2786 = vsel %vm358, %v2731, %v2782
    %v2789 = vadd.f32 %v399, %v2785
    %v2790 = vadd.f32 %v401, %v2786
    %v2791 = vxor.u32 %v2789, 2147483648
    %v2792 = vxor.u32 %v2790, 2147483648
    %v2793 = vmul.f32 %v2791, 1.442695
    %v2794 = vpow.pop %v2793
    %v2795 = vmul.f32 %v2792, 1.442695
    %v2796 = vpow.pop %v2795
    %v2797 = vadd.f32 %v2794, 1.0
    %v2798 = vadd.f32 %v2796, 1.0
    %v2799 = vrcp.pop %v2797
    %v2800 = vmul.f32 %v2797, %v2799
    %v2801 = vsub.f32 1.0, %v2800
    %v2802 = vmul.f32 %v2799, %v2801
    %v2803 = vadd.f32 %v2799, %v2802
    %vm2804 = vweird.f32 %v2797
    %vm2805 = vweird.f32 %v2799
    %vm2806 = vmor %vm2804, %vm2805
    %v2807 = vsel %vm2806, %v2799, %v2803
    %v2808 = vand.u32 2147483647, %v2797
    %vm2809 = vcmp.eq.f32.partialorder %v2808, 8.507059e+37
    %v2810 = vand.u32 %v2797, 2147483648
    %v2811 = vor.u32 1.1754944e-38, %v2810
    %v2812 = vsel %vm2809, %v2811, %v2807
    %v2813 = vmul.f32 1.0, %v2812
    %v2814 = vrcp.pop %v2798
    %v2815 = vmul.f32 %v2798, %v2814
    %v2816 = vsub.f32 1.0, %v2815
    %v2817 = vmul.f32 %v2814, %v2816
    %v2818 = vadd.f32 %v2814, %v2817
    %vm2819 = vweird.f32 %v2798
    %vm2820 = vweird.f32 %v2814
    %vm2821 = vmor %vm2819, %vm2820
    %v2822 = vsel %vm2821, %v2814, %v2818
    %v2823 = vand.u32 2147483647, %v2798
    %vm2824 = vcmp.eq.f32.partialorder %v2823, 8.507059e+37
    %v2825 = vand.u32 %v2798, 2147483648
    %v2826 = vor.u32 1.1754944e-38, %v2825
    %v2827 = vsel %vm2824, %v2826, %v2822
    %v2828 = vmul.f32 1.0, %v2827
    %v2829 = vtanh.pop %v2790
    %2831 = vrot.lane.b32.xlu0 %v2813, 64
    %v2832 = vpop.permute.xlu0 %2831
    %v2833 = vrot.slane %v2832, 2
    %v2834 = vrot.slane %v2832, 4
    %v2835 = vsel %vm193, %v2833, %v2834
    %v2837 = vmul.f32 %v2835, %v2518
    %2839 = vrot.lane.b32.xlu0 %v2829, 64
    %v2840 = vpop.permute.xlu0 %2839
    %v2841 = vrot.slane %v2840, 2
    %v2842 = vsel %vm193, %v2840, %v2841
    %v2844 = vmul.f32 %v2813, %v2842
    %v2845 = vadd.f32 %v2837, %v2844
    %v2846 = vtanh.pop %v2845
    %v2848 = vrot.slane %v2813, 6
    %v2849 = vrot.slane %v2828, 6
    %v2850 = vsel %vm358, %v2848, %v2849
    %v2852 = vmul.f32 %v2850, %v2846
    %2854 = vst [vmem:[#allocation1] ss:$4 sm:$0xff] %v2852
    %v2855 = vld.sshfl [vmem:[#allocation1] sm:$0xff pattern:$0x73625140]
    %v2856 = vld.sshfl [vmem:[#allocation1 + $0x8] sm:$0xff pattern:$0x73625140]
    %v2858 = vsel %vm193, %v2856, 0
    %2860 = vmatpush.msra.mxu0 %v514
    %2861 = vmatpush.msra.mxu0 %v508
    %2862 = vmatpush.msra.mxu0 %v502
    %2863 = vmatpush.msra.mxu0 %v496
    %2864 = vmatpush.msra.mxu0 %v490
    %2865 = vmatpush.msra.mxu0 %v484
    %2866 = vmatpush.msra.mxu0 %v478
    %2867 = vmatpush.msra.mxu0 %v472
    %2868 = vmatpush.msra.mxu0 %v466
    %2869 = vmatpush.msra.mxu0 %v460
    %2870 = vmatpush.msra.mxu0 %v454
    %2871 = vmatpush.msra.mxu0 %v448
    %2872 = vmatpush.msra.mxu0 %v442
    %2873 = vmatpush.msra.mxu0 %v436
    %2874 = vmatpush.msra.mxu0 %v430
    %2875 = vmatpush.msra.mxu0 %v424
    %2876 = vmatmul.f32.gmra.mxu0 %v2855
    %v2877 = vpop.f32.mrf.mxu0
    %v2878 = vadd.f32 0.0, %v2877
    %2879 = vdwg.mxu0
    %2880 = vmatpush.msra.mxu0 0.0
    %2881 = vmatpush.msra.mxu0 0.0
    %2882 = vmatpush.msra.mxu0 0.0
    %2883 = vmatpush.msra.mxu0 0.0
    %2884 = vmatpush.msra.mxu0 0.0
    %2885 = vmatpush.msra.mxu0 0.0
    %2886 = vmatpush.msra.mxu0 0.0
    %2887 = vmatpush.msra.mxu0 0.0
    %2888 = vmatpush.msra.mxu0 %v562
    %2889 = vmatpush.msra.mxu0 %v556
    %2890 = vmatpush.msra.mxu0 %v550
    %2891 = vmatpush.msra.mxu0 %v544
    %2892 = vmatpush.msra.mxu0 %v538
    %2893 = vmatpush.msra.mxu0 %v532
    %2894 = vmatpush.msra.mxu0 %v526
    %2895 = vmatpush.msra.mxu0 %v520
    %2896 = vmatmul.f32.gmra.mxu0 %v2858
    %v2897 = vpop.f32.mrf.mxu0
    %v2898 = vadd.f32 %v2878, %v2897
    %2899 = vdwg.mxu0
    %2900 = vmatpush.msra.mxu0 %v515
    %2901 = vmatpush.msra.mxu0 %v509
    %2902 = vmatpush.msra.mxu0 %v503
    %2903 = vmatpush.msra.mxu0 %v497
    %2904 = vmatpush.msra.mxu0 %v491
    %2905 = vmatpush.msra.mxu0 %v485
    %2906 = vmatpush.msra.mxu0 %v479
    %2907 = vmatpush.msra.mxu0 %v473
    %2908 = vmatpush.msra.mxu0 %v467
    %2909 = vmatpush.msra.mxu0 %v461
    %2910 = vmatpush.msra.mxu0 %v455
    %2911 = vmatpush.msra.mxu0 %v449
    %2912 = vmatpush.msra.mxu0 %v443
    %2913 = vmatpush.msra.mxu0 %v437
    %2914 = vmatpush.msra.mxu0 %v431
    %2915 = vmatpush.msra.mxu0 %v425
    %2916 = vmatmul.f32.gmra.mxu0 %v2855
    %v2917 = vpop.f32.mrf.mxu0
    %v2918 = vadd.f32 0.0, %v2917
    %2919 = vdwg.mxu0
    %2920 = vmatpush.msra.mxu0 0.0
    %2921 = vmatpush.msra.mxu0 0.0
    %2922 = vmatpush.msra.mxu0 0.0
    %2923 = vmatpush.msra.mxu0 0.0
    %2924 = vmatpush.msra.mxu0 0.0
    %2925 = vmatpush.msra.mxu0 0.0
    %2926 = vmatpush.msra.mxu0 0.0
    %2927 = vmatpush.msra.mxu0 0.0
    %2928 = vmatpush.msra.mxu0 %v563
    %2929 = vmatpush.msra.mxu0 %v557
    %2930 = vmatpush.msra.mxu0 %v551
    %2931 = vmatpush.msra.mxu0 %v545
    %2932 = vmatpush.msra.mxu0 %v539
    %2933 = vmatpush.msra.mxu0 %v533
    %2934 = vmatpush.msra.mxu0 %v527
    %2935 = vmatpush.msra.mxu0 %v521
    %2936 = vmatmul.f32.gmra.mxu0 %v2858
    %v2937 = vpop.f32.mrf.mxu0
    %v2938 = vadd.f32 %v2918, %v2937
    %2939 = vdwg.mxu0
    %2940 = vmatpush.msra.mxu0 %v516
    %2941 = vmatpush.msra.mxu0 %v510
    %2942 = vmatpush.msra.mxu0 %v504
    %2943 = vmatpush.msra.mxu0 %v498
    %2944 = vmatpush.msra.mxu0 %v492
    %2945 = vmatpush.msra.mxu0 %v486
    %2946 = vmatpush.msra.mxu0 %v480
    %2947 = vmatpush.msra.mxu0 %v474
    %2948 = vmatpush.msra.mxu0 %v468
    %2949 = vmatpush.msra.mxu0 %v462
    %2950 = vmatpush.msra.mxu0 %v456
    %2951 = vmatpush.msra.mxu0 %v450
    %2952 = vmatpush.msra.mxu0 %v444
    %2953 = vmatpush.msra.mxu0 %v438
    %2954 = vmatpush.msra.mxu0 %v432
    %2955 = vmatpush.msra.mxu0 %v426
    %2956 = vmatmul.f32.gmra.mxu0 %v2855
    %v2957 = vpop.f32.mrf.mxu0
    %v2958 = vadd.f32 0.0, %v2957
    %2959 = vdwg.mxu0
    %2960 = vmatpush.msra.mxu0 0.0
    %2961 = vmatpush.msra.mxu0 0.0
    %2962 = vmatpush.msra.mxu0 0.0
    %2963 = vmatpush.msra.mxu0 0.0
    %2964 = vmatpush.msra.mxu0 0.0
    %2965 = vmatpush.msra.mxu0 0.0
    %2966 = vmatpush.msra.mxu0 0.0
    %2967 = vmatpush.msra.mxu0 0.0
    %2968 = vmatpush.msra.mxu0 %v564
    %2969 = vmatpush.msra.mxu0 %v558
    %2970 = vmatpush.msra.mxu0 %v552
    %2971 = vmatpush.msra.mxu0 %v546
    %2972 = vmatpush.msra.mxu0 %v540
    %2973 = vmatpush.msra.mxu0 %v534
    %2974 = vmatpush.msra.mxu0 %v528
    %2975 = vmatpush.msra.mxu0 %v522
    %2976 = vmatmul.f32.gmra.mxu0 %v2858
    %v2977 = vpop.f32.mrf.mxu0
    %v2978 = vadd.f32 %v2958, %v2977
    %2979 = vdwg.mxu0
    %2980 = vmatpush.msra.mxu0 %v517
    %2981 = vmatpush.msra.mxu0 %v511
    %2982 = vmatpush.msra.mxu0 %v505
    %2983 = vmatpush.msra.mxu0 %v499
    %2984 = vmatpush.msra.mxu0 %v493
    %2985 = vmatpush.msra.mxu0 %v487
    %2986 = vmatpush.msra.mxu0 %v481
    %2987 = vmatpush.msra.mxu0 %v475
    %2988 = vmatpush.msra.mxu0 %v469
    %2989 = vmatpush.msra.mxu0 %v463
    %2990 = vmatpush.msra.mxu0 %v457
    %2991 = vmatpush.msra.mxu0 %v451
    %2992 = vmatpush.msra.mxu0 %v445
    %2993 = vmatpush.msra.mxu0 %v439
    %2994 = vmatpush.msra.mxu0 %v433
    %2995 = vmatpush.msra.mxu0 %v427
    %2996 = vmatmul.f32.gmra.mxu0 %v2855
    %v2997 = vpop.f32.mrf.mxu0
    %v2998 = vadd.f32 0.0, %v2997
    %2999 = vdwg.mxu0
    %3000 = vmatpush.msra.mxu0 0.0
    %3001 = vmatpush.msra.mxu0 0.0
    %3002 = vmatpush.msra.mxu0 0.0
    %3003 = vmatpush.msra.mxu0 0.0
    %3004 = vmatpush.msra.mxu0 0.0
    %3005 = vmatpush.msra.mxu0 0.0
    %3006 = vmatpush.msra.mxu0 0.0
    %3007 = vmatpush.msra.mxu0 0.0
    %3008 = vmatpush.msra.mxu0 %v565
    %3009 = vmatpush.msra.mxu0 %v559
    %3010 = vmatpush.msra.mxu0 %v553
    %3011 = vmatpush.msra.mxu0 %v547
    %3012 = vmatpush.msra.mxu0 %v541
    %3013 = vmatpush.msra.mxu0 %v535
    %3014 = vmatpush.msra.mxu0 %v529
    %3015 = vmatpush.msra.mxu0 %v523
    %3016 = vmatmul.f32.gmra.mxu0 %v2858
    %v3017 = vpop.f32.mrf.mxu0
    %v3018 = vadd.f32 %v2998, %v3017
    %3019 = vdwg.mxu0
    %3020 = vmatpush.msra.mxu0 %v518
    %3021 = vmatpush.msra.mxu0 %v512
    %3022 = vmatpush.msra.mxu0 %v506
    %3023 = vmatpush.msra.mxu0 %v500
    %3024 = vmatpush.msra.mxu0 %v494
    %3025 = vmatpush.msra.mxu0 %v488
    %3026 = vmatpush.msra.mxu0 %v482
    %3027 = vmatpush.msra.mxu0 %v476
    %3028 = vmatpush.msra.mxu0 %v470
    %3029 = vmatpush.msra.mxu0 %v464
    %3030 = vmatpush.msra.mxu0 %v458
    %3031 = vmatpush.msra.mxu0 %v452
    %3032 = vmatpush.msra.mxu0 %v446
    %3033 = vmatpush.msra.mxu0 %v440
    %3034 = vmatpush.msra.mxu0 %v434
    %3035 = vmatpush.msra.mxu0 %v428
    %3036 = vmatmul.f32.gmra.mxu0 %v2855
    %v3037 = vpop.f32.mrf.mxu0
    %v3038 = vadd.f32 0.0, %v3037
    %3039 = vdwg.mxu0
    %3040 = vmatpush.msra.mxu0 0.0
    %3041 = vmatpush.msra.mxu0 0.0
    %3042 = vmatpush.msra.mxu0 0.0
    %3043 = vmatpush.msra.mxu0 0.0
    %3044 = vmatpush.msra.mxu0 0.0
    %3045 = vmatpush.msra.mxu0 0.0
    %3046 = vmatpush.msra.mxu0 0.0
    %3047 = vmatpush.msra.mxu0 0.0
    %3048 = vmatpush.msra.mxu0 %v566
    %3049 = vmatpush.msra.mxu0 %v560
    %3050 = vmatpush.msra.mxu0 %v554
    %3051 = vmatpush.msra.mxu0 %v548
    %3052 = vmatpush.msra.mxu0 %v542
    %3053 = vmatpush.msra.mxu0 %v536
    %3054 = vmatpush.msra.mxu0 %v530
    %3055 = vmatpush.msra.mxu0 %v524
    %3056 = vmatmul.f32.gmra.mxu0 %v2858
    %v3057 = vpop.f32.mrf.mxu0
    %v3058 = vadd.f32 %v3038, %v3057
    %3059 = vdwg.mxu0
    %3060 = vmatpush.msra.mxu0 %v519
    %3061 = vmatpush.msra.mxu0 %v513
    %3062 = vmatpush.msra.mxu0 %v507
    %3063 = vmatpush.msra.mxu0 %v501
    %3064 = vmatpush.msra.mxu0 %v495
    %3065 = vmatpush.msra.mxu0 %v489
    %3066 = vmatpush.msra.mxu0 %v483
    %3067 = vmatpush.msra.mxu0 %v477
    %3068 = vmatpush.msra.mxu0 %v471
    %3069 = vmatpush.msra.mxu0 %v465
    %3070 = vmatpush.msra.mxu0 %v459
    %3071 = vmatpush.msra.mxu0 %v453
    %3072 = vmatpush.msra.mxu0 %v447
    %3073 = vmatpush.msra.mxu0 %v441
    %3074 = vmatpush.msra.mxu0 %v435
    %3075 = vmatpush.msra.mxu0 %v429
    %3076 = vmatmul.f32.gmra.mxu0 %v2855
    %v3077 = vpop.f32.mrf.mxu0
    %v3078 = vadd.f32 0.0, %v3077
    %3079 = vdwg.mxu0
    %3080 = vmatpush.msra.mxu0 0.0
    %3081 = vmatpush.msra.mxu0 0.0
    %3082 = vmatpush.msra.mxu0 0.0
    %3083 = vmatpush.msra.mxu0 0.0
    %3084 = vmatpush.msra.mxu0 0.0
    %3085 = vmatpush.msra.mxu0 0.0
    %3086 = vmatpush.msra.mxu0 0.0
    %3087 = vmatpush.msra.mxu0 0.0
    %3088 = vmatpush.msra.mxu0 %v567
    %3089 = vmatpush.msra.mxu0 %v561
    %3090 = vmatpush.msra.mxu0 %v555
    %3091 = vmatpush.msra.mxu0 %v549
    %3092 = vmatpush.msra.mxu0 %v543
    %3093 = vmatpush.msra.mxu0 %v537
    %3094 = vmatpush.msra.mxu0 %v531
    %3095 = vmatpush.msra.mxu0 %v525
    %3096 = vmatmul.f32.gmra.mxu0 %v2858
    %v3097 = vpop.f32.mrf.mxu0
    %v3098 = vadd.f32 %v3078, %v3097
    %3099 = vdwg.mxu0
    %v3106 = vrot.slane %v2938, 6
    %v3107 = vrot.slane %v2978, 4
    %v3108 = vrot.slane %v3018, 2
    %v3109 = vrot.slane %v3098, 6
    %v3110 = vsel %vm358, %v2898, %v3106
    %v3111 = vsel %vm360, %v3107, %v3108
    %v3112 = vsel %vm362, %v3110, %v3111
    %v3113 = vsel %vm358, %v3058, %v3109
    %v3116 = vadd.f32 %v405, %v3112
    %v3117 = vadd.f32 %v407, %v3113
    %v3118 = vxor.u32 %v3116, 2147483648
    %v3119 = vxor.u32 %v3117, 2147483648
    %v3120 = vmul.f32 %v3118, 1.442695
    %v3121 = vpow.pop %v3120
    %v3122 = vmul.f32 %v3119, 1.442695
    %v3123 = vpow.pop %v3122
    %v3124 = vadd.f32 %v3121, 1.0
    %v3125 = vadd.f32 %v3123, 1.0
    %v3126 = vrcp.pop %v3124
    %v3127 = vmul.f32 %v3124, %v3126
    %v3128 = vsub.f32 1.0, %v3127
    %v3129 = vmul.f32 %v3126, %v3128
    %v3130 = vadd.f32 %v3126, %v3129
    %vm3131 = vweird.f32 %v3124
    %vm3132 = vweird.f32 %v3126
    %vm3133 = vmor %vm3131, %vm3132
    %v3134 = vsel %vm3133, %v3126, %v3130
    %v3135 = vand.u32 2147483647, %v3124
    %vm3136 = vcmp.eq.f32.partialorder %v3135, 8.507059e+37
    %v3137 = vand.u32 %v3124, 2147483648
    %v3138 = vor.u32 1.1754944e-38, %v3137
    %v3139 = vsel %vm3136, %v3138, %v3134
    %v3140 = vmul.f32 1.0, %v3139
    %v3141 = vrcp.pop %v3125
    %v3142 = vmul.f32 %v3125, %v3141
    %v3143 = vsub.f32 1.0, %v3142
    %v3144 = vmul.f32 %v3141, %v3143
    %v3145 = vadd.f32 %v3141, %v3144
    %vm3146 = vweird.f32 %v3125
    %vm3147 = vweird.f32 %v3141
    %vm3148 = vmor %vm3146, %vm3147
    %v3149 = vsel %vm3148, %v3141, %v3145
    %v3150 = vand.u32 2147483647, %v3125
    %vm3151 = vcmp.eq.f32.partialorder %v3150, 8.507059e+37
    %v3152 = vand.u32 %v3125, 2147483648
    %v3153 = vor.u32 1.1754944e-38, %v3152
    %v3154 = vsel %vm3151, %v3153, %v3149
    %v3155 = vmul.f32 1.0, %v3154
    %v3156 = vtanh.pop %v3117
    %3158 = vrot.lane.b32.xlu0 %v3140, 64
    %v3159 = vpop.permute.xlu0 %3158
    %v3160 = vrot.slane %v3159, 2
    %v3161 = vrot.slane %v3159, 4
    %v3162 = vsel %vm193, %v3160, %v3161
    %v3164 = vmul.f32 %v3162, %v2845
    %3166 = vrot.lane.b32.xlu0 %v3156, 64
    %v3167 = vpop.permute.xlu0 %3166
    %v3168 = vrot.slane %v3167, 2
    %v3169 = vsel %vm193, %v3167, %v3168
    %v3171 = vmul.f32 %v3140, %v3169
    %v3172 = vadd.f32 %v3164, %v3171
    %v3173 = vtanh.pop %v3172
    %v3175 = vrot.slane %v3140, 6
    %v3176 = vrot.slane %v3155, 6
    %v3177 = vsel %vm358, %v3175, %v3176
    %v3179 = vmul.f32 %v3177, %v3173
    %v3180 = vld [vmem:[%s6] sm:$0xff]
    %v3181 = vld [vmem:[%s6 + $0x8] sm:$0xff]
    %v3182 = vld [vmem:[%s6 + $0x10] sm:$0xff]
    %v3183 = vld [vmem:[%s6 + $0x18] sm:$0xff]
    %v3184 = vld [vmem:[%s6 + $0x20] sm:$0xff]
    %v3185 = vld [vmem:[%s6 + $0x28] sm:$0xff]
    %v3186 = vld [vmem:[%s6 + $0x30] sm:$0xff]
    %v3187 = vld [vmem:[%s6 + $0x38] sm:$0xff]
    %v3188 = vld [vmem:[%s6 + $0x40] sm:$0xff]
    %v3189 = vld [vmem:[%s6 + $0x48] sm:$0xff]
    %v3190 = vld [vmem:[%s6 + $0x50] sm:$0xff]
    %v3191 = vld [vmem:[%s6 + $0x58] sm:$0xff]
    %v3192 = vld [vmem:[%s6 + $0x60] sm:$0xff]
    %v3193 = vld [vmem:[%s6 + $0x68] sm:$0xff]
    %v3194 = vld [vmem:[%s6 + $0x70] sm:$0xff]
    %v3195 = vld [vmem:[%s6 + $0x78] sm:$0xff]
    %v3196 = vld [vmem:[%s6 + $0x80] sm:$0xff]
    %v3197 = vld [vmem:[%s6 + $0x88] sm:$0xff]
    %v3198 = vld [vmem:[%s6 + $0x90] sm:$0xff]
    %v3199 = vld [vmem:[%s6 + $0x98] sm:$0xff]
    %v3200 = vld [vmem:[%s6 + $0xa0] sm:$0xff]
    %v3201 = vld [vmem:[%s6 + $0xa8] sm:$0xff]
    %v3202 = vld [vmem:[%s6 + $0xb0] sm:$0xff]
    %v3203 = vld [vmem:[%s6 + $0xb8] sm:$0xff]
    %v3204 = vld [vmem:[%s7] sm:$0x1]
    %v3206 = vperm.slane %v3204, 0
    %3209 = vst [vmem:[#allocation1] ss:$4 sm:$0xff] %v3179
    %v3210 = vld.sshfl [vmem:[#allocation1] sm:$0xff pattern:$0x73625140]
    %v3211 = vld.sshfl [vmem:[#allocation1 + $0x8] sm:$0xff pattern:$0x73625140]
    %v3213 = vsel %vm193, %v3211, 0
    %3215 = vmatpush.msra.mxu0 %v3195
    %3216 = vmatpush.msra.mxu0 %v3194
    %3217 = vmatpush.msra.mxu0 %v3193
    %3218 = vmatpush.msra.mxu0 %v3192
    %3219 = vmatpush.msra.mxu0 %v3191
    %3220 = vmatpush.msra.mxu0 %v3190
    %3221 = vmatpush.msra.mxu0 %v3189
    %3222 = vmatpush.msra.mxu0 %v3188
    %3223 = vmatpush.msra.mxu0 %v3187
    %3224 = vmatpush.msra.mxu0 %v3186
    %3225 = vmatpush.msra.mxu0 %v3185
    %3226 = vmatpush.msra.mxu0 %v3184
    %3227 = vmatpush.msra.mxu0 %v3183
    %3228 = vmatpush.msra.mxu0 %v3182
    %3229 = vmatpush.msra.mxu0 %v3181
    %3230 = vmatpush.msra.mxu0 %v3180
    %3231 = vmatmul.f32.gmra.mxu0 %v3210
    %v3232 = vpop.f32.mrf.mxu0
    %v3233 = vadd.f32 %v3206, %v3232
    %3234 = vdwg.mxu0
    %3235 = vmatpush.msra.mxu0 0.0
    %3236 = vmatpush.msra.mxu0 0.0
    %3237 = vmatpush.msra.mxu0 0.0
    %3238 = vmatpush.msra.mxu0 0.0
    %3239 = vmatpush.msra.mxu0 0.0
    %3240 = vmatpush.msra.mxu0 0.0
    %3241 = vmatpush.msra.mxu0 0.0
    %3242 = vmatpush.msra.mxu0 0.0
    %3243 = vmatpush.msra.mxu0 %v3203
    %3244 = vmatpush.msra.mxu0 %v3202
    %3245 = vmatpush.msra.mxu0 %v3201
    %3246 = vmatpush.msra.mxu0 %v3200
    %3247 = vmatpush.msra.mxu0 %v3199
    %3248 = vmatpush.msra.mxu0 %v3198
    %3249 = vmatpush.msra.mxu0 %v3197
    %3250 = vmatpush.msra.mxu0 %v3196
    %3251 = vmatmul.f32.gmra.mxu0 %v3213
    %v3252 = vpop.f32.mrf.mxu0
    %v3253 = vadd.f32 %v3233, %v3252
    %3254 = vdwg.mxu0
    %v3255 = vlaneseq
    %v3256 = vand.u32 %v3255, 127
    %vm3257 = vcmp.eq.s32.totalorder %v3256, 2
    %v3258 = vxor.u32 %v3253, 2147483648
    %v3259 = vmul.f32 %v3258, 1.442695
    %v3260 = vpow.pop %v3259
    %v3261 = vadd.f32 %v3260, 1.0
    %v3262 = vrcp.pop %v3261
    %v3263 = vmul.f32 %v3261, %v3262
    %v3264 = vsub.f32 1.0, %v3263
    %v3265 = vmul.f32 %v3262, %v3264
    %v3266 = vadd.f32 %v3262, %v3265
    %vm3267 = vweird.f32 %v3261
    %vm3268 = vweird.f32 %v3262
    %vm3269 = vmor %vm3267, %vm3268
    %v3270 = vsel %vm3269, %v3262, %v3266
    %v3271 = vand.u32 2147483647, %v3261
    %vm3272 = vcmp.eq.f32.partialorder %v3271, 8.507059e+37
    %v3273 = vand.u32 %v3261, 2147483648
    %v3274 = vor.u32 1.1754944e-38, %v3273
    %v3275 = vsel %vm3272, %v3274, %v3270
    %v3276 = vmul.f32 1.0, %v3275
    %vm3277 = vcmp.eq.s32.totalorder %v3256, 3
    %v3278 = vmax.f32 %v3253, 0.0
    %v3279 = vsel %vm3277, %v3278, %v3253
    %v3280 = vsel %vm3257, %v3276, %v3279
    %vm3281 = vcmask 25600
    %3282 = vst.msk [vmem:[#allocation7] sm:$0x3] %vm3281, %v3280
    // Predicated region
    $region42: #{tpu_custom_call.1} parent=1 // pred_check
      _
    $region43: #{tpu_custom_call.1} parent=1 // pred_check_branch
      %3284 = sbr.rel (0) target = $region45
    $region44: #{tpu_custom_call.1} parent=1 // pred_region
      %3286 = vsyncadd [#allocation4], 0
      %s3288 = sshll.u32 [#allocation7], 4
      %s3289 = int_to_ptr.vmem [resolvable:$true] %s3288
      %s3290 = sshll.u32 %s8, 4
      %s3291 = int_to_ptr.hbm [resolvable:$true] %s3290
      %3293 = dma.vmem_to_hbm [thread:$0]  %s3289, 32, %s3291, [#allocation4]
    $region45: #{tpu_custom_call.1} parent=1 // pred_fallthru
      _
    // Predicated region
    $region46: #{tpu_custom_call.1} parent=1 // pred_check
      _
    $region47: #{tpu_custom_call.1} parent=1 // pred_check_branch
      %3295 = sbr.rel (0) target = $region49
    $region48: #{tpu_custom_call.1} parent=1 // pred_region
      %3297 = dma.done [#allocation4], 32
    $region49: #{tpu_custom_call.1} parent=1 // pred_fallthru
      _
    %3298 = vsyncpa [#allocation3], 1
    %3299 = vsyncpa [#allocation6], 1
    %3300 = vsyncpa [#allocation4], 1

</llo_original>
